<compile_context>
chip_gen: v5e
topology: v5e:2x2
jax: 0.10.0
libtpu: 0.0.40
codegen_flags: <defaults>
</compile_context>

<pallas_src>
import numpy as np
import jax
import jax.numpy as jnp
from jax import lax
from jax.experimental import pallas as pl
from jax.experimental.pallas import tpu as pltpu


def _interp_matrix(n_in, n_out):
    """PyTorch bilinear align_corners=True interpolation weights (n_out, n_in)."""
    if n_out == 1:
        A = np.zeros((1, n_in), np.float32)
        A[0, 0] = 1.0
        return A
    src = np.arange(n_out, dtype=np.float64) * (n_in - 1) / (n_out - 1)
    i0 = np.clip(np.floor(src).astype(np.int64), 0, n_in - 1)
    i1 = np.clip(i0 + 1, 0, n_in - 1)
    frac = (src - i0).astype(np.float32)
    A = np.zeros((n_out, n_in), np.float32)
    A[np.arange(n_out), i0] += 1.0 - frac
    A[np.arange(n_out), i1] += frac
    return A


def _make_conv_kernel(H, W, Cin, Cmid, Cout):
    HW = H * W

    def kernel(x_ref, cm_ref, w1_ref, wc2_ref, bnb_ref, wc3_ref, w4_ref,
               b4_ref, o_ref, pad_ref):
        # Zero the dy halo rows of the padded im2col scratch.  Done
        # unconditionally each grid step so it stays correct when the batch
        # axis is split across TensorCores ("parallel" semantics).
        zeros_halo = jnp.zeros((W, 3 * Cmid), jnp.bfloat16)
        pad_ref[pl.ds(0, W), :] = zeros_halo
        pad_ref[pl.ds(W + HW, W), :] = zeros_halo

        x = x_ref[0]                                                   # (HW, Cin) bf16
        # rrb.conv_1x1 : 1x1 conv == channel matmul (MXU, bf16 in / f32 acc)
        t1 = jnp.dot(x, w1_ref[...], preferred_element_type=jnp.float32)  # (HW, Cmid) f32

        # host-precomputed column-wrap masks: 0 where w == 0 / w == W-1
        not_first = cm_ref[:, 0:1]                                     # (HW, 1) f32
        not_last = cm_ref[:, 1:2]                                      # (HW, 1) f32
        zero_row = jnp.zeros((1, Cmid), jnp.float32)

        def conv3x3(inp, wc_ref):
            # dx = -1 / +1 : shift by one flat row; the row-boundary wrap is
            # killed by the (HW, 1) broadcast masks.
            left = jnp.concatenate([zero_row, inp[:HW - 1, :]], axis=0) * not_first
            right = jnp.concatenate([inp[1:, :], zero_row], axis=0) * not_last
            # im2col over dx: K axis becomes 3*Cmid (fills the MXU K dim)
            cat = jnp.concatenate([left, inp, right], axis=1)          # (HW, 3*Cmid) f32
            # store once into the zero-haloed scratch (bf16)
            pad_ref[pl.ds(W, HW), :] = cat.astype(jnp.bfloat16)
            # dy = -1 / 0 / +1 are aligned offset views of the padded scratch
            acc = jnp.dot(pad_ref[pl.ds(0, HW), :], wc_ref[0],
                          preferred_element_type=jnp.float32)
            acc += jnp.dot(pad_ref[pl.ds(W, HW), :], wc_ref[1],
                           preferred_element_type=jnp.float32)
            acc += jnp.dot(pad_ref[pl.ds(2 * W, HW), :], wc_ref[2],
                           preferred_element_type=jnp.float32)
            return acc                                                 # (HW, Cmid) f32

        # rrb.cbr : 3x3 conv (bn_scale folded into weights) -> +bias -> ReLU
        c1 = conv3x3(t1, wc2_ref)
        t2 = jnp.maximum(c1 + bnb_ref[...], 0.0)
        # rrb.conv_refine : 3x3 conv, then residual with the conv_1x1 output
        c2 = conv3x3(t2, wc3_ref)
        r = c2 + t1
        # head conv : 1x1 conv with bias
        y = jnp.dot(r.astype(jnp.bfloat16), w4_ref[...],
                    preferred_element_type=jnp.float32) + b4_ref[...]
        o_ref[0] = y.astype(jnp.bfloat16)                              # (HW, Cout)

    return kernel


def _upsample_kernel(y_ref, awct_ref, ah_ref, o_ref):
    # separable align_corners=True bilinear upsample as two small bf16 matmuls:
    # first along W (kron(Aw, I_Cout)^T slab on the lane axis), then along H.
    z = jnp.dot(y_ref[0], awct_ref[...],
                preferred_element_type=jnp.float32)                    # (H, tile)
    o_ref[0] = jnp.dot(ah_ref[...], z.astype(jnp.bfloat16),
                       preferred_element_type=jnp.float32)             # (Hout, tile)


def _pick_lane_tile(n):
    """Largest multiple-of-128 divisor of n (capped), else the full extent."""
    for t in (2048, 1024, 512, 256, 128):
        if n % t == 0:
            return t
    return n


def dfn_head_forward(x_nchw, params, scale):
    N, Cin, H, W = x_nchw.shape
    w1, w2, w3, w4, b4 = (params[k] for k in ("w1", "w2", "w3", "w4", "b4"))
    bn_scale, bn_bias = params["bn_scale"], params["bn_bias"]
    Cmid = w1.shape[0]
    Cout = w4.shape[0]
    Hout, Wout = int(H * scale), int(W * scale)
    HW = H * W
    WoC = Wout * Cout

    # NCHW -> flattened NHWC (channels on the 128-lane axis), bf16 operands
    x_flat = jnp.transpose(x_nchw, (0, 2, 3, 1)).reshape(N, HW, Cin).astype(jnp.bfloat16)

    # column-wrap masks, computed once on the host: col 0 = (w != 0), col 1 = (w != W-1)
    col = np.arange(HW, dtype=np.int64) % W
    colmask = jnp.asarray(
        np.stack([(col >= 1), (col <= W - 2)], axis=1).astype(np.float32))  # (HW, 2)

    # weight re-layout (bf16 matmul operands, f32 bias terms)
    w1_k = jnp.transpose(w1[:, :, 0, 0]).astype(jnp.bfloat16)               # (Cin, Cmid)
    # 3x3 weights: (O, I, kh, kw) -> (kh, kw*Cin_mid, O); bn_scale folded into
    # the first conv's output channels.
    wc2_k = (jnp.transpose(w2, (2, 3, 1, 0)) * bn_scale[None, None, None, :]
             ).reshape(3, 3 * Cmid, Cmid).astype(jnp.bfloat16)
    wc3_k = jnp.transpose(w3, (2, 3, 1, 0)).reshape(3, 3 * Cmid, Cmid).astype(jnp.bfloat16)
    w4_k = jnp.transpose(w4[:, :, 0, 0]).astype(jnp.bfloat16)               # (Cmid, Cout)
    b4_k = b4.reshape(1, Cout).astype(jnp.float32)
    bnb_k = bn_bias.reshape(1, Cmid).astype(jnp.float32)

    # ---- pallas call 1: conv stack, per image, flat (HW, C) layout ----------
    conv_flops = 2 * 3 * (2 * HW * (3 * Cmid) * Cmid)
    flops1 = N * (2 * HW * Cin * Cmid + conv_flops + 2 * HW * Cmid * Cout)
    bytes1 = (2 * N * HW * (Cin + Cout)
              + 2 * (Cin * Cmid + 2 * 9 * Cmid * Cmid + Cmid * Cout)
              + 4 * (Cmid + Cout + 2 * HW))

    conv_kernel = _make_conv_kernel(H, W, Cin, Cmid, Cout)
    y_flat = pl.pallas_call(
        conv_kernel,
        out_shape=jax.ShapeDtypeStruct((N, HW, Cout), jnp.bfloat16),
        grid=(N,),
        in_specs=[
            pl.BlockSpec((1, HW, Cin), lambda b: (b, 0, 0)),
            pl.BlockSpec((HW, 2), lambda b: (0, 0)),
            pl.BlockSpec((Cin, Cmid), lambda b: (0, 0)),
            pl.BlockSpec((3, 3 * Cmid, Cmid), lambda b: (0, 0, 0)),
            pl.BlockSpec((1, Cmid), lambda b: (0, 0)),
            pl.BlockSpec((3, 3 * Cmid, Cmid), lambda b: (0, 0, 0)),
            pl.BlockSpec((Cmid, Cout), lambda b: (0, 0)),
            pl.BlockSpec((1, Cout), lambda b: (0, 0)),
        ],
        out_specs=pl.BlockSpec((1, HW, Cout), lambda b: (b, 0, 0)),
        scratch_shapes=[pltpu.VMEM((HW + 2 * W, 3 * Cmid), jnp.bfloat16)],
        compiler_params=pltpu.CompilerParams(
            dimension_semantics=("parallel",),
            vmem_limit_bytes=32 * 1024 * 1024),
        cost_estimate=pl.CostEstimate(flops=int(flops1), transcendentals=0,
                                      bytes_accessed=int(bytes1)),
    )(x_flat, colmask, w1_k, wc2_k, bnb_k, wc3_k, w4_k, b4_k)

    # relayout to the lane-dense (H, W*Cout) layout: same linear element order
    # as (HW, Cout), so this is a plain XLA reshape (no in-kernel shuffle).
    y2 = y_flat.reshape(N, H, W * Cout)

    # separable bilinear (align_corners=True) weights, bf16 operands
    Ah = jnp.asarray(_interp_matrix(H, Hout)).astype(jnp.bfloat16)          # (Hout, H)
    Aw = _interp_matrix(W, Wout)                                            # (Wout, W)
    AwcT = jnp.asarray(np.kron(Aw, np.eye(Cout, dtype=np.float32)).T
                       ).astype(jnp.bfloat16)                               # (W*Cout, WoC)

    # ---- pallas call 2: upsample, lane-dense, Wout*Cout tiled on the grid ---
    t_woc = _pick_lane_tile(WoC)
    n_j = WoC // t_woc
    flops2 = N * (2 * H * (W * Cout) * WoC + 2 * Hout * H * WoC)
    bytes2 = 2 * (N * HW * Cout + W * Cout * WoC + Hout * H) + 4 * N * Hout * WoC

    out_flat = pl.pallas_call(
        _upsample_kernel,
        out_shape=jax.ShapeDtypeStruct((N, Hout, WoC), jnp.float32),
        grid=(N, n_j),
        in_specs=[
            pl.BlockSpec((1, H, W * Cout), lambda b, j: (b, 0, 0)),
            pl.BlockSpec((W * Cout, t_woc), lambda b, j: (0, j)),
            pl.BlockSpec((Hout, H), lambda b, j: (0, 0)),
        ],
        out_specs=pl.BlockSpec((1, Hout, t_woc), lambda b, j: (b, 0, j)),
        compiler_params=pltpu.CompilerParams(
            dimension_semantics=("parallel", "parallel"),
            vmem_limit_bytes=32 * 1024 * 1024),
        cost_estimate=pl.CostEstimate(flops=int(flops2), transcendentals=0,
                                      bytes_accessed=int(bytes2)),
    )(y2, AwcT, Ah)

    out = out_flat.reshape(N, Hout, Wout, Cout)
    return jnp.transpose(out, (0, 3, 1, 2))                                 # back to NCHW


def reference_forward(x, params, scale):
    """Pure-JAX f32 reference (lax.conv + exact align_corners bilinear)."""
    w1, w2, w3, w4, b4 = (params[k] for k in ("w1", "w2", "w3", "w4", "b4"))
    bn_scale, bn_bias = params["bn_scale"], params["bn_bias"]
    N, Cin, H, W = x.shape
    Hout, Wout = int(H * scale), int(W * scale)

    def conv(a, w, pad):
        return lax.conv_general_dilated(
            a, w, window_strides=(1, 1),
            padding=((pad, pad), (pad, pad)),
            dimension_numbers=("NCHW", "OIHW", "NCHW"))

    t1 = conv(x, w1, 0)
    c1 = conv(t1, w2, 1)
    t2 = jnp.maximum(c1 * bn_scale[None, :, None, None] + bn_bias[None, :, None, None], 0.0)
    c2 = conv(t2, w3, 1)
    r = c2 + t1
    y = conv(r, w4, 0) + b4[None, :, None, None]
    Ah = jnp.asarray(_interp_matrix(H, Hout))
    Aw = jnp.asarray(_interp_matrix(W, Wout))
    yh = jnp.einsum("oh,nchw->ncow", Ah, y)
    return jnp.einsum("pw,ncow->ncop", Aw, yh)


if __name__ == "__main__":
    N, Cin, H, W = 2, 8, 16, 16
    out_planes = 4
    Cmid = out_planes * 9          # rrb widens to out_planes * 9
    scale = 2
    eps = 1e-5

    key = jax.random.PRNGKey(0)
    ks = jax.random.split(key, 10)
    w1 = 0.2 * jax.random.normal(ks[0], (Cmid, Cin, 1, 1), jnp.float32)
    w2 = 0.1 * jax.random.normal(ks[1], (Cmid, Cmid, 3, 3), jnp.float32)
    w3 = 0.1 * jax.random.normal(ks[2], (Cmid, Cmid, 3, 3), jnp.float32)
    w4 = 0.2 * jax.random.normal(ks[3], (out_planes, Cmid, 1, 1), jnp.float32)
    b4 = 0.1 * jax.random.normal(ks[4], (out_planes,), jnp.float32)
    gamma = 1.0 + 0.1 * jax.random.normal(ks[5], (Cmid,), jnp.float32)
    beta = 0.1 * jax.random.normal(ks[6], (Cmid,), jnp.float32)
    rmean = 0.1 * jax.random.normal(ks[7], (Cmid,), jnp.float32)
    rvar = jnp.abs(1.0 + 0.1 * jax.random.normal(ks[8], (Cmid,), jnp.float32))
    x = jax.random.normal(ks[9], (N, Cin, H, W), jnp.float32)

    # BatchNorm (eval mode, running stats) folded to per-channel affine.
    bn_scale = gamma / jnp.sqrt(rvar + eps)
    bn_bias = beta - rmean * bn_scale

    params = dict(w1=w1, w2=w2, w3=w3, w4=w4, b4=b4,
                  bn_scale=bn_scale, bn_bias=bn_bias)

    out = dfn_head_forward(x, params, scale)
    out = jax.block_until_ready(out)

    ref = np.asarray(reference_forward(x, params, scale))
    # bf16 MXU operands (per perf review): compare against the f32 reference
    # with a tolerance relative to the output scale.
    scale_ref = float(np.max(np.abs(ref)))
    np.testing.assert_allclose(np.asarray(out), ref,
                               atol=0.05 * scale_ref, rtol=0.05)
    print("KERNEL_OK")
</pallas_src>

<mosaic_0001>
module attributes {stable_mosaic.version = 11 : i64} {
  func.func @kernel(%arg0: i32, %arg1: memref<1x256x8xbf16, #tpu.memory_space<vmem>>, %arg2: memref<256x2xf32, #tpu.memory_space<vmem>>, %arg3: memref<8x36xbf16, #tpu.memory_space<vmem>>, %arg4: memref<3x108x36xbf16, #tpu.memory_space<vmem>>, %arg5: memref<1x36xf32, #tpu.memory_space<vmem>>, %arg6: memref<3x108x36xbf16, #tpu.memory_space<vmem>>, %arg7: memref<36x4xbf16, #tpu.memory_space<vmem>>, %arg8: memref<1x4xf32, #tpu.memory_space<vmem>>, %arg9: memref<1x256x4xbf16, #tpu.memory_space<vmem>>, %arg10: memref<288x108xbf16, #tpu.memory_space<vmem>>) attributes {dimension_semantics = [#tpu.dimension_semantics<parallel>], iteration_bounds = array<i64: 2>, scalar_prefetch = 0 : i64, scratch_operands = 1 : i64, tpu.core_type = #tpu.core_type<tc>, window_params = [{transform_indices = @transform_0, window_bounds = array<i64: 1, 256, 8>}, {pipeline_mode = #tpu.pipeline_mode<synchronous>, transform_indices = @transform_1, window_bounds = array<i64: 256, 2>}, {pipeline_mode = #tpu.pipeline_mode<synchronous>, transform_indices = @transform_2, window_bounds = array<i64: 8, 36>}, {pipeline_mode = #tpu.pipeline_mode<synchronous>, transform_indices = @transform_3, window_bounds = array<i64: 3, 108, 36>}, {pipeline_mode = #tpu.pipeline_mode<synchronous>, transform_indices = @transform_4, window_bounds = array<i64: 1, 36>}, {pipeline_mode = #tpu.pipeline_mode<synchronous>, transform_indices = @transform_5, window_bounds = array<i64: 3, 108, 36>}, {pipeline_mode = #tpu.pipeline_mode<synchronous>, transform_indices = @transform_6, window_bounds = array<i64: 36, 4>}, {pipeline_mode = #tpu.pipeline_mode<synchronous>, transform_indices = @transform_7, window_bounds = array<i64: 1, 4>}, {transform_indices = @transform_8, window_bounds = array<i64: 1, 256, 4>}]} {
    %cst = arith.constant 0.000000e+00 : bf16
    %0 = vector.broadcast %cst : bf16 to vector<16x108xbf16>
    %c0 = arith.constant 0 : index
    %c0_0 = arith.constant 0 : index
    %1 = vector.load %arg10[%c0, %c0_0] : memref<288x108xbf16, #tpu.memory_space<vmem>>, vector<16x108xbf16>
    tpu.vector_store %arg10[%c0, %c0_0], %0 {strides = array<i32>} : memref<288x108xbf16, #tpu.memory_space<vmem>>, vector<16x108xbf16>,
    %c272 = arith.constant 272 : index
    %c0_1 = arith.constant 0 : index
    %2 = vector.load %arg10[%c272, %c0_1] : memref<288x108xbf16, #tpu.memory_space<vmem>>, vector<16x108xbf16>
    tpu.vector_store %arg10[%c272, %c0_1], %0 {strides = array<i32>} : memref<288x108xbf16, #tpu.memory_space<vmem>>, vector<16x108xbf16>,
    %c0_2 = arith.constant 0 : index
    %c0_3 = arith.constant 0 : index
    %c0_4 = arith.constant 0 : index
    %3 = vector.load %arg1[%c0_2, %c0_3, %c0_4] : memref<1x256x8xbf16, #tpu.memory_space<vmem>>, vector<1x256x8xbf16>
    %4 = vector.shape_cast %3 : vector<1x256x8xbf16> to vector<256x8xbf16>
    %c0_5 = arith.constant 0 : index
    %c0_6 = arith.constant 0 : index
    %5 = vector.load %arg3[%c0_5, %c0_6] : memref<8x36xbf16, #tpu.memory_space<vmem>>, vector<8x36xbf16>
    %cst_7 = arith.constant dense<0.000000e+00> : vector<256x36xf32>
    %6 = tpu.matmul %4, %5, %cst_7 {dimension_numbers = #tpu.dot_dimension_numbers<[1], [0], [0], [1], [0, 0, 1, 1], [], []>} : vector<256x8xbf16>, vector<8x36xbf16>, vector<256x36xf32> -> vector<256x36xf32>
    %c0_8 = arith.constant 0 : index
    %c0_9 = arith.constant 0 : index
    %7 = vector.load %arg2[%c0_8, %c0_9] : memref<256x2xf32, #tpu.memory_space<vmem>>, vector<256x1xf32>
    %c0_10 = arith.constant 0 : index
    %c1 = arith.constant 1 : index
    %8 = vector.load %arg2[%c0_10, %c1] : memref<256x2xf32, #tpu.memory_space<vmem>>, vector<256x1xf32>
    %cst_11 = arith.constant 0.000000e+00 : f32
    %9 = vector.broadcast %cst_11 : f32 to vector<1x36xf32>
    %10 = vector.extract_strided_slice %6 {offsets = [0, 0], sizes = [255, 36], strides = [1, 1]} : vector<256x36xf32> to vector<255x36xf32>
    %11 = tpu.concatenate %9, %10 in 0 : vector<1x36xf32>, vector<255x36xf32> -> vector<256x36xf32>
    %12 = vector.broadcast %7 : vector<256x1xf32> to vector<256x36xf32>
    %13 = arith.mulf %11, %12 : vector<256x36xf32>
    %14 = vector.extract_strided_slice %6 {offsets = [1, 0], sizes = [255, 36], strides = [1, 1]} : vector<256x36xf32> to vector<255x36xf32>
    %15 = tpu.concatenate %14, %9 in 0 : vector<255x36xf32>, vector<1x36xf32> -> vector<256x36xf32>
    %16 = vector.broadcast %8 : vector<256x1xf32> to vector<256x36xf32>
    %17 = arith.mulf %15, %16 : vector<256x36xf32>
    %18 = tpu.concatenate %13, %6, %17 in 1 : vector<256x36xf32>, vector<256x36xf32>, vector<256x36xf32> -> vector<256x108xf32>
    %19 = arith.truncf %18 : vector<256x108xf32> to vector<256x108xbf16>
    %c16 = arith.constant 16 : index
    %c0_12 = arith.constant 0 : index
    %20 = vector.load %arg10[%c16, %c0_12] : memref<288x108xbf16, #tpu.memory_space<vmem>>, vector<256x108xbf16>
    tpu.vector_store %arg10[%c16, %c0_12], %19 {strides = array<i32>} : memref<288x108xbf16, #tpu.memory_space<vmem>>, vector<256x108xbf16>,
    %c0_13 = arith.constant 0 : index
    %c0_14 = arith.constant 0 : index
    %21 = vector.load %arg10[%c0_13, %c0_14] : memref<288x108xbf16, #tpu.memory_space<vmem>>, vector<256x108xbf16>
    %c0_15 = arith.constant 0 : index
    %c0_16 = arith.constant 0 : index
    %c0_17 = arith.constant 0 : index
    %22 = vector.load %arg4[%c0_15, %c0_16, %c0_17] : memref<3x108x36xbf16, #tpu.memory_space<vmem>>, vector<1x108x36xbf16>
    %23 = vector.shape_cast %22 : vector<1x108x36xbf16> to vector<108x36xbf16>
    %cst_18 = arith.constant dense<0.000000e+00> : vector<256x36xf32>
    %24 = tpu.matmul %21, %23, %cst_18 {dimension_numbers = #tpu.dot_dimension_numbers<[1], [0], [0], [1], [0, 0, 1, 1], [], []>} : vector<256x108xbf16>, vector<108x36xbf16>, vector<256x36xf32> -> vector<256x36xf32>
    %c16_19 = arith.constant 16 : index
    %c0_20 = arith.constant 0 : index
    %25 = vector.load %arg10[%c16_19, %c0_20] : memref<288x108xbf16, #tpu.memory_space<vmem>>, vector<256x108xbf16>
    %c1_21 = arith.constant 1 : index
    %c0_22 = arith.constant 0 : index
    %c0_23 = arith.constant 0 : index
    %26 = vector.load %arg4[%c1_21, %c0_22, %c0_23] : memref<3x108x36xbf16, #tpu.memory_space<vmem>>, vector<1x108x36xbf16>
    %27 = vector.shape_cast %26 : vector<1x108x36xbf16> to vector<108x36xbf16>
    %cst_24 = arith.constant dense<0.000000e+00> : vector<256x36xf32>
    %28 = tpu.matmul %25, %27, %cst_24 {dimension_numbers = #tpu.dot_dimension_numbers<[1], [0], [0], [1], [0, 0, 1, 1], [], []>} : vector<256x108xbf16>, vector<108x36xbf16>, vector<256x36xf32> -> vector<256x36xf32>
    %29 = arith.addf %24, %28 : vector<256x36xf32>
    %c32 = arith.constant 32 : index
    %c0_25 = arith.constant 0 : index
    %30 = vector.load %arg10[%c32, %c0_25] : memref<288x108xbf16, #tpu.memory_space<vmem>>, vector<256x108xbf16>
    %c2 = arith.constant 2 : index
    %c0_26 = arith.constant 0 : index
    %c0_27 = arith.constant 0 : index
    %31 = vector.load %arg4[%c2, %c0_26, %c0_27] : memref<3x108x36xbf16, #tpu.memory_space<vmem>>, vector<1x108x36xbf16>
    %32 = vector.shape_cast %31 : vector<1x108x36xbf16> to vector<108x36xbf16>
    %cst_28 = arith.constant dense<0.000000e+00> : vector<256x36xf32>
    %33 = tpu.matmul %30, %32, %cst_28 {dimension_numbers = #tpu.dot_dimension_numbers<[1], [0], [0], [1], [0, 0, 1, 1], [], []>} : vector<256x108xbf16>, vector<108x36xbf16>, vector<256x36xf32> -> vector<256x36xf32>
    %34 = arith.addf %29, %33 : vector<256x36xf32>
    %c0_29 = arith.constant 0 : index
    %c0_30 = arith.constant 0 : index
    %35 = vector.load %arg5[%c0_29, %c0_30] : memref<1x36xf32, #tpu.memory_space<vmem>>, vector<1x36xf32>
    %36 = vector.broadcast %35 : vector<1x36xf32> to vector<256x36xf32>
    %37 = arith.addf %34, %36 : vector<256x36xf32>
    %cst_31 = arith.constant 0.000000e+00 : f32
    %38 = vector.broadcast %cst_31 : f32 to vector<256x36xf32>
    %39 = arith.maximumf %37, %38 : vector<256x36xf32>
    %40 = vector.extract_strided_slice %39 {offsets = [0, 0], sizes = [255, 36], strides = [1, 1]} : vector<256x36xf32> to vector<255x36xf32>
    %41 = tpu.concatenate %9, %40 in 0 : vector<1x36xf32>, vector<255x36xf32> -> vector<256x36xf32>
    %42 = vector.broadcast %7 : vector<256x1xf32> to vector<256x36xf32>
    %43 = arith.mulf %41, %42 : vector<256x36xf32>
    %44 = vector.extract_strided_slice %39 {offsets = [1, 0], sizes = [255, 36], strides = [1, 1]} : vector<256x36xf32> to vector<255x36xf32>
    %45 = tpu.concatenate %44, %9 in 0 : vector<255x36xf32>, vector<1x36xf32> -> vector<256x36xf32>
    %46 = vector.broadcast %8 : vector<256x1xf32> to vector<256x36xf32>
    %47 = arith.mulf %45, %46 : vector<256x36xf32>
    %48 = tpu.concatenate %43, %39, %47 in 1 : vector<256x36xf32>, vector<256x36xf32>, vector<256x36xf32> -> vector<256x108xf32>
    %49 = arith.truncf %48 : vector<256x108xf32> to vector<256x108xbf16>
    %c16_32 = arith.constant 16 : index
    %c0_33 = arith.constant 0 : index
    %50 = vector.load %arg10[%c16_32, %c0_33] : memref<288x108xbf16, #tpu.memory_space<vmem>>, vector<256x108xbf16>
    tpu.vector_store %arg10[%c16_32, %c0_33], %49 {strides = array<i32>} : memref<288x108xbf16, #tpu.memory_space<vmem>>, vector<256x108xbf16>,
    %c0_34 = arith.constant 0 : index
    %c0_35 = arith.constant 0 : index
    %51 = vector.load %arg10[%c0_34, %c0_35] : memref<288x108xbf16, #tpu.memory_space<vmem>>, vector<256x108xbf16>
    %c0_36 = arith.constant 0 : index
    %c0_37 = arith.constant 0 : index
    %c0_38 = arith.constant 0 : index
    %52 = vector.load %arg6[%c0_36, %c0_37, %c0_38] : memref<3x108x36xbf16, #tpu.memory_space<vmem>>, vector<1x108x36xbf16>
    %53 = vector.shape_cast %52 : vector<1x108x36xbf16> to vector<108x36xbf16>
    %cst_39 = arith.constant dense<0.000000e+00> : vector<256x36xf32>
    %54 = tpu.matmul %51, %53, %cst_39 {dimension_numbers = #tpu.dot_dimension_numbers<[1], [0], [0], [1], [0, 0, 1, 1], [], []>} : vector<256x108xbf16>, vector<108x36xbf16>, vector<256x36xf32> -> vector<256x36xf32>
    %c16_40 = arith.constant 16 : index
    %c0_41 = arith.constant 0 : index
    %55 = vector.load %arg10[%c16_40, %c0_41] : memref<288x108xbf16, #tpu.memory_space<vmem>>, vector<256x108xbf16>
    %c1_42 = arith.constant 1 : index
    %c0_43 = arith.constant 0 : index
    %c0_44 = arith.constant 0 : index
    %56 = vector.load %arg6[%c1_42, %c0_43, %c0_44] : memref<3x108x36xbf16, #tpu.memory_space<vmem>>, vector<1x108x36xbf16>
    %57 = vector.shape_cast %56 : vector<1x108x36xbf16> to vector<108x36xbf16>
    %cst_45 = arith.constant dense<0.000000e+00> : vector<256x36xf32>
    %58 = tpu.matmul %55, %57, %cst_45 {dimension_numbers = #tpu.dot_dimension_numbers<[1], [0], [0], [1], [0, 0, 1, 1], [], []>} : vector<256x108xbf16>, vector<108x36xbf16>, vector<256x36xf32> -> vector<256x36xf32>
    %59 = arith.addf %54, %58 : vector<256x36xf32>
    %c32_46 = arith.constant 32 : index
    %c0_47 = arith.constant 0 : index
    %60 = vector.load %arg10[%c32_46, %c0_47] : memref<288x108xbf16, #tpu.memory_space<vmem>>, vector<256x108xbf16>
    %c2_48 = arith.constant 2 : index
    %c0_49 = arith.constant 0 : index
    %c0_50 = arith.constant 0 : index
    %61 = vector.load %arg6[%c2_48, %c0_49, %c0_50] : memref<3x108x36xbf16, #tpu.memory_space<vmem>>, vector<1x108x36xbf16>
    %62 = vector.shape_cast %61 : vector<1x108x36xbf16> to vector<108x36xbf16>
    %cst_51 = arith.constant dense<0.000000e+00> : vector<256x36xf32>
    %63 = tpu.matmul %60, %62, %cst_51 {dimension_numbers = #tpu.dot_dimension_numbers<[1], [0], [0], [1], [0, 0, 1, 1], [], []>} : vector<256x108xbf16>, vector<108x36xbf16>, vector<256x36xf32> -> vector<256x36xf32>
    %64 = arith.addf %59, %63 : vector<256x36xf32>
    %65 = arith.addf %64, %6 : vector<256x36xf32>
    %66 = arith.truncf %65 : vector<256x36xf32> to vector<256x36xbf16>
    %c0_52 = arith.constant 0 : index
    %c0_53 = arith.constant 0 : index
    %67 = vector.load %arg7[%c0_52, %c0_53] : memref<36x4xbf16, #tpu.memory_space<vmem>>, vector<36x4xbf16>
    %cst_54 = arith.constant dense<0.000000e+00> : vector<256x4xf32>
    %68 = tpu.matmul %66, %67, %cst_54 {dimension_numbers = #tpu.dot_dimension_numbers<[1], [0], [0], [1], [0, 0, 1, 1], [], []>} : vector<256x36xbf16>, vector<36x4xbf16>, vector<256x4xf32> -> vector<256x4xf32>
    %c0_55 = arith.constant 0 : index
    %c0_56 = arith.constant 0 : index
    %69 = vector.load %arg8[%c0_55, %c0_56] : memref<1x4xf32, #tpu.memory_space<vmem>>, vector<1x4xf32>
    %70 = vector.broadcast %69 : vector<1x4xf32> to vector<256x4xf32>
    %71 = arith.addf %68, %70 : vector<256x4xf32>
    %72 = arith.truncf %71 : vector<256x4xf32> to vector<256x4xbf16>
    %c0_57 = arith.constant 0 : index
    %c0_58 = arith.constant 0 : index
    %c0_59 = arith.constant 0 : index
    %73 = vector.load %arg9[%c0_57, %c0_58, %c0_59] : memref<1x256x4xbf16, #tpu.memory_space<vmem>>, vector<1x256x4xbf16>
    %74 = vector.shape_cast %73 : vector<1x256x4xbf16> to vector<256x4xbf16>
    %75 = vector.shape_cast %72 : vector<256x4xbf16> to vector<1x256x4xbf16>
    tpu.vector_store %arg9[%c0_57, %c0_58, %c0_59], %75 {strides = array<i32>} : memref<1x256x4xbf16, #tpu.memory_space<vmem>>, vector<1x256x4xbf16>,
    return
  }
  func.func @transform_0(%arg0: i32) -> (i32, i32, i32) {
    %c0_i32 = arith.constant 0 : i32
    %c0_i32_0 = arith.constant 0 : i32
    %c0_i32_1 = arith.constant 0 : i32
    return %arg0, %c0_i32, %c0_i32_0 : i32, i32, i32
  }
  func.func @transform_1(%arg0: i32) -> (i32, i32) {
    %c0_i32 = arith.constant 0 : i32
    %c0_i32_0 = arith.constant 0 : i32
    %c0_i32_1 = arith.constant 0 : i32
    return %c0_i32, %c0_i32_0 : i32, i32
  }
  func.func @transform_2(%arg0: i32) -> (i32, i32) {
    %c0_i32 = arith.constant 0 : i32
    %c0_i32_0 = arith.constant 0 : i32
    %c0_i32_1 = arith.constant 0 : i32
    return %c0_i32, %c0_i32_0 : i32, i32
  }
  func.func @transform_3(%arg0: i32) -> (i32, i32, i32) {
    %c0_i32 = arith.constant 0 : i32
    %c0_i32_0 = arith.constant 0 : i32
    %c0_i32_1 = arith.constant 0 : i32
    %c0_i32_2 = arith.constant 0 : i32
    return %c0_i32, %c0_i32_0, %c0_i32_1 : i32, i32, i32
  }
  func.func @transform_4(%arg0: i32) -> (i32, i32) {
    %c0_i32 = arith.constant 0 : i32
    %c0_i32_0 = arith.constant 0 : i32
    %c0_i32_1 = arith.constant 0 : i32
    return %c0_i32, %c0_i32_0 : i32, i32
  }
  func.func @transform_5(%arg0: i32) -> (i32, i32, i32) {
    %c0_i32 = arith.constant 0 : i32
    %c0_i32_0 = arith.constant 0 : i32
    %c0_i32_1 = arith.constant 0 : i32
    %c0_i32_2 = arith.constant 0 : i32
    return %c0_i32, %c0_i32_0, %c0_i32_1 : i32, i32, i32
  }
  func.func @transform_6(%arg0: i32) -> (i32, i32) {
    %c0_i32 = arith.constant 0 : i32
    %c0_i32_0 = arith.constant 0 : i32
    %c0_i32_1 = arith.constant 0 : i32
    return %c0_i32, %c0_i32_0 : i32, i32
  }
  func.func @transform_7(%arg0: i32) -> (i32, i32) {
    %c0_i32 = arith.constant 0 : i32
    %c0_i32_0 = arith.constant 0 : i32
    %c0_i32_1 = arith.constant 0 : i32
    return %c0_i32, %c0_i32_0 : i32, i32
  }
  func.func @transform_8(%arg0: i32) -> (i32, i32, i32) {
    %c0_i32 = arith.constant 0 : i32
    %c0_i32_0 = arith.constant 0 : i32
    %c0_i32_1 = arith.constant 0 : i32
    return %arg0, %c0_i32, %c0_i32_0 : i32, i32, i32
  }
}

</mosaic_0001>

<llo_original>
// kernel: tpu_custom_call.1
$region0: #{tpu_custom_call.1}
  #allocation0 [shape = 'u32[]', space=smem, size = 0x4, offset = 0x4, fixed_abs, tag = 'smem constant byte address 0x4 - core index']
  #allocation1 [shape = 'u32[72,128]{1,0:T(1,128)}', space=vmem, size = 0x9000, scoped, tag = 'internal scratch']
  #allocation2 [shape = 'bf16[288,108]{1,0:T(8,128)(2,1)}', space=vmem, size = 0x12000, scoped, tag = 'scratch operand']
  %s0 = inlined_call_operand.vmem [shape: bf16[2,256,8], index: 0, kind: input, shape index: {}]
  %s1 = inlined_call_operand.vmem [shape: f32[256,2], index: 1, kind: input, shape index: {}]
  %s2 = inlined_call_operand.vmem [shape: bf16[8,36], index: 2, kind: input, shape index: {}]
  %s3 = inlined_call_operand.vmem [shape: bf16[3,108,36], index: 3, kind: input, shape index: {}]
  %s4 = inlined_call_operand.vmem [shape: f32[1,36], index: 4, kind: input, shape index: {}]
  %s5 = inlined_call_operand.vmem [shape: bf16[3,108,36], index: 5, kind: input, shape index: {}]
  %s6 = inlined_call_operand.vmem [shape: bf16[36,4], index: 6, kind: input, shape index: {}]
  %s7 = inlined_call_operand.vmem [shape: f32[1,4], index: 7, kind: input, shape index: {}]
  %s8 = inlined_call_operand.vmem [shape: bf16[2,256,4], index: 8, kind: output, shape index: {}]
  %s9 = sld [smem:[#allocation0]]
  $region65: #{tpu_custom_call.1} parent=0
    _
  %s11 = ssub.s32 1, %s9
  %s12 = scalar_select 0, %s11, %s9
  loop: start=0, step=1, limit=4
  $region2: #{tpu_custom_call.1} parent=0 // loop_pre_header
    _
  $region3: #{tpu_custom_call.1} parent=0 // loop_header
    %s14 = sphi 0, %s18
    %p15 = scmp.ge.s32.totalorder %s14, 4
    %s24 = sphi 0, %s26
    %s27 = sphi 0, %s24
    %s28 = sphi 0, %s27
    %s44 = sphi 0, %s28
    %s48 = sphi 0, %s48
    %s50 = sphi 0, %s48
    %s51 = sphi 0, %s50
    %s65 = sphi 0, %s51
    %s69 = sphi 0, %s69
    %s71 = sphi 0, %s69
    %s72 = sphi 0, %s71
    %s86 = sphi 0, %s72
    %s90 = sphi 0, %s90
    %s92 = sphi 0, %s90
    %s93 = sphi 0, %s92
    %s107 = sphi 0, %s93
    %s111 = sphi 0, %s111
    %s113 = sphi 0, %s111
    %s114 = sphi 0, %s113
    %s128 = sphi 0, %s114
    %s132 = sphi 0, %s132
    %s134 = sphi 0, %s132
    %s135 = sphi 0, %s134
    %s149 = sphi 0, %s135
    %s153 = sphi 0, %s153
    %s155 = sphi 0, %s153
    %s156 = sphi 0, %s155
    %s170 = sphi 0, %s156
    %s174 = sphi 0, %s174
    %s176 = sphi 0, %s174
    %s177 = sphi 0, %s176
    %s191 = sphi 0, %s177
    %s197 = sphi 0, %s199
    %s200 = sphi 0, %s197
    %s201 = sphi 0, %s200
    %s217 = sphi 0, %s201
  $region4: #{tpu_custom_call.1} parent=0 // loop_header_branch
    %17 = sbr.rel (%p15) target = $region8
  $region5: #{tpu_custom_call.1} parent=0 // loop_body
    %s19 = ssub.s32 %s14, 1
    %s20 = ssub.s32 %s14, 2
    %s21 = sadd.s32 %s14, 1
    %s22 = ssub.s32 %s14, %s21
    %p23 = scmp.eq.s32.totalorder %s22, 0
    %s25 = sadd.s32 %s24, 1
    %s26 = scalar_select %p23, %s24, %s25
    %p29 = pneg %p23
    %p30 = scmp.eq.s32.totalorder %s14, 1
    %p31 = por %p29, %p30
    %p32 = scmp.ne.s32.totalorder %s24, %s27
    %p33 = scmp.eq.s32.totalorder %s14, 0
    %p34 = por %p32, %p33
    %p35 = scmp.ne.s32.totalorder %s24, %s27
    %p36 = scmp.eq.s32.totalorder %s19, 1
    %p37 = por %p35, %p36
    %p38 = scmp.ne.s32.totalorder %s27, %s28
    %p39 = scmp.eq.s32.totalorder %s19, 0
    %p40 = por %p38, %p39
    %p41 = scmp.ne.s32.totalorder %s27, %s28
    %p42 = scmp.eq.s32.totalorder %s20, 1
    %p43 = por %p41, %p42
    %p45 = scmp.ne.s32.totalorder %s28, %s44
    %p46 = scmp.eq.s32.totalorder %s20, 0
    %p47 = por %p45, %p46
    %s49 = sadd.s32 %s48, 1
    %p52 = scmp.eq.s32.totalorder %s14, 1
    %p53 = scmp.ne.s32.totalorder %s48, %s50
    %p54 = scmp.eq.s32.totalorder %s14, 0
    %p55 = por %p53, %p54
    %p56 = scmp.ne.s32.totalorder %s48, %s50
    %p57 = scmp.eq.s32.totalorder %s19, 1
    %p58 = por %p56, %p57
    %p59 = scmp.ne.s32.totalorder %s50, %s51
    %p60 = scmp.eq.s32.totalorder %s19, 0
    %p61 = por %p59, %p60
    %p62 = scmp.ne.s32.totalorder %s50, %s51
    %p63 = scmp.eq.s32.totalorder %s20, 1
    %p64 = por %p62, %p63
    %p66 = scmp.ne.s32.totalorder %s51, %s65
    %p67 = scmp.eq.s32.totalorder %s20, 0
    %p68 = por %p66, %p67
    %s70 = sadd.s32 %s69, 1
    %p73 = scmp.eq.s32.totalorder %s14, 1
    %p74 = scmp.ne.s32.totalorder %s69, %s71
    %p75 = scmp.eq.s32.totalorder %s14, 0
    %p76 = por %p74, %p75
    %p77 = scmp.ne.s32.totalorder %s69, %s71
    %p78 = scmp.eq.s32.totalorder %s19, 1
    %p79 = por %p77, %p78
    %p80 = scmp.ne.s32.totalorder %s71, %s72
    %p81 = scmp.eq.s32.totalorder %s19, 0
    %p82 = por %p80, %p81
    %p83 = scmp.ne.s32.totalorder %s71, %s72
    %p84 = scmp.eq.s32.totalorder %s20, 1
    %p85 = por %p83, %p84
    %p87 = scmp.ne.s32.totalorder %s72, %s86
    %p88 = scmp.eq.s32.totalorder %s20, 0
    %p89 = por %p87, %p88
    %s91 = sadd.s32 %s90, 1
    %p94 = scmp.eq.s32.totalorder %s14, 1
    %p95 = scmp.ne.s32.totalorder %s90, %s92
    %p96 = scmp.eq.s32.totalorder %s14, 0
    %p97 = por %p95, %p96
    %p98 = scmp.ne.s32.totalorder %s90, %s92
    %p99 = scmp.eq.s32.totalorder %s19, 1
    %p100 = por %p98, %p99
    %p101 = scmp.ne.s32.totalorder %s92, %s93
    %p102 = scmp.eq.s32.totalorder %s19, 0
    %p103 = por %p101, %p102
    %p104 = scmp.ne.s32.totalorder %s92, %s93
    %p105 = scmp.eq.s32.totalorder %s20, 1
    %p106 = por %p104, %p105
    %p108 = scmp.ne.s32.totalorder %s93, %s107
    %p109 = scmp.eq.s32.totalorder %s20, 0
    %p110 = por %p108, %p109
    %s112 = sadd.s32 %s111, 1
    %p115 = scmp.eq.s32.totalorder %s14, 1
    %p116 = scmp.ne.s32.totalorder %s111, %s113
    %p117 = scmp.eq.s32.totalorder %s14, 0
    %p118 = por %p116, %p117
    %p119 = scmp.ne.s32.totalorder %s111, %s113
    %p120 = scmp.eq.s32.totalorder %s19, 1
    %p121 = por %p119, %p120
    %p122 = scmp.ne.s32.totalorder %s113, %s114
    %p123 = scmp.eq.s32.totalorder %s19, 0
    %p124 = por %p122, %p123
    %p125 = scmp.ne.s32.totalorder %s113, %s114
    %p126 = scmp.eq.s32.totalorder %s20, 1
    %p127 = por %p125, %p126
    %p129 = scmp.ne.s32.totalorder %s114, %s128
    %p130 = scmp.eq.s32.totalorder %s20, 0
    %p131 = por %p129, %p130
    %s133 = sadd.s32 %s132, 1
    %p136 = scmp.eq.s32.totalorder %s14, 1
    %p137 = scmp.ne.s32.totalorder %s132, %s134
    %p138 = scmp.eq.s32.totalorder %s14, 0
    %p139 = por %p137, %p138
    %p140 = scmp.ne.s32.totalorder %s132, %s134
    %p141 = scmp.eq.s32.totalorder %s19, 1
    %p142 = por %p140, %p141
    %p143 = scmp.ne.s32.totalorder %s134, %s135
    %p144 = scmp.eq.s32.totalorder %s19, 0
    %p145 = por %p143, %p144
    %p146 = scmp.ne.s32.totalorder %s134, %s135
    %p147 = scmp.eq.s32.totalorder %s20, 1
    %p148 = por %p146, %p147
    %p150 = scmp.ne.s32.totalorder %s135, %s149
    %p151 = scmp.eq.s32.totalorder %s20, 0
    %p152 = por %p150, %p151
    %s154 = sadd.s32 %s153, 1
    %p157 = scmp.eq.s32.totalorder %s14, 1
    %p158 = scmp.ne.s32.totalorder %s153, %s155
    %p159 = scmp.eq.s32.totalorder %s14, 0
    %p160 = por %p158, %p159
    %p161 = scmp.ne.s32.totalorder %s153, %s155
    %p162 = scmp.eq.s32.totalorder %s19, 1
    %p163 = por %p161, %p162
    %p164 = scmp.ne.s32.totalorder %s155, %s156
    %p165 = scmp.eq.s32.totalorder %s19, 0
    %p166 = por %p164, %p165
    %p167 = scmp.ne.s32.totalorder %s155, %s156
    %p168 = scmp.eq.s32.totalorder %s20, 1
    %p169 = por %p167, %p168
    %p171 = scmp.ne.s32.totalorder %s156, %s170
    %p172 = scmp.eq.s32.totalorder %s20, 0
    %p173 = por %p171, %p172
    %s175 = sadd.s32 %s174, 1
    %p178 = scmp.eq.s32.totalorder %s14, 1
    %p179 = scmp.ne.s32.totalorder %s174, %s176
    %p180 = scmp.eq.s32.totalorder %s14, 0
    %p181 = por %p179, %p180
    %p182 = scmp.ne.s32.totalorder %s174, %s176
    %p183 = scmp.eq.s32.totalorder %s19, 1
    %p184 = por %p182, %p183
    %p185 = scmp.ne.s32.totalorder %s176, %s177
    %p186 = scmp.eq.s32.totalorder %s19, 0
    %p187 = por %p185, %p186
    %p188 = scmp.ne.s32.totalorder %s176, %s177
    %p189 = scmp.eq.s32.totalorder %s20, 1
    %p190 = por %p188, %p189
    %p192 = scmp.ne.s32.totalorder %s177, %s191
    %p193 = scmp.eq.s32.totalorder %s20, 0
    %p194 = por %p192, %p193
    %s195 = ssub.s32 %s14, %s21
    %p196 = scmp.eq.s32.totalorder %s195, 0
    %s198 = sadd.s32 %s197, 1
    %s199 = scalar_select %p196, %s197, %s198
    %p202 = pneg %p196
    %p203 = scmp.eq.s32.totalorder %s14, 1
    %p204 = por %p202, %p203
    %p205 = scmp.ne.s32.totalorder %s197, %s200
    %p206 = scmp.eq.s32.totalorder %s14, 0
    %p207 = por %p205, %p206
    %p208 = scmp.ne.s32.totalorder %s197, %s200
    %p209 = scmp.eq.s32.totalorder %s19, 1
    %p210 = por %p208, %p209
    %p211 = scmp.ne.s32.totalorder %s200, %s201
    %p212 = scmp.eq.s32.totalorder %s19, 0
    %p213 = por %p211, %p212
    %p214 = scmp.ne.s32.totalorder %s200, %s201
    %p215 = scmp.eq.s32.totalorder %s20, 1
    %p216 = por %p214, %p215
    %p218 = scmp.ne.s32.totalorder %s201, %s217
    %p219 = scmp.eq.s32.totalorder %s20, 0
    %p220 = por %p218, %p219
    %p221 = scmp.le.s32.totalorder 1, %s14
    %p222 = scmp.lt.s32.totalorder %s14, 3
    %p223 = pnand %p221, %p222
    %p224 = pneg %p223
    // Predicated region
    $region9: #{tpu_custom_call.1} parent=5 // pred_check
      _
    $region10: #{tpu_custom_call.1} parent=5 // pred_check_branch
      %226 = sbr.rel (%p223) target = $region12
    $region11: #{tpu_custom_call.1} parent=5 // pred_region
      %s227 = ssub.s32 %s14, 1
      // Predicated region
      $region13: #{tpu_custom_call.1} parent=11 // pred_check
        %p228 = pneg %p61
      $region14: #{tpu_custom_call.1} parent=11 // pred_check_branch
        %230 = sbr.rel (%p228) target = $region16
      $region15: #{tpu_custom_call.1} parent=11 // pred_region
        _
      $region16: #{tpu_custom_call.1} parent=11 // pred_fallthru
        _
      // Predicated region
      $region17: #{tpu_custom_call.1} parent=11 // pred_check
        %p231 = pneg %p82
      $region18: #{tpu_custom_call.1} parent=11 // pred_check_branch
        %233 = sbr.rel (%p231) target = $region20
      $region19: #{tpu_custom_call.1} parent=11 // pred_region
        _
      $region20: #{tpu_custom_call.1} parent=11 // pred_fallthru
        _
      // Predicated region
      $region21: #{tpu_custom_call.1} parent=11 // pred_check
        %p234 = pneg %p103
      $region22: #{tpu_custom_call.1} parent=11 // pred_check_branch
        %236 = sbr.rel (%p234) target = $region24
      $region23: #{tpu_custom_call.1} parent=11 // pred_region
        _
      $region24: #{tpu_custom_call.1} parent=11 // pred_fallthru
        _
      // Predicated region
      $region25: #{tpu_custom_call.1} parent=11 // pred_check
        %p237 = pneg %p124
      $region26: #{tpu_custom_call.1} parent=11 // pred_check_branch
        %239 = sbr.rel (%p237) target = $region28
      $region27: #{tpu_custom_call.1} parent=11 // pred_region
        _
      $region28: #{tpu_custom_call.1} parent=11 // pred_fallthru
        _
      // Predicated region
      $region29: #{tpu_custom_call.1} parent=11 // pred_check
        %p240 = pneg %p145
      $region30: #{tpu_custom_call.1} parent=11 // pred_check_branch
        %242 = sbr.rel (%p240) target = $region32
      $region31: #{tpu_custom_call.1} parent=11 // pred_region
        _
      $region32: #{tpu_custom_call.1} parent=11 // pred_fallthru
        _
      // Predicated region
      $region33: #{tpu_custom_call.1} parent=11 // pred_check
        %p243 = pneg %p166
      $region34: #{tpu_custom_call.1} parent=11 // pred_check_branch
        %245 = sbr.rel (%p243) target = $region36
      $region35: #{tpu_custom_call.1} parent=11 // pred_region
        _
      $region36: #{tpu_custom_call.1} parent=11 // pred_fallthru
        _
      // Predicated region
      $region37: #{tpu_custom_call.1} parent=11 // pred_check
        %p246 = pneg %p187
      $region38: #{tpu_custom_call.1} parent=11 // pred_check_branch
        %248 = sbr.rel (%p246) target = $region40
      $region39: #{tpu_custom_call.1} parent=11 // pred_region
        _
      $region40: #{tpu_custom_call.1} parent=11 // pred_fallthru
        _
    $region12: #{tpu_custom_call.1} parent=5 // pred_fallthru
      _
    %p249 = scmp.lt.s32.totalorder %s14, 2
    // Predicated region
    $region41: #{tpu_custom_call.1} parent=5 // pred_check
      %p250 = pneg %p249
    $region42: #{tpu_custom_call.1} parent=5 // pred_check_branch
      %252 = sbr.rel (%p250) target = $region44
    $region43: #{tpu_custom_call.1} parent=5 // pred_region
      // Predicated region
      $region45: #{tpu_custom_call.1} parent=43 // pred_check
        %p253 = pneg %p34
      $region46: #{tpu_custom_call.1} parent=43 // pred_check_branch
        %255 = sbr.rel (%p253) target = $region48
      $region47: #{tpu_custom_call.1} parent=43 // pred_region
        %p256 = scmp.lt.s32.totalorder %s14, 1
        %s257 = scalar_select %p256, %s14, 1
        %s258 = smul.addr %s257, 32
        %s259 = smul.addr %s258, 4
        %s260 = scalar_lea.vmem %s0, %s259
      $region48: #{tpu_custom_call.1} parent=43 // pred_fallthru
        _
    $region44: #{tpu_custom_call.1} parent=5 // pred_fallthru
      _
    %p261 = scmp.le.s32.totalorder 1, %s14
    %p262 = scmp.lt.s32.totalorder %s14, 3
    %p263 = pnand %p261, %p262
    %p264 = pneg %p263
    // Predicated region
    $region49: #{tpu_custom_call.1} parent=5 // pred_check
      _
    $region50: #{tpu_custom_call.1} parent=5 // pred_check_branch
      %266 = sbr.rel (%p263) target = $region52
    $region51: #{tpu_custom_call.1} parent=5 // pred_region
      %s267 = ssub.s32 %s14, 1
      %p268 = scmp.lt.s32.totalorder %s19, 1
      %s269 = scalar_select %p268, %s19, 1
      %s270 = smul.addr %s269, 32
      %s271 = smul.addr %s270, 4
      %s272 = scalar_lea.vmem %s0, %s271
      %p273 = pneg %p40
      %p274 = pneg %p37
      %p275 = pneg %p61
      %p276 = pneg %p58
      %p277 = pneg %p82
      %p278 = pneg %p79
      %p279 = pneg %p103
      %p280 = pneg %p100
      %p281 = pneg %p124
      %p282 = pneg %p121
      %p283 = pneg %p145
      %p284 = pneg %p142
      %p285 = pneg %p166
      %p286 = pneg %p163
      %p287 = pneg %p187
      %p288 = pneg %p184
      %p289 = pneg %p213
      %p290 = pneg %p210
      %p291 = scmp.lt.s32.totalorder %s19, 1
      %s292 = scalar_select %p291, %s19, 1
      %s293 = smul.addr %s292, 32
      %s294 = smul.addr %s293, 4
      %s295 = scalar_lea.vmem %s8, %s294
      %p296 = scmp.lt.s32.totalorder %s19, 1
      %s297 = scalar_select %p296, %s19, 1
      %s298 = smul.addr %s297, 32
      %s299 = smul.addr %s298, 4
      %s300 = scalar_lea.vmem %s0, %s299
      %p301 = scmp.lt.s32.totalorder %s19, 1
      %s302 = scalar_select %p301, %s19, 1
      %s303 = smul.addr %s302, 32
      %s304 = smul.addr %s303, 4
      %s305 = scalar_lea.vmem %s8, %s304
      %vm307 = vcmask 879616
      %308 = vst.msk [vmem:[#allocation2] sm:$0xf] %vm307, 0
      %309 = vst.msk [vmem:[#allocation2 + $0x4] sm:$0xf] %vm307, 0
      %310 = vst.msk [vmem:[#allocation2 + $0x88] sm:$0xf] %vm307, 0
      %311 = vst.msk [vmem:[#allocation2 + $0x8c] sm:$0xf] %vm307, 0
      %v312 = vld [vmem:[%s300] sm:$0xf]
      %v313 = vld [vmem:[%s300 + $0x4] sm:$0xf]
      %v314 = vld [vmem:[%s300 + $0x8] sm:$0xf]
      %v315 = vld [vmem:[%s300 + $0xc] sm:$0xf]
      %v316 = vld [vmem:[%s300 + $0x10] sm:$0xf]
      %v317 = vld [vmem:[%s300 + $0x14] sm:$0xf]
      %v318 = vld [vmem:[%s300 + $0x18] sm:$0xf]
      %v319 = vld [vmem:[%s300 + $0x1c] sm:$0xf]
      %v320 = vld [vmem:[%s300 + $0x20] sm:$0xf]
      %v321 = vld [vmem:[%s300 + $0x24] sm:$0xf]
      %v322 = vld [vmem:[%s300 + $0x28] sm:$0xf]
      %v323 = vld [vmem:[%s300 + $0x2c] sm:$0xf]
      %v324 = vld [vmem:[%s300 + $0x30] sm:$0xf]
      %v325 = vld [vmem:[%s300 + $0x34] sm:$0xf]
      %v326 = vld [vmem:[%s300 + $0x38] sm:$0xf]
      %v327 = vld [vmem:[%s300 + $0x3c] sm:$0xf]
      %v328 = vld [vmem:[%s300 + $0x40] sm:$0xf]
      %v329 = vld [vmem:[%s300 + $0x44] sm:$0xf]
      %v330 = vld [vmem:[%s300 + $0x48] sm:$0xf]
      %v331 = vld [vmem:[%s300 + $0x4c] sm:$0xf]
      %v332 = vld [vmem:[%s300 + $0x50] sm:$0xf]
      %v333 = vld [vmem:[%s300 + $0x54] sm:$0xf]
      %v334 = vld [vmem:[%s300 + $0x58] sm:$0xf]
      %v335 = vld [vmem:[%s300 + $0x5c] sm:$0xf]
      %v336 = vld [vmem:[%s300 + $0x60] sm:$0xf]
      %v337 = vld [vmem:[%s300 + $0x64] sm:$0xf]
      %v338 = vld [vmem:[%s300 + $0x68] sm:$0xf]
      %v339 = vld [vmem:[%s300 + $0x6c] sm:$0xf]
      %v340 = vld [vmem:[%s300 + $0x70] sm:$0xf]
      %v341 = vld [vmem:[%s300 + $0x74] sm:$0xf]
      %v342 = vld [vmem:[%s300 + $0x78] sm:$0xf]
      %v343 = vld [vmem:[%s300 + $0x7c] sm:$0xf]
      %v344 = vld [vmem:[%s2] sm:$0xf]
      %v377 = vunpack.c.l.b16 %v312
      %v378 = vunpack.c.l.b16 %v313
      %v379 = vunpack.c.l.b16 %v314
      %v380 = vunpack.c.l.b16 %v315
      %v381 = vunpack.c.l.b16 %v316
      %v382 = vunpack.c.l.b16 %v317
      %v383 = vunpack.c.l.b16 %v318
      %v384 = vunpack.c.l.b16 %v319
      %v385 = vunpack.c.l.b16 %v320
      %v386 = vunpack.c.l.b16 %v321
      %v387 = vunpack.c.l.b16 %v322
      %v388 = vunpack.c.l.b16 %v323
      %v389 = vunpack.c.l.b16 %v324
      %v390 = vunpack.c.l.b16 %v325
      %v391 = vunpack.c.l.b16 %v326
      %v392 = vunpack.c.l.b16 %v327
      %v393 = vunpack.c.l.b16 %v328
      %v394 = vunpack.c.l.b16 %v329
      %v395 = vunpack.c.l.b16 %v330
      %v396 = vunpack.c.l.b16 %v331
      %v397 = vunpack.c.l.b16 %v332
      %v398 = vunpack.c.l.b16 %v333
      %v399 = vunpack.c.l.b16 %v334
      %v400 = vunpack.c.l.b16 %v335
      %v401 = vunpack.c.l.b16 %v336
      %v402 = vunpack.c.l.b16 %v337
      %v403 = vunpack.c.l.b16 %v338
      %v404 = vunpack.c.l.b16 %v339
      %v405 = vunpack.c.l.b16 %v340
      %v406 = vunpack.c.l.b16 %v341
      %v407 = vunpack.c.l.b16 %v342
      %v408 = vunpack.c.l.b16 %v343
      %v409 = vpack.c.b16 %v378, %v377
      %v410 = vpack.c.b16 %v380, %v379
      %v411 = vpack.c.b16 %v382, %v381
      %v412 = vpack.c.b16 %v384, %v383
      %v413 = vpack.c.b16 %v386, %v385
      %v414 = vpack.c.b16 %v388, %v387
      %v415 = vpack.c.b16 %v390, %v389
      %v416 = vpack.c.b16 %v392, %v391
      %v417 = vpack.c.b16 %v394, %v393
      %v418 = vpack.c.b16 %v396, %v395
      %v419 = vpack.c.b16 %v398, %v397
      %v420 = vpack.c.b16 %v400, %v399
      %v421 = vpack.c.b16 %v402, %v401
      %v422 = vpack.c.b16 %v404, %v403
      %v423 = vpack.c.b16 %v406, %v405
      %v424 = vpack.c.b16 %v408, %v407
      %vm425 = vcmask 64512
      %v427 = vsel %vm425, %v409, 0
      %v430 = vsel %vm425, %v410, 0
      %v433 = vsel %vm425, %v411, 0
      %v436 = vsel %vm425, %v412, 0
      %v439 = vsel %vm425, %v413, 0
      %v442 = vsel %vm425, %v414, 0
      %v445 = vsel %vm425, %v415, 0
      %v448 = vsel %vm425, %v416, 0
      %v451 = vsel %vm425, %v417, 0
      %v454 = vsel %vm425, %v418, 0
      %v457 = vsel %vm425, %v419, 0
      %v460 = vsel %vm425, %v420, 0
      %v463 = vsel %vm425, %v421, 0
      %v466 = vsel %vm425, %v422, 0
      %v469 = vsel %vm425, %v423, 0
      %v472 = vsel %vm425, %v424, 0
      %vm474 = vcmask 1043456
      %v476 = vsel %vm474, %v344, 0
      %478 = vmatpush.bf16.msra.mxu0 0
      %479 = vmatpush.bf16.msra.mxu0 0
      %480 = vmatpush.bf16.msra.mxu0 0
      %481 = vmatpush.bf16.msra.mxu0 0
      %482 = vmatpush.bf16.msra.mxu0 0
      %483 = vmatpush.bf16.msra.mxu0 0
      %484 = vmatpush.bf16.msra.mxu0 0
      %485 = vmatpush.bf16.msra.mxu0 %v476
      %486 = vmatmul.bf16.gmra.mxu0 %v427
      %v487 = vpop.f32.mrf.mxu0
      %v488 = vadd.f32 0.0, %v487
      %v489 = vpop.f32.mrf.mxu0
      %v490 = vadd.f32 0.0, %v489
      %491 = vmatmul.bf16.gmra.mxu0 %v430
      %v492 = vpop.f32.mrf.mxu0
      %v493 = vadd.f32 0.0, %v492
      %v494 = vpop.f32.mrf.mxu0
      %v495 = vadd.f32 0.0, %v494
      %496 = vmatmul.bf16.gmra.mxu0 %v433
      %v497 = vpop.f32.mrf.mxu0
      %v498 = vadd.f32 0.0, %v497
      %v499 = vpop.f32.mrf.mxu0
      %v500 = vadd.f32 0.0, %v499
      %501 = vmatmul.bf16.gmra.mxu0 %v436
      %v502 = vpop.f32.mrf.mxu0
      %v503 = vadd.f32 0.0, %v502
      %v504 = vpop.f32.mrf.mxu0
      %v505 = vadd.f32 0.0, %v504
      %506 = vmatmul.bf16.gmra.mxu0 %v439
      %v507 = vpop.f32.mrf.mxu0
      %v508 = vadd.f32 0.0, %v507
      %v509 = vpop.f32.mrf.mxu0
      %v510 = vadd.f32 0.0, %v509
      %511 = vmatmul.bf16.gmra.mxu0 %v442
      %v512 = vpop.f32.mrf.mxu0
      %v513 = vadd.f32 0.0, %v512
      %v514 = vpop.f32.mrf.mxu0
      %v515 = vadd.f32 0.0, %v514
      %516 = vmatmul.bf16.gmra.mxu0 %v445
      %v517 = vpop.f32.mrf.mxu0
      %v518 = vadd.f32 0.0, %v517
      %v519 = vpop.f32.mrf.mxu0
      %v520 = vadd.f32 0.0, %v519
      %521 = vmatmul.bf16.gmra.mxu0 %v448
      %v522 = vpop.f32.mrf.mxu0
      %v523 = vadd.f32 0.0, %v522
      %v524 = vpop.f32.mrf.mxu0
      %v525 = vadd.f32 0.0, %v524
      %526 = vmatmul.bf16.gmra.mxu0 %v451
      %v527 = vpop.f32.mrf.mxu0
      %v528 = vadd.f32 0.0, %v527
      %v529 = vpop.f32.mrf.mxu0
      %v530 = vadd.f32 0.0, %v529
      %531 = vmatmul.bf16.gmra.mxu0 %v454
      %v532 = vpop.f32.mrf.mxu0
      %v533 = vadd.f32 0.0, %v532
      %v534 = vpop.f32.mrf.mxu0
      %v535 = vadd.f32 0.0, %v534
      %536 = vmatmul.bf16.gmra.mxu0 %v457
      %v537 = vpop.f32.mrf.mxu0
      %v538 = vadd.f32 0.0, %v537
      %v539 = vpop.f32.mrf.mxu0
      %v540 = vadd.f32 0.0, %v539
      %541 = vmatmul.bf16.gmra.mxu0 %v460
      %v542 = vpop.f32.mrf.mxu0
      %v543 = vadd.f32 0.0, %v542
      %v544 = vpop.f32.mrf.mxu0
      %v545 = vadd.f32 0.0, %v544
      %546 = vmatmul.bf16.gmra.mxu0 %v463
      %v547 = vpop.f32.mrf.mxu0
      %v548 = vadd.f32 0.0, %v547
      %v549 = vpop.f32.mrf.mxu0
      %v550 = vadd.f32 0.0, %v549
      %551 = vmatmul.bf16.gmra.mxu0 %v466
      %v552 = vpop.f32.mrf.mxu0
      %v553 = vadd.f32 0.0, %v552
      %v554 = vpop.f32.mrf.mxu0
      %v555 = vadd.f32 0.0, %v554
      %556 = vmatmul.bf16.gmra.mxu0 %v469
      %v557 = vpop.f32.mrf.mxu0
      %v558 = vadd.f32 0.0, %v557
      %v559 = vpop.f32.mrf.mxu0
      %v560 = vadd.f32 0.0, %v559
      %561 = vmatmul.bf16.gmra.mxu0 %v472
      %v562 = vpop.f32.mrf.mxu0
      %v563 = vadd.f32 0.0, %v562
      %v564 = vpop.f32.mrf.mxu0
      %v565 = vadd.f32 0.0, %v564
      %566 = vdwg.mxu0
      %v567 = vld [vmem:[%s1] sm:$0xff]
      %v568 = vld [vmem:[%s1 + $0x8] sm:$0xff]
      %v569 = vld [vmem:[%s1 + $0x10] sm:$0xff]
      %v570 = vld [vmem:[%s1 + $0x18] sm:$0xff]
      %v571 = vld [vmem:[%s1 + $0x20] sm:$0xff]
      %v572 = vld [vmem:[%s1 + $0x28] sm:$0xff]
      %v573 = vld [vmem:[%s1 + $0x30] sm:$0xff]
      %v574 = vld [vmem:[%s1 + $0x38] sm:$0xff]
      %v575 = vld [vmem:[%s1 + $0x40] sm:$0xff]
      %v576 = vld [vmem:[%s1 + $0x48] sm:$0xff]
      %v577 = vld [vmem:[%s1 + $0x50] sm:$0xff]
      %v578 = vld [vmem:[%s1 + $0x58] sm:$0xff]
      %v579 = vld [vmem:[%s1 + $0x60] sm:$0xff]
      %v580 = vld [vmem:[%s1 + $0x68] sm:$0xff]
      %v581 = vld [vmem:[%s1 + $0x70] sm:$0xff]
      %v582 = vld [vmem:[%s1 + $0x78] sm:$0xff]
      %v583 = vld [vmem:[%s1 + $0x80] sm:$0xff]
      %v584 = vld [vmem:[%s1 + $0x88] sm:$0xff]
      %v585 = vld [vmem:[%s1 + $0x90] sm:$0xff]
      %v586 = vld [vmem:[%s1 + $0x98] sm:$0xff]
      %v587 = vld [vmem:[%s1 + $0xa0] sm:$0xff]
      %v588 = vld [vmem:[%s1 + $0xa8] sm:$0xff]
      %v589 = vld [vmem:[%s1 + $0xb0] sm:$0xff]
      %v590 = vld [vmem:[%s1 + $0xb8] sm:$0xff]
      %v591 = vld [vmem:[%s1 + $0xc0] sm:$0xff]
      %v592 = vld [vmem:[%s1 + $0xc8] sm:$0xff]
      %v593 = vld [vmem:[%s1 + $0xd0] sm:$0xff]
      %v594 = vld [vmem:[%s1 + $0xd8] sm:$0xff]
      %v595 = vld [vmem:[%s1 + $0xe0] sm:$0xff]
      %v596 = vld [vmem:[%s1 + $0xe8] sm:$0xff]
      %v597 = vld [vmem:[%s1 + $0xf0] sm:$0xff]
      %v598 = vld [vmem:[%s1 + $0xf8] sm:$0xff]
      %vm631 = vcmask 1040384
      %v632 = vrot.slane %v488, 7
      %v633 = vrot.slane %v490, 7
      %v634 = vsel %vm631, %v632, %v633
      %v635 = vrot.slane %v493, 7
      %v636 = vsel %vm631, %v633, %v635
      %v637 = vrot.slane %v495, 7
      %v638 = vsel %vm631, %v635, %v637
      %v639 = vrot.slane %v498, 7
      %v640 = vsel %vm631, %v637, %v639
      %v641 = vrot.slane %v500, 7
      %v642 = vsel %vm631, %v639, %v641
      %v643 = vrot.slane %v503, 7
      %v644 = vsel %vm631, %v641, %v643
      %v645 = vrot.slane %v505, 7
      %v646 = vsel %vm631, %v643, %v645
      %v647 = vrot.slane %v508, 7
      %v648 = vsel %vm631, %v645, %v647
      %v649 = vrot.slane %v510, 7
      %v650 = vsel %vm631, %v647, %v649
      %v651 = vrot.slane %v513, 7
      %v652 = vsel %vm631, %v649, %v651
      %v653 = vrot.slane %v515, 7
      %v654 = vsel %vm631, %v651, %v653
      %v655 = vrot.slane %v518, 7
      %v656 = vsel %vm631, %v653, %v655
      %v657 = vrot.slane %v520, 7
      %v658 = vsel %vm631, %v655, %v657
      %v659 = vrot.slane %v523, 7
      %v660 = vsel %vm631, %v657, %v659
      %v661 = vrot.slane %v525, 7
      %v662 = vsel %vm631, %v659, %v661
      %v663 = vrot.slane %v528, 7
      %v664 = vsel %vm631, %v661, %v663
      %v665 = vrot.slane %v530, 7
      %v666 = vsel %vm631, %v663, %v665
      %v667 = vrot.slane %v533, 7
      %v668 = vsel %vm631, %v665, %v667
      %v669 = vrot.slane %v535, 7
      %v670 = vsel %vm631, %v667, %v669
      %v671 = vrot.slane %v538, 7
      %v672 = vsel %vm631, %v669, %v671
      %v673 = vrot.slane %v540, 7
      %v674 = vsel %vm631, %v671, %v673
      %v675 = vrot.slane %v543, 7
      %v676 = vsel %vm631, %v673, %v675
      %v677 = vrot.slane %v545, 7
      %v678 = vsel %vm631, %v675, %v677
      %v679 = vrot.slane %v548, 7
      %v680 = vsel %vm631, %v677, %v679
      %v681 = vrot.slane %v550, 7
      %v682 = vsel %vm631, %v679, %v681
      %v683 = vrot.slane %v553, 7
      %v684 = vsel %vm631, %v681, %v683
      %v685 = vrot.slane %v555, 7
      %v686 = vsel %vm631, %v683, %v685
      %v687 = vrot.slane %v558, 7
      %v688 = vsel %vm631, %v685, %v687
      %v689 = vrot.slane %v560, 7
      %v690 = vsel %vm631, %v687, %v689
      %v691 = vrot.slane %v563, 7
      %v692 = vsel %vm631, %v689, %v691
      %v693 = vrot.slane %v565, 7
      %v694 = vsel %vm631, %v691, %v693
      %v727 = vsel %vm631, 0.0, %v632
      %729 = vset.pattern.permute.xlu0 0
      %730 = vperm.xlu0 %729, %v567
      %v731 = vpop.permute.xlu0 %730
      %734 = vset.pattern.permute.xlu0 0
      %735 = vperm.xlu0 %734, %v568
      %v736 = vpop.permute.xlu0 %735
      %739 = vset.pattern.permute.xlu0 0
      %740 = vperm.xlu0 %739, %v569
      %v741 = vpop.permute.xlu0 %740
      %744 = vset.pattern.permute.xlu0 0
      %745 = vperm.xlu0 %744, %v570
      %v746 = vpop.permute.xlu0 %745
      %749 = vset.pattern.permute.xlu0 0
      %750 = vperm.xlu0 %749, %v571
      %v751 = vpop.permute.xlu0 %750
      %754 = vset.pattern.permute.xlu0 0
      %755 = vperm.xlu0 %754, %v572
      %v756 = vpop.permute.xlu0 %755
      %759 = vset.pattern.permute.xlu0 0
      %760 = vperm.xlu0 %759, %v573
      %v761 = vpop.permute.xlu0 %760
      %764 = vset.pattern.permute.xlu0 0
      %765 = vperm.xlu0 %764, %v574
      %v766 = vpop.permute.xlu0 %765
      %769 = vset.pattern.permute.xlu0 0
      %770 = vperm.xlu0 %769, %v575
      %v771 = vpop.permute.xlu0 %770
      %774 = vset.pattern.permute.xlu0 0
      %775 = vperm.xlu0 %774, %v576
      %v776 = vpop.permute.xlu0 %775
      %779 = vset.pattern.permute.xlu0 0
      %780 = vperm.xlu0 %779, %v577
      %v781 = vpop.permute.xlu0 %780
      %784 = vset.pattern.permute.xlu0 0
      %785 = vperm.xlu0 %784, %v578
      %v786 = vpop.permute.xlu0 %785
      %789 = vset.pattern.permute.xlu0 0
      %790 = vperm.xlu0 %789, %v579
      %v791 = vpop.permute.xlu0 %790
      %794 = vset.pattern.permute.xlu0 0
      %795 = vperm.xlu0 %794, %v580
      %v796 = vpop.permute.xlu0 %795
      %799 = vset.pattern.permute.xlu0 0
      %800 = vperm.xlu0 %799, %v581
      %v801 = vpop.permute.xlu0 %800
      %804 = vset.pattern.permute.xlu0 0
      %805 = vperm.xlu0 %804, %v582
      %v806 = vpop.permute.xlu0 %805
      %809 = vset.pattern.permute.xlu0 0
      %810 = vperm.xlu0 %809, %v583
      %v811 = vpop.permute.xlu0 %810
      %814 = vset.pattern.permute.xlu0 0
      %815 = vperm.xlu0 %814, %v584
      %v816 = vpop.permute.xlu0 %815
      %819 = vset.pattern.permute.xlu0 0
      %820 = vperm.xlu0 %819, %v585
      %v821 = vpop.permute.xlu0 %820
      %824 = vset.pattern.permute.xlu0 0
      %825 = vperm.xlu0 %824, %v586
      %v826 = vpop.permute.xlu0 %825
      %829 = vset.pattern.permute.xlu0 0
      %830 = vperm.xlu0 %829, %v587
      %v831 = vpop.permute.xlu0 %830
      %834 = vset.pattern.permute.xlu0 0
      %835 = vperm.xlu0 %834, %v588
      %v836 = vpop.permute.xlu0 %835
      %839 = vset.pattern.permute.xlu0 0
      %840 = vperm.xlu0 %839, %v589
      %v841 = vpop.permute.xlu0 %840
      %844 = vset.pattern.permute.xlu0 0
      %845 = vperm.xlu0 %844, %v590
      %v846 = vpop.permute.xlu0 %845
      %849 = vset.pattern.permute.xlu0 0
      %850 = vperm.xlu0 %849, %v591
      %v851 = vpop.permute.xlu0 %850
      %854 = vset.pattern.permute.xlu0 0
      %855 = vperm.xlu0 %854, %v592
      %v856 = vpop.permute.xlu0 %855
      %859 = vset.pattern.permute.xlu0 0
      %860 = vperm.xlu0 %859, %v593
      %v861 = vpop.permute.xlu0 %860
      %864 = vset.pattern.permute.xlu0 0
      %865 = vperm.xlu0 %864, %v594
      %v866 = vpop.permute.xlu0 %865
      %869 = vset.pattern.permute.xlu0 0
      %870 = vperm.xlu0 %869, %v595
      %v871 = vpop.permute.xlu0 %870
      %874 = vset.pattern.permute.xlu0 0
      %875 = vperm.xlu0 %874, %v596
      %v876 = vpop.permute.xlu0 %875
      %879 = vset.pattern.permute.xlu0 0
      %880 = vperm.xlu0 %879, %v597
      %v881 = vpop.permute.xlu0 %880
      %884 = vset.pattern.permute.xlu0 0
      %885 = vperm.xlu0 %884, %v598
      %v886 = vpop.permute.xlu0 %885
      %v888 = vmul.f32 %v727, %v731
      %v889 = vmul.f32 %v634, %v736
      %v890 = vmul.f32 %v636, %v741
      %v891 = vmul.f32 %v638, %v746
      %v892 = vmul.f32 %v640, %v751
      %v893 = vmul.f32 %v642, %v756
      %v894 = vmul.f32 %v644, %v761
      %v895 = vmul.f32 %v646, %v766
      %v896 = vmul.f32 %v648, %v771
      %v897 = vmul.f32 %v650, %v776
      %v898 = vmul.f32 %v652, %v781
      %v899 = vmul.f32 %v654, %v786
      %v900 = vmul.f32 %v656, %v791
      %v901 = vmul.f32 %v658, %v796
      %v902 = vmul.f32 %v660, %v801
      %v903 = vmul.f32 %v662, %v806
      %v904 = vmul.f32 %v664, %v811
      %v905 = vmul.f32 %v666, %v816
      %v906 = vmul.f32 %v668, %v821
      %v907 = vmul.f32 %v670, %v826
      %v908 = vmul.f32 %v672, %v831
      %v909 = vmul.f32 %v674, %v836
      %v910 = vmul.f32 %v676, %v841
      %v911 = vmul.f32 %v678, %v846
      %v912 = vmul.f32 %v680, %v851
      %v913 = vmul.f32 %v682, %v856
      %v914 = vmul.f32 %v684, %v861
      %v915 = vmul.f32 %v686, %v866
      %v916 = vmul.f32 %v688, %v871
      %v917 = vmul.f32 %v690, %v876
      %v918 = vmul.f32 %v692, %v881
      %v919 = vmul.f32 %v694, %v886
      %vm920 = vcmask 1046528
      %v921 = vrot.slane %v488, 1
      %v922 = vrot.slane %v490, 1
      %v923 = vsel %vm920, %v921, %v922
      %v924 = vrot.slane %v493, 1
      %v925 = vsel %vm920, %v922, %v924
      %v926 = vrot.slane %v495, 1
      %v927 = vsel %vm920, %v924, %v926
      %v928 = vrot.slane %v498, 1
      %v929 = vsel %vm920, %v926, %v928
      %v930 = vrot.slane %v500, 1
      %v931 = vsel %vm920, %v928, %v930
      %v932 = vrot.slane %v503, 1
      %v933 = vsel %vm920, %v930, %v932
      %v934 = vrot.slane %v505, 1
      %v935 = vsel %vm920, %v932, %v934
      %v936 = vrot.slane %v508, 1
      %v937 = vsel %vm920, %v934, %v936
      %v938 = vrot.slane %v510, 1
      %v939 = vsel %vm920, %v936, %v938
      %v940 = vrot.slane %v513, 1
      %v941 = vsel %vm920, %v938, %v940
      %v942 = vrot.slane %v515, 1
      %v943 = vsel %vm920, %v940, %v942
      %v944 = vrot.slane %v518, 1
      %v945 = vsel %vm920, %v942, %v944
      %v946 = vrot.slane %v520, 1
      %v947 = vsel %vm920, %v944, %v946
      %v948 = vrot.slane %v523, 1
      %v949 = vsel %vm920, %v946, %v948
      %v950 = vrot.slane %v525, 1
      %v951 = vsel %vm920, %v948, %v950
      %v952 = vrot.slane %v528, 1
      %v953 = vsel %vm920, %v950, %v952
      %v954 = vrot.slane %v530, 1
      %v955 = vsel %vm920, %v952, %v954
      %v956 = vrot.slane %v533, 1
      %v957 = vsel %vm920, %v954, %v956
      %v958 = vrot.slane %v535, 1
      %v959 = vsel %vm920, %v956, %v958
      %v960 = vrot.slane %v538, 1
      %v961 = vsel %vm920, %v958, %v960
      %v962 = vrot.slane %v540, 1
      %v963 = vsel %vm920, %v960, %v962
      %v964 = vrot.slane %v543, 1
      %v965 = vsel %vm920, %v962, %v964
      %v966 = vrot.slane %v545, 1
      %v967 = vsel %vm920, %v964, %v966
      %v968 = vrot.slane %v548, 1
      %v969 = vsel %vm920, %v966, %v968
      %v970 = vrot.slane %v550, 1
      %v971 = vsel %vm920, %v968, %v970
      %v972 = vrot.slane %v553, 1
      %v973 = vsel %vm920, %v970, %v972
      %v974 = vrot.slane %v555, 1
      %v975 = vsel %vm920, %v972, %v974
      %v976 = vrot.slane %v558, 1
      %v977 = vsel %vm920, %v974, %v976
      %v978 = vrot.slane %v560, 1
      %v979 = vsel %vm920, %v976, %v978
      %v980 = vrot.slane %v563, 1
      %v981 = vsel %vm920, %v978, %v980
      %v982 = vrot.slane %v565, 1
      %v983 = vsel %vm920, %v980, %v982
      %v1016 = vsel %vm920, %v982, 0.0
      %1017 = vset.pattern.permute.xlu0 1
      %1018 = vperm.xlu0 %1017, %v567
      %v1019 = vpop.permute.xlu0 %1018
      %1021 = vset.pattern.permute.xlu0 1
      %1022 = vperm.xlu0 %1021, %v568
      %v1023 = vpop.permute.xlu0 %1022
      %1025 = vset.pattern.permute.xlu0 1
      %1026 = vperm.xlu0 %1025, %v569
      %v1027 = vpop.permute.xlu0 %1026
      %1029 = vset.pattern.permute.xlu0 1
      %1030 = vperm.xlu0 %1029, %v570
      %v1031 = vpop.permute.xlu0 %1030
      %1033 = vset.pattern.permute.xlu0 1
      %1034 = vperm.xlu0 %1033, %v571
      %v1035 = vpop.permute.xlu0 %1034
      %1037 = vset.pattern.permute.xlu0 1
      %1038 = vperm.xlu0 %1037, %v572
      %v1039 = vpop.permute.xlu0 %1038
      %1041 = vset.pattern.permute.xlu0 1
      %1042 = vperm.xlu0 %1041, %v573
      %v1043 = vpop.permute.xlu0 %1042
      %1045 = vset.pattern.permute.xlu0 1
      %1046 = vperm.xlu0 %1045, %v574
      %v1047 = vpop.permute.xlu0 %1046
      %1049 = vset.pattern.permute.xlu0 1
      %1050 = vperm.xlu0 %1049, %v575
      %v1051 = vpop.permute.xlu0 %1050
      %1053 = vset.pattern.permute.xlu0 1
      %1054 = vperm.xlu0 %1053, %v576
      %v1055 = vpop.permute.xlu0 %1054
      %1057 = vset.pattern.permute.xlu0 1
      %1058 = vperm.xlu0 %1057, %v577
      %v1059 = vpop.permute.xlu0 %1058
      %1061 = vset.pattern.permute.xlu0 1
      %1062 = vperm.xlu0 %1061, %v578
      %v1063 = vpop.permute.xlu0 %1062
      %1065 = vset.pattern.permute.xlu0 1
      %1066 = vperm.xlu0 %1065, %v579
      %v1067 = vpop.permute.xlu0 %1066
      %1069 = vset.pattern.permute.xlu0 1
      %1070 = vperm.xlu0 %1069, %v580
      %v1071 = vpop.permute.xlu0 %1070
      %1073 = vset.pattern.permute.xlu0 1
      %1074 = vperm.xlu0 %1073, %v581
      %v1075 = vpop.permute.xlu0 %1074
      %1077 = vset.pattern.permute.xlu0 1
      %1078 = vperm.xlu0 %1077, %v582
      %v1079 = vpop.permute.xlu0 %1078
      %1081 = vset.pattern.permute.xlu0 1
      %1082 = vperm.xlu0 %1081, %v583
      %v1083 = vpop.permute.xlu0 %1082
      %1085 = vset.pattern.permute.xlu0 1
      %1086 = vperm.xlu0 %1085, %v584
      %v1087 = vpop.permute.xlu0 %1086
      %1089 = vset.pattern.permute.xlu0 1
      %1090 = vperm.xlu0 %1089, %v585
      %v1091 = vpop.permute.xlu0 %1090
      %1093 = vset.pattern.permute.xlu0 1
      %1094 = vperm.xlu0 %1093, %v586
      %v1095 = vpop.permute.xlu0 %1094
      %1097 = vset.pattern.permute.xlu0 1
      %1098 = vperm.xlu0 %1097, %v587
      %v1099 = vpop.permute.xlu0 %1098
      %1101 = vset.pattern.permute.xlu0 1
      %1102 = vperm.xlu0 %1101, %v588
      %v1103 = vpop.permute.xlu0 %1102
      %1105 = vset.pattern.permute.xlu0 1
      %1106 = vperm.xlu0 %1105, %v589
      %v1107 = vpop.permute.xlu0 %1106
      %1109 = vset.pattern.permute.xlu0 1
      %1110 = vperm.xlu0 %1109, %v590
      %v1111 = vpop.permute.xlu0 %1110
      %1113 = vset.pattern.permute.xlu0 1
      %1114 = vperm.xlu0 %1113, %v591
      %v1115 = vpop.permute.xlu0 %1114
      %1117 = vset.pattern.permute.xlu0 1
      %1118 = vperm.xlu0 %1117, %v592
      %v1119 = vpop.permute.xlu0 %1118
      %1121 = vset.pattern.permute.xlu0 1
      %1122 = vperm.xlu0 %1121, %v593
      %v1123 = vpop.permute.xlu0 %1122
      %1125 = vset.pattern.permute.xlu0 1
      %1126 = vperm.xlu0 %1125, %v594
      %v1127 = vpop.permute.xlu0 %1126
      %1129 = vset.pattern.permute.xlu0 1
      %1130 = vperm.xlu0 %1129, %v595
      %v1131 = vpop.permute.xlu0 %1130
      %1133 = vset.pattern.permute.xlu0 1
      %1134 = vperm.xlu0 %1133, %v596
      %v1135 = vpop.permute.xlu0 %1134
      %1137 = vset.pattern.permute.xlu0 1
      %1138 = vperm.xlu0 %1137, %v597
      %v1139 = vpop.permute.xlu0 %1138
      %1141 = vset.pattern.permute.xlu0 1
      %1142 = vperm.xlu0 %1141, %v598
      %v1143 = vpop.permute.xlu0 %1142
      %v1145 = vmul.f32 %v923, %v1019
      %v1146 = vmul.f32 %v925, %v1023
      %v1147 = vmul.f32 %v927, %v1027
      %v1148 = vmul.f32 %v929, %v1031
      %v1149 = vmul.f32 %v931, %v1035
      %v1150 = vmul.f32 %v933, %v1039
      %v1151 = vmul.f32 %v935, %v1043
      %v1152 = vmul.f32 %v937, %v1047
      %v1153 = vmul.f32 %v939, %v1051
      %v1154 = vmul.f32 %v941, %v1055
      %v1155 = vmul.f32 %v943, %v1059
      %v1156 = vmul.f32 %v945, %v1063
      %v1157 = vmul.f32 %v947, %v1067
      %v1158 = vmul.f32 %v949, %v1071
      %v1159 = vmul.f32 %v951, %v1075
      %v1160 = vmul.f32 %v953, %v1079
      %v1161 = vmul.f32 %v955, %v1083
      %v1162 = vmul.f32 %v957, %v1087
      %v1163 = vmul.f32 %v959, %v1091
      %v1164 = vmul.f32 %v961, %v1095
      %v1165 = vmul.f32 %v963, %v1099
      %v1166 = vmul.f32 %v965, %v1103
      %v1167 = vmul.f32 %v967, %v1107
      %v1168 = vmul.f32 %v969, %v1111
      %v1169 = vmul.f32 %v971, %v1115
      %v1170 = vmul.f32 %v973, %v1119
      %v1171 = vmul.f32 %v975, %v1123
      %v1172 = vmul.f32 %v977, %v1127
      %v1173 = vmul.f32 %v979, %v1131
      %v1174 = vmul.f32 %v981, %v1135
      %v1175 = vmul.f32 %v983, %v1139
      %v1176 = vmul.f32 %v1016, %v1143
      %1177 = vrot.lane.b32.xlu0 %v488, 36
      %v1178 = vpop.permute.xlu0 %1177
      %1179 = vrot.lane.b32.xlu0 %v490, 36
      %v1180 = vpop.permute.xlu0 %1179
      %1181 = vrot.lane.b32.xlu0 %v493, 36
      %v1182 = vpop.permute.xlu0 %1181
      %1183 = vrot.lane.b32.xlu0 %v495, 36
      %v1184 = vpop.permute.xlu0 %1183
      %1185 = vrot.lane.b32.xlu0 %v498, 36
      %v1186 = vpop.permute.xlu0 %1185
      %1187 = vrot.lane.b32.xlu0 %v500, 36
      %v1188 = vpop.permute.xlu0 %1187
      %1189 = vrot.lane.b32.xlu0 %v503, 36
      %v1190 = vpop.permute.xlu0 %1189
      %1191 = vrot.lane.b32.xlu0 %v505, 36
      %v1192 = vpop.permute.xlu0 %1191
      %1193 = vrot.lane.b32.xlu0 %v508, 36
      %v1194 = vpop.permute.xlu0 %1193
      %1195 = vrot.lane.b32.xlu0 %v510, 36
      %v1196 = vpop.permute.xlu0 %1195
      %1197 = vrot.lane.b32.xlu0 %v513, 36
      %v1198 = vpop.permute.xlu0 %1197
      %1199 = vrot.lane.b32.xlu0 %v515, 36
      %v1200 = vpop.permute.xlu0 %1199
      %1201 = vrot.lane.b32.xlu0 %v518, 36
      %v1202 = vpop.permute.xlu0 %1201
      %1203 = vrot.lane.b32.xlu0 %v520, 36
      %v1204 = vpop.permute.xlu0 %1203
      %1205 = vrot.lane.b32.xlu0 %v523, 36
      %v1206 = vpop.permute.xlu0 %1205
      %1207 = vrot.lane.b32.xlu0 %v525, 36
      %v1208 = vpop.permute.xlu0 %1207
      %1209 = vrot.lane.b32.xlu0 %v528, 36
      %v1210 = vpop.permute.xlu0 %1209
      %1211 = vrot.lane.b32.xlu0 %v530, 36
      %v1212 = vpop.permute.xlu0 %1211
      %1213 = vrot.lane.b32.xlu0 %v533, 36
      %v1214 = vpop.permute.xlu0 %1213
      %1215 = vrot.lane.b32.xlu0 %v535, 36
      %v1216 = vpop.permute.xlu0 %1215
      %1217 = vrot.lane.b32.xlu0 %v538, 36
      %v1218 = vpop.permute.xlu0 %1217
      %1219 = vrot.lane.b32.xlu0 %v540, 36
      %v1220 = vpop.permute.xlu0 %1219
      %1221 = vrot.lane.b32.xlu0 %v543, 36
      %v1222 = vpop.permute.xlu0 %1221
      %1223 = vrot.lane.b32.xlu0 %v545, 36
      %v1224 = vpop.permute.xlu0 %1223
      %1225 = vrot.lane.b32.xlu0 %v548, 36
      %v1226 = vpop.permute.xlu0 %1225
      %1227 = vrot.lane.b32.xlu0 %v550, 36
      %v1228 = vpop.permute.xlu0 %1227
      %1229 = vrot.lane.b32.xlu0 %v553, 36
      %v1230 = vpop.permute.xlu0 %1229
      %1231 = vrot.lane.b32.xlu0 %v555, 36
      %v1232 = vpop.permute.xlu0 %1231
      %1233 = vrot.lane.b32.xlu0 %v558, 36
      %v1234 = vpop.permute.xlu0 %1233
      %1235 = vrot.lane.b32.xlu0 %v560, 36
      %v1236 = vpop.permute.xlu0 %1235
      %1237 = vrot.lane.b32.xlu0 %v563, 36
      %v1238 = vpop.permute.xlu0 %1237
      %1239 = vrot.lane.b32.xlu0 %v565, 36
      %v1240 = vpop.permute.xlu0 %1239
      %1305 = vrot.lane.b32.xlu0 %v1145, 72
      %v1306 = vpop.permute.xlu0 %1305
      %1307 = vrot.lane.b32.xlu0 %v1146, 72
      %v1308 = vpop.permute.xlu0 %1307
      %1309 = vrot.lane.b32.xlu0 %v1147, 72
      %v1310 = vpop.permute.xlu0 %1309
      %1311 = vrot.lane.b32.xlu0 %v1148, 72
      %v1312 = vpop.permute.xlu0 %1311
      %1313 = vrot.lane.b32.xlu0 %v1149, 72
      %v1314 = vpop.permute.xlu0 %1313
      %1315 = vrot.lane.b32.xlu0 %v1150, 72
      %v1316 = vpop.permute.xlu0 %1315
      %1317 = vrot.lane.b32.xlu0 %v1151, 72
      %v1318 = vpop.permute.xlu0 %1317
      %1319 = vrot.lane.b32.xlu0 %v1152, 72
      %v1320 = vpop.permute.xlu0 %1319
      %1321 = vrot.lane.b32.xlu0 %v1153, 72
      %v1322 = vpop.permute.xlu0 %1321
      %1323 = vrot.lane.b32.xlu0 %v1154, 72
      %v1324 = vpop.permute.xlu0 %1323
      %1325 = vrot.lane.b32.xlu0 %v1155, 72
      %v1326 = vpop.permute.xlu0 %1325
      %1327 = vrot.lane.b32.xlu0 %v1156, 72
      %v1328 = vpop.permute.xlu0 %1327
      %1329 = vrot.lane.b32.xlu0 %v1157, 72
      %v1330 = vpop.permute.xlu0 %1329
      %1331 = vrot.lane.b32.xlu0 %v1158, 72
      %v1332 = vpop.permute.xlu0 %1331
      %1333 = vrot.lane.b32.xlu0 %v1159, 72
      %v1334 = vpop.permute.xlu0 %1333
      %1335 = vrot.lane.b32.xlu0 %v1160, 72
      %v1336 = vpop.permute.xlu0 %1335
      %1337 = vrot.lane.b32.xlu0 %v1161, 72
      %v1338 = vpop.permute.xlu0 %1337
      %1339 = vrot.lane.b32.xlu0 %v1162, 72
      %v1340 = vpop.permute.xlu0 %1339
      %1341 = vrot.lane.b32.xlu0 %v1163, 72
      %v1342 = vpop.permute.xlu0 %1341
      %1343 = vrot.lane.b32.xlu0 %v1164, 72
      %v1344 = vpop.permute.xlu0 %1343
      %1345 = vrot.lane.b32.xlu0 %v1165, 72
      %v1346 = vpop.permute.xlu0 %1345
      %1347 = vrot.lane.b32.xlu0 %v1166, 72
      %v1348 = vpop.permute.xlu0 %1347
      %1349 = vrot.lane.b32.xlu0 %v1167, 72
      %v1350 = vpop.permute.xlu0 %1349
      %1351 = vrot.lane.b32.xlu0 %v1168, 72
      %v1352 = vpop.permute.xlu0 %1351
      %1353 = vrot.lane.b32.xlu0 %v1169, 72
      %v1354 = vpop.permute.xlu0 %1353
      %1355 = vrot.lane.b32.xlu0 %v1170, 72
      %v1356 = vpop.permute.xlu0 %1355
      %1357 = vrot.lane.b32.xlu0 %v1171, 72
      %v1358 = vpop.permute.xlu0 %1357
      %1359 = vrot.lane.b32.xlu0 %v1172, 72
      %v1360 = vpop.permute.xlu0 %1359
      %1361 = vrot.lane.b32.xlu0 %v1173, 72
      %v1362 = vpop.permute.xlu0 %1361
      %1363 = vrot.lane.b32.xlu0 %v1174, 72
      %v1364 = vpop.permute.xlu0 %1363
      %1365 = vrot.lane.b32.xlu0 %v1175, 72
      %v1366 = vpop.permute.xlu0 %1365
      %1367 = vrot.lane.b32.xlu0 %v1176, 72
      %v1368 = vpop.permute.xlu0 %1367
      %vm1401 = vcmask 293888
      %v1402 = vsel %vm1401, %v888, %v1178
      %v1403 = vsel %vm1401, %v889, %v1180
      %v1404 = vsel %vm1401, %v890, %v1182
      %v1405 = vsel %vm1401, %v891, %v1184
      %v1406 = vsel %vm1401, %v892, %v1186
      %v1407 = vsel %vm1401, %v893, %v1188
      %v1408 = vsel %vm1401, %v894, %v1190
      %v1409 = vsel %vm1401, %v895, %v1192
      %v1410 = vsel %vm1401, %v896, %v1194
      %v1411 = vsel %vm1401, %v897, %v1196
      %v1412 = vsel %vm1401, %v898, %v1198
      %v1413 = vsel %vm1401, %v899, %v1200
      %v1414 = vsel %vm1401, %v900, %v1202
      %v1415 = vsel %vm1401, %v901, %v1204
      %v1416 = vsel %vm1401, %v902, %v1206
      %v1417 = vsel %vm1401, %v903, %v1208
      %v1418 = vsel %vm1401, %v904, %v1210
      %v1419 = vsel %vm1401, %v905, %v1212
      %v1420 = vsel %vm1401, %v906, %v1214
      %v1421 = vsel %vm1401, %v907, %v1216
      %v1422 = vsel %vm1401, %v908, %v1218
      %v1423 = vsel %vm1401, %v909, %v1220
      %v1424 = vsel %vm1401, %v910, %v1222
      %v1425 = vsel %vm1401, %v911, %v1224
      %v1426 = vsel %vm1401, %v912, %v1226
      %v1427 = vsel %vm1401, %v913, %v1228
      %v1428 = vsel %vm1401, %v914, %v1230
      %v1429 = vsel %vm1401, %v915, %v1232
      %v1430 = vsel %vm1401, %v916, %v1234
      %v1431 = vsel %vm1401, %v917, %v1236
      %v1432 = vsel %vm1401, %v918, %v1238
      %v1433 = vsel %vm1401, %v919, %v1240
      %vm1434 = vcmask 588800
      %v1435 = vsel %vm1434, %v1402, %v1306
      %v1436 = vsel %vm1434, %v1403, %v1308
      %v1437 = vsel %vm1434, %v1404, %v1310
      %v1438 = vsel %vm1434, %v1405, %v1312
      %v1439 = vsel %vm1434, %v1406, %v1314
      %v1440 = vsel %vm1434, %v1407, %v1316
      %v1441 = vsel %vm1434, %v1408, %v1318
      %v1442 = vsel %vm1434, %v1409, %v1320
      %v1443 = vsel %vm1434, %v1410, %v1322
      %v1444 = vsel %vm1434, %v1411, %v1324
      %v1445 = vsel %vm1434, %v1412, %v1326
      %v1446 = vsel %vm1434, %v1413, %v1328
      %v1447 = vsel %vm1434, %v1414, %v1330
      %v1448 = vsel %vm1434, %v1415, %v1332
      %v1449 = vsel %vm1434, %v1416, %v1334
      %v1450 = vsel %vm1434, %v1417, %v1336
      %v1451 = vsel %vm1434, %v1418, %v1338
      %v1452 = vsel %vm1434, %v1419, %v1340
      %v1453 = vsel %vm1434, %v1420, %v1342
      %v1454 = vsel %vm1434, %v1421, %v1344
      %v1455 = vsel %vm1434, %v1422, %v1346
      %v1456 = vsel %vm1434, %v1423, %v1348
      %v1457 = vsel %vm1434, %v1424, %v1350
      %v1458 = vsel %vm1434, %v1425, %v1352
      %v1459 = vsel %vm1434, %v1426, %v1354
      %v1460 = vsel %vm1434, %v1427, %v1356
      %v1461 = vsel %vm1434, %v1428, %v1358
      %v1462 = vsel %vm1434, %v1429, %v1360
      %v1463 = vsel %vm1434, %v1430, %v1362
      %v1464 = vsel %vm1434, %v1431, %v1364
      %v1465 = vsel %vm1434, %v1432, %v1366
      %v1466 = vsel %vm1434, %v1433, %v1368
      %v1467 = vpack.c.bf16 %v1435, %v1435
      %v1468 = vpack.c.bf16 %v1436, %v1436
      %v1469 = vpack.c.bf16 %v1437, %v1437
      %v1470 = vpack.c.bf16 %v1438, %v1438
      %v1471 = vpack.c.bf16 %v1439, %v1439
      %v1472 = vpack.c.bf16 %v1440, %v1440
      %v1473 = vpack.c.bf16 %v1441, %v1441
      %v1474 = vpack.c.bf16 %v1442, %v1442
      %v1475 = vpack.c.bf16 %v1443, %v1443
      %v1476 = vpack.c.bf16 %v1444, %v1444
      %v1477 = vpack.c.bf16 %v1445, %v1445
      %v1478 = vpack.c.bf16 %v1446, %v1446
      %v1479 = vpack.c.bf16 %v1447, %v1447
      %v1480 = vpack.c.bf16 %v1448, %v1448
      %v1481 = vpack.c.bf16 %v1449, %v1449
      %v1482 = vpack.c.bf16 %v1450, %v1450
      %v1483 = vpack.c.bf16 %v1451, %v1451
      %v1484 = vpack.c.bf16 %v1452, %v1452
      %v1485 = vpack.c.bf16 %v1453, %v1453
      %v1486 = vpack.c.bf16 %v1454, %v1454
      %v1487 = vpack.c.bf16 %v1455, %v1455
      %v1488 = vpack.c.bf16 %v1456, %v1456
      %v1489 = vpack.c.bf16 %v1457, %v1457
      %v1490 = vpack.c.bf16 %v1458, %v1458
      %v1491 = vpack.c.bf16 %v1459, %v1459
      %v1492 = vpack.c.bf16 %v1460, %v1460
      %v1493 = vpack.c.bf16 %v1461, %v1461
      %v1494 = vpack.c.bf16 %v1462, %v1462
      %v1495 = vpack.c.bf16 %v1463, %v1463
      %v1496 = vpack.c.bf16 %v1464, %v1464
      %v1497 = vpack.c.bf16 %v1465, %v1465
      %v1498 = vpack.c.bf16 %v1466, %v1466
      %1499 = vst.msk [vmem:[#allocation2 + $0x8] sm:$0xf] %vm307, %v1467
      %1500 = vst.msk [vmem:[#allocation2 + $0xc] sm:$0xf] %vm307, %v1468
      %1501 = vst.msk [vmem:[#allocation2 + $0x10] sm:$0xf] %vm307, %v1469
      %1502 = vst.msk [vmem:[#allocation2 + $0x14] sm:$0xf] %vm307, %v1470
      %1503 = vst.msk [vmem:[#allocation2 + $0x18] sm:$0xf] %vm307, %v1471
      %1504 = vst.msk [vmem:[#allocation2 + $0x1c] sm:$0xf] %vm307, %v1472
      %1505 = vst.msk [vmem:[#allocation2 + $0x20] sm:$0xf] %vm307, %v1473
      %1506 = vst.msk [vmem:[#allocation2 + $0x24] sm:$0xf] %vm307, %v1474
      %1507 = vst.msk [vmem:[#allocation2 + $0x28] sm:$0xf] %vm307, %v1475
      %1508 = vst.msk [vmem:[#allocation2 + $0x2c] sm:$0xf] %vm307, %v1476
      %1509 = vst.msk [vmem:[#allocation2 + $0x30] sm:$0xf] %vm307, %v1477
      %1510 = vst.msk [vmem:[#allocation2 + $0x34] sm:$0xf] %vm307, %v1478
      %1511 = vst.msk [vmem:[#allocation2 + $0x38] sm:$0xf] %vm307, %v1479
      %1512 = vst.msk [vmem:[#allocation2 + $0x3c] sm:$0xf] %vm307, %v1480
      %1513 = vst.msk [vmem:[#allocation2 + $0x40] sm:$0xf] %vm307, %v1481
      %1514 = vst.msk [vmem:[#allocation2 + $0x44] sm:$0xf] %vm307, %v1482
      %1515 = vst.msk [vmem:[#allocation2 + $0x48] sm:$0xf] %vm307, %v1483
      %1516 = vst.msk [vmem:[#allocation2 + $0x4c] sm:$0xf] %vm307, %v1484
      %1517 = vst.msk [vmem:[#allocation2 + $0x50] sm:$0xf] %vm307, %v1485
      %1518 = vst.msk [vmem:[#allocation2 + $0x54] sm:$0xf] %vm307, %v1486
      %1519 = vst.msk [vmem:[#allocation2 + $0x58] sm:$0xf] %vm307, %v1487
      %1520 = vst.msk [vmem:[#allocation2 + $0x5c] sm:$0xf] %vm307, %v1488
      %1521 = vst.msk [vmem:[#allocation2 + $0x60] sm:$0xf] %vm307, %v1489
      %1522 = vst.msk [vmem:[#allocation2 + $0x64] sm:$0xf] %vm307, %v1490
      %1523 = vst.msk [vmem:[#allocation2 + $0x68] sm:$0xf] %vm307, %v1491
      %1524 = vst.msk [vmem:[#allocation2 + $0x6c] sm:$0xf] %vm307, %v1492
      %1525 = vst.msk [vmem:[#allocation2 + $0x70] sm:$0xf] %vm307, %v1493
      %1526 = vst.msk [vmem:[#allocation2 + $0x74] sm:$0xf] %vm307, %v1494
      %1527 = vst.msk [vmem:[#allocation2 + $0x78] sm:$0xf] %vm307, %v1495
      %1528 = vst.msk [vmem:[#allocation2 + $0x7c] sm:$0xf] %vm307, %v1496
      %1529 = vst.msk [vmem:[#allocation2 + $0x80] sm:$0xf] %vm307, %v1497
      %1530 = vst.msk [vmem:[#allocation2 + $0x84] sm:$0xf] %vm307, %v1498
      %v1531 = vld [vmem:[#allocation2] sm:$0xf]
      %v1532 = vld [vmem:[#allocation2 + $0x4] sm:$0xf]
      %v1533 = vld [vmem:[#allocation2 + $0x8] sm:$0xf]
      %v1534 = vld [vmem:[#allocation2 + $0xc] sm:$0xf]
      %v1535 = vld [vmem:[#allocation2 + $0x10] sm:$0xf]
      %v1536 = vld [vmem:[#allocation2 + $0x14] sm:$0xf]
      %v1537 = vld [vmem:[#allocation2 + $0x18] sm:$0xf]
      %v1538 = vld [vmem:[#allocation2 + $0x1c] sm:$0xf]
      %v1539 = vld [vmem:[#allocation2 + $0x20] sm:$0xf]
      %v1540 = vld [vmem:[#allocation2 + $0x24] sm:$0xf]
      %v1541 = vld [vmem:[#allocation2 + $0x28] sm:$0xf]
      %v1542 = vld [vmem:[#allocation2 + $0x2c] sm:$0xf]
      %v1543 = vld [vmem:[#allocation2 + $0x30] sm:$0xf]
      %v1544 = vld [vmem:[#allocation2 + $0x34] sm:$0xf]
      %v1545 = vld [vmem:[#allocation2 + $0x38] sm:$0xf]
      %v1546 = vld [vmem:[#allocation2 + $0x3c] sm:$0xf]
      %v1547 = vld [vmem:[#allocation2 + $0x40] sm:$0xf]
      %v1548 = vld [vmem:[#allocation2 + $0x44] sm:$0xf]
      %v1549 = vld [vmem:[#allocation2 + $0x48] sm:$0xf]
      %v1550 = vld [vmem:[#allocation2 + $0x4c] sm:$0xf]
      %v1551 = vld [vmem:[#allocation2 + $0x50] sm:$0xf]
      %v1552 = vld [vmem:[#allocation2 + $0x54] sm:$0xf]
      %v1553 = vld [vmem:[#allocation2 + $0x58] sm:$0xf]
      %v1554 = vld [vmem:[#allocation2 + $0x5c] sm:$0xf]
      %v1555 = vld [vmem:[#allocation2 + $0x60] sm:$0xf]
      %v1556 = vld [vmem:[#allocation2 + $0x64] sm:$0xf]
      %v1557 = vld [vmem:[#allocation2 + $0x68] sm:$0xf]
      %v1558 = vld [vmem:[#allocation2 + $0x6c] sm:$0xf]
      %v1559 = vld [vmem:[#allocation2 + $0x70] sm:$0xf]
      %v1560 = vld [vmem:[#allocation2 + $0x74] sm:$0xf]
      %v1561 = vld [vmem:[#allocation2 + $0x78] sm:$0xf]
      %v1562 = vld [vmem:[#allocation2 + $0x7c] sm:$0xf]
      %v1563 = vld [vmem:[%s3] sm:$0xf]
      %v1564 = vld [vmem:[%s3 + $0x4] sm:$0xf]
      %v1565 = vld [vmem:[%s3 + $0x8] sm:$0xf]
      %v1566 = vld [vmem:[%s3 + $0xc] sm:$0xf]
      %v1567 = vld [vmem:[%s3 + $0x10] sm:$0xf]
      %v1568 = vld [vmem:[%s3 + $0x14] sm:$0xf]
      %v1569 = vld [vmem:[%s3 + $0x18] sm:$0xf]
      %v1570 = vld [vmem:[%s3 + $0x1c] sm:$0xf]
      %v1571 = vld [vmem:[%s3 + $0x20] sm:$0xf]
      %v1572 = vld [vmem:[%s3 + $0x24] sm:$0xf]
      %v1573 = vld [vmem:[%s3 + $0x28] sm:$0xf]
      %v1574 = vld [vmem:[%s3 + $0x2c] sm:$0xf]
      %v1575 = vld [vmem:[%s3 + $0x30] sm:$0xf]
      %v1576 = vld [vmem:[%s3 + $0x34] sm:$0x3]
      %v1577 = vld [vmem:[#allocation2 + $0x80] sm:$0xf]
      %v1578 = vld [vmem:[#allocation2 + $0x84] sm:$0xf]
      %s1579 = scalar_lea.vmem %s3, 56
      %v1580 = vld [vmem:[%s1579] sm:$0xf]
      %v1581 = vld [vmem:[%s1579 + $0x4] sm:$0xf]
      %v1582 = vld [vmem:[%s1579 + $0x8] sm:$0xf]
      %v1583 = vld [vmem:[%s1579 + $0xc] sm:$0xf]
      %v1584 = vld [vmem:[%s1579 + $0x10] sm:$0xf]
      %v1585 = vld [vmem:[%s1579 + $0x14] sm:$0xf]
      %v1586 = vld [vmem:[%s1579 + $0x18] sm:$0xf]
      %v1587 = vld [vmem:[%s1579 + $0x1c] sm:$0xf]
      %v1588 = vld [vmem:[%s1579 + $0x20] sm:$0xf]
      %v1589 = vld [vmem:[%s1579 + $0x24] sm:$0xf]
      %v1590 = vld [vmem:[%s1579 + $0x28] sm:$0xf]
      %v1591 = vld [vmem:[%s1579 + $0x2c] sm:$0xf]
      %v1592 = vld [vmem:[%s1579 + $0x30] sm:$0xf]
      %v1593 = vld [vmem:[%s1579 + $0x34] sm:$0x3]
      %v1626 = vunpack.c.l.b16 %v1533
      %v1627 = vunpack.c.l.b16 %v1534
      %v1628 = vunpack.c.l.b16 %v1535
      %v1629 = vunpack.c.l.b16 %v1536
      %v1630 = vunpack.c.l.b16 %v1537
      %v1631 = vunpack.c.l.b16 %v1538
      %v1632 = vunpack.c.l.b16 %v1539
      %v1633 = vunpack.c.l.b16 %v1540
      %v1634 = vunpack.c.l.b16 %v1541
      %v1635 = vunpack.c.l.b16 %v1542
      %v1636 = vunpack.c.l.b16 %v1543
      %v1637 = vunpack.c.l.b16 %v1544
      %v1638 = vunpack.c.l.b16 %v1545
      %v1639 = vunpack.c.l.b16 %v1546
      %v1640 = vunpack.c.l.b16 %v1547
      %v1641 = vunpack.c.l.b16 %v1548
      %v1642 = vunpack.c.l.b16 %v1549
      %v1643 = vunpack.c.l.b16 %v1550
      %v1644 = vunpack.c.l.b16 %v1551
      %v1645 = vunpack.c.l.b16 %v1552
      %v1646 = vunpack.c.l.b16 %v1553
      %v1647 = vunpack.c.l.b16 %v1554
      %v1648 = vunpack.c.l.b16 %v1555
      %v1649 = vunpack.c.l.b16 %v1556
      %v1650 = vunpack.c.l.b16 %v1557
      %v1651 = vunpack.c.l.b16 %v1558
      %v1652 = vunpack.c.l.b16 %v1559
      %v1653 = vunpack.c.l.b16 %v1560
      %v1654 = vunpack.c.l.b16 %v1561
      %v1655 = vunpack.c.l.b16 %v1562
      %v1656 = vunpack.c.l.b16 %v1577
      %v1657 = vunpack.c.l.b16 %v1578
      %v1658 = vpack.c.b16 %v1627, %v1626
      %v1659 = vpack.c.b16 %v1629, %v1628
      %v1660 = vpack.c.b16 %v1631, %v1630
      %v1661 = vpack.c.b16 %v1633, %v1632
      %v1662 = vpack.c.b16 %v1635, %v1634
      %v1663 = vpack.c.b16 %v1637, %v1636
      %v1664 = vpack.c.b16 %v1639, %v1638
      %v1665 = vpack.c.b16 %v1641, %v1640
      %v1666 = vpack.c.b16 %v1643, %v1642
      %v1667 = vpack.c.b16 %v1645, %v1644
      %v1668 = vpack.c.b16 %v1647, %v1646
      %v1669 = vpack.c.b16 %v1649, %v1648
      %v1670 = vpack.c.b16 %v1651, %v1650
      %v1671 = vpack.c.b16 %v1653, %v1652
      %v1672 = vpack.c.b16 %v1655, %v1654
      %v1673 = vpack.c.b16 %v1657, %v1656
      %v1688 = vunpack.c.l.b16 %v1580
      %v1689 = vunpack.c.l.b16 %v1581
      %v1690 = vunpack.c.l.b16 %v1582
      %v1691 = vunpack.c.l.b16 %v1583
      %v1692 = vunpack.c.l.b16 %v1584
      %v1693 = vunpack.c.l.b16 %v1585
      %v1694 = vunpack.c.l.b16 %v1586
      %v1695 = vunpack.c.l.b16 %v1587
      %v1696 = vunpack.c.l.b16 %v1588
      %v1697 = vunpack.c.l.b16 %v1589
      %v1698 = vunpack.c.l.b16 %v1590
      %v1699 = vunpack.c.l.b16 %v1591
      %v1700 = vunpack.c.l.b16 %v1592
      %v1701 = vunpack.c.l.b16 %v1593
      %v1702 = vpack.c.b16 %v1689, %v1688
      %v1703 = vpack.c.b16 %v1691, %v1690
      %v1704 = vpack.c.b16 %v1693, %v1692
      %v1705 = vpack.c.b16 %v1695, %v1694
      %v1706 = vpack.c.b16 %v1697, %v1696
      %v1707 = vpack.c.b16 %v1699, %v1698
      %v1708 = vpack.c.b16 %v1701, %v1700
      %vm1715 = vcmask 883712
      %v1717 = vsel %vm1715, %v1658, 0
      %v1720 = vsel %vm1715, %v1659, 0
      %v1723 = vsel %vm1715, %v1660, 0
      %v1726 = vsel %vm1715, %v1661, 0
      %v1729 = vsel %vm1715, %v1662, 0
      %v1732 = vsel %vm1715, %v1663, 0
      %v1735 = vsel %vm1715, %v1664, 0
      %v1738 = vsel %vm1715, %v1665, 0
      %v1741 = vsel %vm1715, %v1666, 0
      %v1744 = vsel %vm1715, %v1667, 0
      %v1747 = vsel %vm1715, %v1668, 0
      %v1750 = vsel %vm1715, %v1669, 0
      %v1753 = vsel %vm1715, %v1670, 0
      %v1756 = vsel %vm1715, %v1671, 0
      %v1759 = vsel %vm1715, %v1672, 0
      %v1762 = vsel %vm1715, %v1673, 0
      %vm1764 = vcmask 1045504
      %v1766 = vsel %vm1764, %v1708, 0
      %1768 = vmatpush.bf16.msra.mxu0 0
      %1769 = vmatpush.bf16.msra.mxu0 %v1766
      %1770 = vmatpush.bf16.msra.mxu0 %v1707
      %1771 = vmatpush.bf16.msra.mxu0 %v1706
      %1772 = vmatpush.bf16.msra.mxu0 %v1705
      %1773 = vmatpush.bf16.msra.mxu0 %v1704
      %1774 = vmatpush.bf16.msra.mxu0 %v1703
      %1775 = vmatpush.bf16.msra.mxu0 %v1702
      %1776 = vmatmul.bf16.gmra.mxu0 %v1717
      %v1777 = vpop.f32.mrf.mxu0
      %v1778 = vadd.f32 0.0, %v1777
      %v1779 = vpop.f32.mrf.mxu0
      %v1780 = vadd.f32 0.0, %v1779
      %1781 = vmatmul.bf16.gmra.mxu0 %v1720
      %v1782 = vpop.f32.mrf.mxu0
      %v1783 = vadd.f32 0.0, %v1782
      %v1784 = vpop.f32.mrf.mxu0
      %v1785 = vadd.f32 0.0, %v1784
      %1786 = vmatmul.bf16.gmra.mxu0 %v1723
      %v1787 = vpop.f32.mrf.mxu0
      %v1788 = vadd.f32 0.0, %v1787
      %v1789 = vpop.f32.mrf.mxu0
      %v1790 = vadd.f32 0.0, %v1789
      %1791 = vmatmul.bf16.gmra.mxu0 %v1726
      %v1792 = vpop.f32.mrf.mxu0
      %v1793 = vadd.f32 0.0, %v1792
      %v1794 = vpop.f32.mrf.mxu0
      %v1795 = vadd.f32 0.0, %v1794
      %1796 = vmatmul.bf16.gmra.mxu0 %v1729
      %v1797 = vpop.f32.mrf.mxu0
      %v1798 = vadd.f32 0.0, %v1797
      %v1799 = vpop.f32.mrf.mxu0
      %v1800 = vadd.f32 0.0, %v1799
      %1801 = vmatmul.bf16.gmra.mxu0 %v1732
      %v1802 = vpop.f32.mrf.mxu0
      %v1803 = vadd.f32 0.0, %v1802
      %v1804 = vpop.f32.mrf.mxu0
      %v1805 = vadd.f32 0.0, %v1804
      %1806 = vmatmul.bf16.gmra.mxu0 %v1735
      %v1807 = vpop.f32.mrf.mxu0
      %v1808 = vadd.f32 0.0, %v1807
      %v1809 = vpop.f32.mrf.mxu0
      %v1810 = vadd.f32 0.0, %v1809
      %1811 = vmatmul.bf16.gmra.mxu0 %v1738
      %v1812 = vpop.f32.mrf.mxu0
      %v1813 = vadd.f32 0.0, %v1812
      %v1814 = vpop.f32.mrf.mxu0
      %v1815 = vadd.f32 0.0, %v1814
      %1816 = vmatmul.bf16.gmra.mxu0 %v1741
      %v1817 = vpop.f32.mrf.mxu0
      %v1818 = vadd.f32 0.0, %v1817
      %v1819 = vpop.f32.mrf.mxu0
      %v1820 = vadd.f32 0.0, %v1819
      %1821 = vmatmul.bf16.gmra.mxu0 %v1744
      %v1822 = vpop.f32.mrf.mxu0
      %v1823 = vadd.f32 0.0, %v1822
      %v1824 = vpop.f32.mrf.mxu0
      %v1825 = vadd.f32 0.0, %v1824
      %1826 = vmatmul.bf16.gmra.mxu0 %v1747
      %v1827 = vpop.f32.mrf.mxu0
      %v1828 = vadd.f32 0.0, %v1827
      %v1829 = vpop.f32.mrf.mxu0
      %v1830 = vadd.f32 0.0, %v1829
      %1831 = vmatmul.bf16.gmra.mxu0 %v1750
      %v1832 = vpop.f32.mrf.mxu0
      %v1833 = vadd.f32 0.0, %v1832
      %v1834 = vpop.f32.mrf.mxu0
      %v1835 = vadd.f32 0.0, %v1834
      %1836 = vmatmul.bf16.gmra.mxu0 %v1753
      %v1837 = vpop.f32.mrf.mxu0
      %v1838 = vadd.f32 0.0, %v1837
      %v1839 = vpop.f32.mrf.mxu0
      %v1840 = vadd.f32 0.0, %v1839
      %1841 = vmatmul.bf16.gmra.mxu0 %v1756
      %v1842 = vpop.f32.mrf.mxu0
      %v1843 = vadd.f32 0.0, %v1842
      %v1844 = vpop.f32.mrf.mxu0
      %v1845 = vadd.f32 0.0, %v1844
      %1846 = vmatmul.bf16.gmra.mxu0 %v1759
      %v1847 = vpop.f32.mrf.mxu0
      %v1848 = vadd.f32 0.0, %v1847
      %v1849 = vpop.f32.mrf.mxu0
      %v1850 = vadd.f32 0.0, %v1849
      %1851 = vmatmul.bf16.gmra.mxu0 %v1762
      %v1852 = vpop.f32.mrf.mxu0
      %v1853 = vadd.f32 0.0, %v1852
      %v1854 = vpop.f32.mrf.mxu0
      %v1855 = vadd.f32 0.0, %v1854
      %1856 = vdwg.mxu0
      %v1859 = vunpack.c.l.b16 %v1531
      %v1860 = vunpack.c.l.b16 %v1532
      %v1861 = vpack.c.b16 %v1860, %v1859
      %v1876 = vunpack.c.l.b16 %v1563
      %v1877 = vunpack.c.l.b16 %v1564
      %v1878 = vunpack.c.l.b16 %v1565
      %v1879 = vunpack.c.l.b16 %v1566
      %v1880 = vunpack.c.l.b16 %v1567
      %v1881 = vunpack.c.l.b16 %v1568
      %v1882 = vunpack.c.l.b16 %v1569
      %v1883 = vunpack.c.l.b16 %v1570
      %v1884 = vunpack.c.l.b16 %v1571
      %v1885 = vunpack.c.l.b16 %v1572
      %v1886 = vunpack.c.l.b16 %v1573
      %v1887 = vunpack.c.l.b16 %v1574
      %v1888 = vunpack.c.l.b16 %v1575
      %v1889 = vunpack.c.l.b16 %v1576
      %v1890 = vpack.c.b16 %v1877, %v1876
      %v1891 = vpack.c.b16 %v1879, %v1878
      %v1892 = vpack.c.b16 %v1881, %v1880
      %v1893 = vpack.c.b16 %v1883, %v1882
      %v1894 = vpack.c.b16 %v1885, %v1884
      %v1895 = vpack.c.b16 %v1887, %v1886
      %v1896 = vpack.c.b16 %v1889, %v1888
      %v1904 = vsel %vm1715, %v1861, 0
      %v1907 = vsel %vm1764, %v1896, 0
      %1909 = vmatpush.bf16.msra.mxu0 0
      %1910 = vmatpush.bf16.msra.mxu0 %v1907
      %1911 = vmatpush.bf16.msra.mxu0 %v1895
      %1912 = vmatpush.bf16.msra.mxu0 %v1894
      %1913 = vmatpush.bf16.msra.mxu0 %v1893
      %1914 = vmatpush.bf16.msra.mxu0 %v1892
      %1915 = vmatpush.bf16.msra.mxu0 %v1891
      %1916 = vmatpush.bf16.msra.mxu0 %v1890
      %1917 = vmatmul.bf16.gmra.mxu0 %v1904
      %v1918 = vpop.f32.mrf.mxu0
      %v1919 = vadd.f32 %v1778, %v1918
      %v1920 = vpop.f32.mrf.mxu0
      %v1921 = vadd.f32 %v1780, %v1920
      %1922 = vmatmul.bf16.gmra.mxu0 %v1717
      %v1923 = vpop.f32.mrf.mxu0
      %v1924 = vadd.f32 %v1783, %v1923
      %v1925 = vpop.f32.mrf.mxu0
      %v1926 = vadd.f32 %v1785, %v1925
      %1927 = vmatmul.bf16.gmra.mxu0 %v1720
      %v1928 = vpop.f32.mrf.mxu0
      %v1929 = vadd.f32 %v1788, %v1928
      %v1930 = vpop.f32.mrf.mxu0
      %v1931 = vadd.f32 %v1790, %v1930
      %1932 = vmatmul.bf16.gmra.mxu0 %v1723
      %v1933 = vpop.f32.mrf.mxu0
      %v1934 = vadd.f32 %v1793, %v1933
      %v1935 = vpop.f32.mrf.mxu0
      %v1936 = vadd.f32 %v1795, %v1935
      %1937 = vmatmul.bf16.gmra.mxu0 %v1726
      %v1938 = vpop.f32.mrf.mxu0
      %v1939 = vadd.f32 %v1798, %v1938
      %v1940 = vpop.f32.mrf.mxu0
      %v1941 = vadd.f32 %v1800, %v1940
      %1942 = vmatmul.bf16.gmra.mxu0 %v1729
      %v1943 = vpop.f32.mrf.mxu0
      %v1944 = vadd.f32 %v1803, %v1943
      %v1945 = vpop.f32.mrf.mxu0
      %v1946 = vadd.f32 %v1805, %v1945
      %1947 = vmatmul.bf16.gmra.mxu0 %v1732
      %v1948 = vpop.f32.mrf.mxu0
      %v1949 = vadd.f32 %v1808, %v1948
      %v1950 = vpop.f32.mrf.mxu0
      %v1951 = vadd.f32 %v1810, %v1950
      %1952 = vmatmul.bf16.gmra.mxu0 %v1735
      %v1953 = vpop.f32.mrf.mxu0
      %v1954 = vadd.f32 %v1813, %v1953
      %v1955 = vpop.f32.mrf.mxu0
      %v1956 = vadd.f32 %v1815, %v1955
      %1957 = vmatmul.bf16.gmra.mxu0 %v1738
      %v1958 = vpop.f32.mrf.mxu0
      %v1959 = vadd.f32 %v1818, %v1958
      %v1960 = vpop.f32.mrf.mxu0
      %v1961 = vadd.f32 %v1820, %v1960
      %1962 = vmatmul.bf16.gmra.mxu0 %v1741
      %v1963 = vpop.f32.mrf.mxu0
      %v1964 = vadd.f32 %v1823, %v1963
      %v1965 = vpop.f32.mrf.mxu0
      %v1966 = vadd.f32 %v1825, %v1965
      %1967 = vmatmul.bf16.gmra.mxu0 %v1744
      %v1968 = vpop.f32.mrf.mxu0
      %v1969 = vadd.f32 %v1828, %v1968
      %v1970 = vpop.f32.mrf.mxu0
      %v1971 = vadd.f32 %v1830, %v1970
      %1972 = vmatmul.bf16.gmra.mxu0 %v1747
      %v1973 = vpop.f32.mrf.mxu0
      %v1974 = vadd.f32 %v1833, %v1973
      %v1975 = vpop.f32.mrf.mxu0
      %v1976 = vadd.f32 %v1835, %v1975
      %1977 = vmatmul.bf16.gmra.mxu0 %v1750
      %v1978 = vpop.f32.mrf.mxu0
      %v1979 = vadd.f32 %v1838, %v1978
      %v1980 = vpop.f32.mrf.mxu0
      %v1981 = vadd.f32 %v1840, %v1980
      %1982 = vmatmul.bf16.gmra.mxu0 %v1753
      %v1983 = vpop.f32.mrf.mxu0
      %v1984 = vadd.f32 %v1843, %v1983
      %v1985 = vpop.f32.mrf.mxu0
      %v1986 = vadd.f32 %v1845, %v1985
      %1987 = vmatmul.bf16.gmra.mxu0 %v1756
      %v1988 = vpop.f32.mrf.mxu0
      %v1989 = vadd.f32 %v1848, %v1988
      %v1990 = vpop.f32.mrf.mxu0
      %v1991 = vadd.f32 %v1850, %v1990
      %1992 = vmatmul.bf16.gmra.mxu0 %v1759
      %v1993 = vpop.f32.mrf.mxu0
      %v1994 = vadd.f32 %v1853, %v1993
      %v1995 = vpop.f32.mrf.mxu0
      %v1996 = vadd.f32 %v1855, %v1995
      %1997 = vdwg.mxu0
      %v1998 = vld [vmem:[#allocation2 + $0x10] sm:$0xf]
      %v1999 = vld [vmem:[#allocation2 + $0x14] sm:$0xf]
      %v2000 = vld [vmem:[#allocation2 + $0x18] sm:$0xf]
      %v2001 = vld [vmem:[#allocation2 + $0x1c] sm:$0xf]
      %v2002 = vld [vmem:[#allocation2 + $0x20] sm:$0xf]
      %v2003 = vld [vmem:[#allocation2 + $0x24] sm:$0xf]
      %v2004 = vld [vmem:[#allocation2 + $0x28] sm:$0xf]
      %v2005 = vld [vmem:[#allocation2 + $0x2c] sm:$0xf]
      %v2006 = vld [vmem:[#allocation2 + $0x30] sm:$0xf]
      %v2007 = vld [vmem:[#allocation2 + $0x34] sm:$0xf]
      %v2008 = vld [vmem:[#allocation2 + $0x38] sm:$0xf]
      %v2009 = vld [vmem:[#allocation2 + $0x3c] sm:$0xf]
      %v2010 = vld [vmem:[#allocation2 + $0x40] sm:$0xf]
      %v2011 = vld [vmem:[#allocation2 + $0x44] sm:$0xf]
      %v2012 = vld [vmem:[#allocation2 + $0x48] sm:$0xf]
      %v2013 = vld [vmem:[#allocation2 + $0x4c] sm:$0xf]
      %v2014 = vld [vmem:[#allocation2 + $0x50] sm:$0xf]
      %v2015 = vld [vmem:[#allocation2 + $0x54] sm:$0xf]
      %v2016 = vld [vmem:[#allocation2 + $0x58] sm:$0xf]
      %v2017 = vld [vmem:[#allocation2 + $0x5c] sm:$0xf]
      %v2018 = vld [vmem:[#allocation2 + $0x60] sm:$0xf]
      %v2019 = vld [vmem:[#allocation2 + $0x64] sm:$0xf]
      %v2020 = vld [vmem:[#allocation2 + $0x68] sm:$0xf]
      %v2021 = vld [vmem:[#allocation2 + $0x6c] sm:$0xf]
      %v2022 = vld [vmem:[#allocation2 + $0x70] sm:$0xf]
      %v2023 = vld [vmem:[#allocation2 + $0x74] sm:$0xf]
      %v2024 = vld [vmem:[#allocation2 + $0x78] sm:$0xf]
      %v2025 = vld [vmem:[#allocation2 + $0x7c] sm:$0xf]
      %v2026 = vld [vmem:[#allocation2 + $0x80] sm:$0xf]
      %v2027 = vld [vmem:[#allocation2 + $0x84] sm:$0xf]
      %v2028 = vld [vmem:[#allocation2 + $0x88] sm:$0xf]
      %v2029 = vld [vmem:[#allocation2 + $0x8c] sm:$0xf]
      %s2030 = scalar_lea.vmem %s3, 112
      %v2031 = vld [vmem:[%s2030] sm:$0xf]
      %v2032 = vld [vmem:[%s2030 + $0x4] sm:$0xf]
      %v2033 = vld [vmem:[%s2030 + $0x8] sm:$0xf]
      %v2034 = vld [vmem:[%s2030 + $0xc] sm:$0xf]
      %v2035 = vld [vmem:[%s2030 + $0x10] sm:$0xf]
      %v2036 = vld [vmem:[%s2030 + $0x14] sm:$0xf]
      %v2037 = vld [vmem:[%s2030 + $0x18] sm:$0xf]
      %v2038 = vld [vmem:[%s2030 + $0x1c] sm:$0xf]
      %v2039 = vld [vmem:[%s2030 + $0x20] sm:$0xf]
      %v2040 = vld [vmem:[%s2030 + $0x24] sm:$0xf]
      %v2041 = vld [vmem:[%s2030 + $0x28] sm:$0xf]
      %v2042 = vld [vmem:[%s2030 + $0x2c] sm:$0xf]
      %v2043 = vld [vmem:[%s2030 + $0x30] sm:$0xf]
      %v2044 = vld [vmem:[%s2030 + $0x34] sm:$0x3]
      %v2077 = vunpack.c.l.b16 %v1998
      %v2078 = vunpack.c.l.b16 %v1999
      %v2079 = vunpack.c.l.b16 %v2000
      %v2080 = vunpack.c.l.b16 %v2001
      %v2081 = vunpack.c.l.b16 %v2002
      %v2082 = vunpack.c.l.b16 %v2003
      %v2083 = vunpack.c.l.b16 %v2004
      %v2084 = vunpack.c.l.b16 %v2005
      %v2085 = vunpack.c.l.b16 %v2006
      %v2086 = vunpack.c.l.b16 %v2007
      %v2087 = vunpack.c.l.b16 %v2008
      %v2088 = vunpack.c.l.b16 %v2009
      %v2089 = vunpack.c.l.b16 %v2010
      %v2090 = vunpack.c.l.b16 %v2011
      %v2091 = vunpack.c.l.b16 %v2012
      %v2092 = vunpack.c.l.b16 %v2013
      %v2093 = vunpack.c.l.b16 %v2014
      %v2094 = vunpack.c.l.b16 %v2015
      %v2095 = vunpack.c.l.b16 %v2016
      %v2096 = vunpack.c.l.b16 %v2017
      %v2097 = vunpack.c.l.b16 %v2018
      %v2098 = vunpack.c.l.b16 %v2019
      %v2099 = vunpack.c.l.b16 %v2020
      %v2100 = vunpack.c.l.b16 %v2021
      %v2101 = vunpack.c.l.b16 %v2022
      %v2102 = vunpack.c.l.b16 %v2023
      %v2103 = vunpack.c.l.b16 %v2024
      %v2104 = vunpack.c.l.b16 %v2025
      %v2105 = vunpack.c.l.b16 %v2026
      %v2106 = vunpack.c.l.b16 %v2027
      %v2107 = vunpack.c.l.b16 %v2028
      %v2108 = vunpack.c.l.b16 %v2029
      %v2109 = vpack.c.b16 %v2078, %v2077
      %v2110 = vpack.c.b16 %v2080, %v2079
      %v2111 = vpack.c.b16 %v2082, %v2081
      %v2112 = vpack.c.b16 %v2084, %v2083
      %v2113 = vpack.c.b16 %v2086, %v2085
      %v2114 = vpack.c.b16 %v2088, %v2087
      %v2115 = vpack.c.b16 %v2090, %v2089
      %v2116 = vpack.c.b16 %v2092, %v2091
      %v2117 = vpack.c.b16 %v2094, %v2093
      %v2118 = vpack.c.b16 %v2096, %v2095
      %v2119 = vpack.c.b16 %v2098, %v2097
      %v2120 = vpack.c.b16 %v2100, %v2099
      %v2121 = vpack.c.b16 %v2102, %v2101
      %v2122 = vpack.c.b16 %v2104, %v2103
      %v2123 = vpack.c.b16 %v2106, %v2105
      %v2124 = vpack.c.b16 %v2108, %v2107
      %v2139 = vunpack.c.l.b16 %v2031
      %v2140 = vunpack.c.l.b16 %v2032
      %v2141 = vunpack.c.l.b16 %v2033
      %v2142 = vunpack.c.l.b16 %v2034
      %v2143 = vunpack.c.l.b16 %v2035
      %v2144 = vunpack.c.l.b16 %v2036
      %v2145 = vunpack.c.l.b16 %v2037
      %v2146 = vunpack.c.l.b16 %v2038
      %v2147 = vunpack.c.l.b16 %v2039
      %v2148 = vunpack.c.l.b16 %v2040
      %v2149 = vunpack.c.l.b16 %v2041
      %v2150 = vunpack.c.l.b16 %v2042
      %v2151 = vunpack.c.l.b16 %v2043
      %v2152 = vunpack.c.l.b16 %v2044
      %v2153 = vpack.c.b16 %v2140, %v2139
      %v2154 = vpack.c.b16 %v2142, %v2141
      %v2155 = vpack.c.b16 %v2144, %v2143
      %v2156 = vpack.c.b16 %v2146, %v2145
      %v2157 = vpack.c.b16 %v2148, %v2147
      %v2158 = vpack.c.b16 %v2150, %v2149
      %v2159 = vpack.c.b16 %v2152, %v2151
      %v2167 = vsel %vm1715, %v2109, 0
      %v2170 = vsel %vm1715, %v2110, 0
      %v2173 = vsel %vm1715, %v2111, 0
      %v2176 = vsel %vm1715, %v2112, 0
      %v2179 = vsel %vm1715, %v2113, 0
      %v2182 = vsel %vm1715, %v2114, 0
      %v2185 = vsel %vm1715, %v2115, 0
      %v2188 = vsel %vm1715, %v2116, 0
      %v2191 = vsel %vm1715, %v2117, 0
      %v2194 = vsel %vm1715, %v2118, 0
      %v2197 = vsel %vm1715, %v2119, 0
      %v2200 = vsel %vm1715, %v2120, 0
      %v2203 = vsel %vm1715, %v2121, 0
      %v2206 = vsel %vm1715, %v2122, 0
      %v2209 = vsel %vm1715, %v2123, 0
      %v2212 = vsel %vm1715, %v2124, 0
      %v2215 = vsel %vm1764, %v2159, 0
      %2217 = vmatpush.bf16.msra.mxu0 0
      %2218 = vmatpush.bf16.msra.mxu0 %v2215
      %2219 = vmatpush.bf16.msra.mxu0 %v2158
      %2220 = vmatpush.bf16.msra.mxu0 %v2157
      %2221 = vmatpush.bf16.msra.mxu0 %v2156
      %2222 = vmatpush.bf16.msra.mxu0 %v2155
      %2223 = vmatpush.bf16.msra.mxu0 %v2154
      %2224 = vmatpush.bf16.msra.mxu0 %v2153
      %2225 = vmatmul.bf16.gmra.mxu0 %v2167
      %v2226 = vpop.f32.mrf.mxu0
      %v2227 = vadd.f32 0.0, %v2226
      %v2228 = vpop.f32.mrf.mxu0
      %v2229 = vadd.f32 0.0, %v2228
      %2230 = vmatmul.bf16.gmra.mxu0 %v2170
      %v2231 = vpop.f32.mrf.mxu0
      %v2232 = vadd.f32 0.0, %v2231
      %v2233 = vpop.f32.mrf.mxu0
      %v2234 = vadd.f32 0.0, %v2233
      %2235 = vmatmul.bf16.gmra.mxu0 %v2173
      %v2236 = vpop.f32.mrf.mxu0
      %v2237 = vadd.f32 0.0, %v2236
      %v2238 = vpop.f32.mrf.mxu0
      %v2239 = vadd.f32 0.0, %v2238
      %2240 = vmatmul.bf16.gmra.mxu0 %v2176
      %v2241 = vpop.f32.mrf.mxu0
      %v2242 = vadd.f32 0.0, %v2241
      %v2243 = vpop.f32.mrf.mxu0
      %v2244 = vadd.f32 0.0, %v2243
      %2245 = vmatmul.bf16.gmra.mxu0 %v2179
      %v2246 = vpop.f32.mrf.mxu0
      %v2247 = vadd.f32 0.0, %v2246
      %v2248 = vpop.f32.mrf.mxu0
      %v2249 = vadd.f32 0.0, %v2248
      %2250 = vmatmul.bf16.gmra.mxu0 %v2182
      %v2251 = vpop.f32.mrf.mxu0
      %v2252 = vadd.f32 0.0, %v2251
      %v2253 = vpop.f32.mrf.mxu0
      %v2254 = vadd.f32 0.0, %v2253
      %2255 = vmatmul.bf16.gmra.mxu0 %v2185
      %v2256 = vpop.f32.mrf.mxu0
      %v2257 = vadd.f32 0.0, %v2256
      %v2258 = vpop.f32.mrf.mxu0
      %v2259 = vadd.f32 0.0, %v2258
      %2260 = vmatmul.bf16.gmra.mxu0 %v2188
      %v2261 = vpop.f32.mrf.mxu0
      %v2262 = vadd.f32 0.0, %v2261
      %v2263 = vpop.f32.mrf.mxu0
      %v2264 = vadd.f32 0.0, %v2263
      %2265 = vmatmul.bf16.gmra.mxu0 %v2191
      %v2266 = vpop.f32.mrf.mxu0
      %v2267 = vadd.f32 0.0, %v2266
      %v2268 = vpop.f32.mrf.mxu0
      %v2269 = vadd.f32 0.0, %v2268
      %2270 = vmatmul.bf16.gmra.mxu0 %v2194
      %v2271 = vpop.f32.mrf.mxu0
      %v2272 = vadd.f32 0.0, %v2271
      %v2273 = vpop.f32.mrf.mxu0
      %v2274 = vadd.f32 0.0, %v2273
      %2275 = vmatmul.bf16.gmra.mxu0 %v2197
      %v2276 = vpop.f32.mrf.mxu0
      %v2277 = vadd.f32 0.0, %v2276
      %v2278 = vpop.f32.mrf.mxu0
      %v2279 = vadd.f32 0.0, %v2278
      %2280 = vmatmul.bf16.gmra.mxu0 %v2200
      %v2281 = vpop.f32.mrf.mxu0
      %v2282 = vadd.f32 0.0, %v2281
      %v2283 = vpop.f32.mrf.mxu0
      %v2284 = vadd.f32 0.0, %v2283
      %2285 = vmatmul.bf16.gmra.mxu0 %v2203
      %v2286 = vpop.f32.mrf.mxu0
      %v2287 = vadd.f32 0.0, %v2286
      %v2288 = vpop.f32.mrf.mxu0
      %v2289 = vadd.f32 0.0, %v2288
      %2290 = vmatmul.bf16.gmra.mxu0 %v2206
      %v2291 = vpop.f32.mrf.mxu0
      %v2292 = vadd.f32 0.0, %v2291
      %v2293 = vpop.f32.mrf.mxu0
      %v2294 = vadd.f32 0.0, %v2293
      %2295 = vmatmul.bf16.gmra.mxu0 %v2209
      %v2296 = vpop.f32.mrf.mxu0
      %v2297 = vadd.f32 0.0, %v2296
      %v2298 = vpop.f32.mrf.mxu0
      %v2299 = vadd.f32 0.0, %v2298
      %2300 = vmatmul.bf16.gmra.mxu0 %v2212
      %v2301 = vpop.f32.mrf.mxu0
      %v2302 = vadd.f32 0.0, %v2301
      %v2303 = vpop.f32.mrf.mxu0
      %v2304 = vadd.f32 0.0, %v2303
      %2305 = vdwg.mxu0
      %v2306 = vadd.f32 %v1919, %v2227
      %v2307 = vadd.f32 %v1921, %v2229
      %v2308 = vadd.f32 %v1924, %v2232
      %v2309 = vadd.f32 %v1926, %v2234
      %v2310 = vadd.f32 %v1929, %v2237
      %v2311 = vadd.f32 %v1931, %v2239
      %v2312 = vadd.f32 %v1934, %v2242
      %v2313 = vadd.f32 %v1936, %v2244
      %v2314 = vadd.f32 %v1939, %v2247
      %v2315 = vadd.f32 %v1941, %v2249
      %v2316 = vadd.f32 %v1944, %v2252
      %v2317 = vadd.f32 %v1946, %v2254
      %v2318 = vadd.f32 %v1949, %v2257
      %v2319 = vadd.f32 %v1951, %v2259
      %v2320 = vadd.f32 %v1954, %v2262
      %v2321 = vadd.f32 %v1956, %v2264
      %v2322 = vadd.f32 %v1959, %v2267
      %v2323 = vadd.f32 %v1961, %v2269
      %v2324 = vadd.f32 %v1964, %v2272
      %v2325 = vadd.f32 %v1966, %v2274
      %v2326 = vadd.f32 %v1969, %v2277
      %v2327 = vadd.f32 %v1971, %v2279
      %v2328 = vadd.f32 %v1974, %v2282
      %v2329 = vadd.f32 %v1976, %v2284
      %v2330 = vadd.f32 %v1979, %v2287
      %v2331 = vadd.f32 %v1981, %v2289
      %v2332 = vadd.f32 %v1984, %v2292
      %v2333 = vadd.f32 %v1986, %v2294
      %v2334 = vadd.f32 %v1989, %v2297
      %v2335 = vadd.f32 %v1991, %v2299
      %v2336 = vadd.f32 %v1994, %v2302
      %v2337 = vadd.f32 %v1996, %v2304
      %v2338 = vld [vmem:[%s4] sm:$0x1]
      %v2340 = vperm.slane %v2338, 0
      %v2342 = vadd.f32 %v2306, %v2340
      %v2343 = vadd.f32 %v2307, %v2340
      %v2344 = vadd.f32 %v2308, %v2340
      %v2345 = vadd.f32 %v2309, %v2340
      %v2346 = vadd.f32 %v2310, %v2340
      %v2347 = vadd.f32 %v2311, %v2340
      %v2348 = vadd.f32 %v2312, %v2340
      %v2349 = vadd.f32 %v2313, %v2340
      %v2350 = vadd.f32 %v2314, %v2340
      %v2351 = vadd.f32 %v2315, %v2340
      %v2352 = vadd.f32 %v2316, %v2340
      %v2353 = vadd.f32 %v2317, %v2340
      %v2354 = vadd.f32 %v2318, %v2340
      %v2355 = vadd.f32 %v2319, %v2340
      %v2356 = vadd.f32 %v2320, %v2340
      %v2357 = vadd.f32 %v2321, %v2340
      %v2358 = vadd.f32 %v2322, %v2340
      %v2359 = vadd.f32 %v2323, %v2340
      %v2360 = vadd.f32 %v2324, %v2340
      %v2361 = vadd.f32 %v2325, %v2340
      %v2362 = vadd.f32 %v2326, %v2340
      %v2363 = vadd.f32 %v2327, %v2340
      %v2364 = vadd.f32 %v2328, %v2340
      %v2365 = vadd.f32 %v2329, %v2340
      %v2366 = vadd.f32 %v2330, %v2340
      %v2367 = vadd.f32 %v2331, %v2340
      %v2368 = vadd.f32 %v2332, %v2340
      %v2369 = vadd.f32 %v2333, %v2340
      %v2370 = vadd.f32 %v2334, %v2340
      %v2371 = vadd.f32 %v2335, %v2340
      %v2372 = vadd.f32 %v2336, %v2340
      %v2373 = vadd.f32 %v2337, %v2340
      %v2374 = vmax.f32 %v2342, 0.0
      %v2375 = vmax.f32 %v2343, 0.0
      %v2376 = vmax.f32 %v2344, 0.0
      %v2377 = vmax.f32 %v2345, 0.0
      %v2378 = vmax.f32 %v2346, 0.0
      %v2379 = vmax.f32 %v2347, 0.0
      %v2380 = vmax.f32 %v2348, 0.0
      %v2381 = vmax.f32 %v2349, 0.0
      %v2382 = vmax.f32 %v2350, 0.0
      %v2383 = vmax.f32 %v2351, 0.0
      %v2384 = vmax.f32 %v2352, 0.0
      %v2385 = vmax.f32 %v2353, 0.0
      %v2386 = vmax.f32 %v2354, 0.0
      %v2387 = vmax.f32 %v2355, 0.0
      %v2388 = vmax.f32 %v2356, 0.0
      %v2389 = vmax.f32 %v2357, 0.0
      %v2390 = vmax.f32 %v2358, 0.0
      %v2391 = vmax.f32 %v2359, 0.0
      %v2392 = vmax.f32 %v2360, 0.0
      %v2393 = vmax.f32 %v2361, 0.0
      %v2394 = vmax.f32 %v2362, 0.0
      %v2395 = vmax.f32 %v2363, 0.0
      %v2396 = vmax.f32 %v2364, 0.0
      %v2397 = vmax.f32 %v2365, 0.0
      %v2398 = vmax.f32 %v2366, 0.0
      %v2399 = vmax.f32 %v2367, 0.0
      %v2400 = vmax.f32 %v2368, 0.0
      %v2401 = vmax.f32 %v2369, 0.0
      %v2402 = vmax.f32 %v2370, 0.0
      %v2403 = vmax.f32 %v2371, 0.0
      %v2404 = vmax.f32 %v2372, 0.0
      %v2405 = vmax.f32 %v2373, 0.0
      %v2438 = vrot.slane %v2374, 7
      %v2439 = vrot.slane %v2375, 7
      %v2440 = vsel %vm631, %v2438, %v2439
      %v2441 = vrot.slane %v2376, 7
      %v2442 = vsel %vm631, %v2439, %v2441
      %v2443 = vrot.slane %v2377, 7
      %v2444 = vsel %vm631, %v2441, %v2443
      %v2445 = vrot.slane %v2378, 7
      %v2446 = vsel %vm631, %v2443, %v2445
      %v2447 = vrot.slane %v2379, 7
      %v2448 = vsel %vm631, %v2445, %v2447
      %v2449 = vrot.slane %v2380, 7
      %v2450 = vsel %vm631, %v2447, %v2449
      %v2451 = vrot.slane %v2381, 7
      %v2452 = vsel %vm631, %v2449, %v2451
      %v2453 = vrot.slane %v2382, 7
      %v2454 = vsel %vm631, %v2451, %v2453
      %v2455 = vrot.slane %v2383, 7
      %v2456 = vsel %vm631, %v2453, %v2455
      %v2457 = vrot.slane %v2384, 7
      %v2458 = vsel %vm631, %v2455, %v2457
      %v2459 = vrot.slane %v2385, 7
      %v2460 = vsel %vm631, %v2457, %v2459
      %v2461 = vrot.slane %v2386, 7
      %v2462 = vsel %vm631, %v2459, %v2461
      %v2463 = vrot.slane %v2387, 7
      %v2464 = vsel %vm631, %v2461, %v2463
      %v2465 = vrot.slane %v2388, 7
      %v2466 = vsel %vm631, %v2463, %v2465
      %v2467 = vrot.slane %v2389, 7
      %v2468 = vsel %vm631, %v2465, %v2467
      %v2469 = vrot.slane %v2390, 7
      %v2470 = vsel %vm631, %v2467, %v2469
      %v2471 = vrot.slane %v2391, 7
      %v2472 = vsel %vm631, %v2469, %v2471
      %v2473 = vrot.slane %v2392, 7
      %v2474 = vsel %vm631, %v2471, %v2473
      %v2475 = vrot.slane %v2393, 7
      %v2476 = vsel %vm631, %v2473, %v2475
      %v2477 = vrot.slane %v2394, 7
      %v2478 = vsel %vm631, %v2475, %v2477
      %v2479 = vrot.slane %v2395, 7
      %v2480 = vsel %vm631, %v2477, %v2479
      %v2481 = vrot.slane %v2396, 7
      %v2482 = vsel %vm631, %v2479, %v2481
      %v2483 = vrot.slane %v2397, 7
      %v2484 = vsel %vm631, %v2481, %v2483
      %v2485 = vrot.slane %v2398, 7
      %v2486 = vsel %vm631, %v2483, %v2485
      %v2487 = vrot.slane %v2399, 7
      %v2488 = vsel %vm631, %v2485, %v2487
      %v2489 = vrot.slane %v2400, 7
      %v2490 = vsel %vm631, %v2487, %v2489
      %v2491 = vrot.slane %v2401, 7
      %v2492 = vsel %vm631, %v2489, %v2491
      %v2493 = vrot.slane %v2402, 7
      %v2494 = vsel %vm631, %v2491, %v2493
      %v2495 = vrot.slane %v2403, 7
      %v2496 = vsel %vm631, %v2493, %v2495
      %v2497 = vrot.slane %v2404, 7
      %v2498 = vsel %vm631, %v2495, %v2497
      %v2499 = vrot.slane %v2405, 7
      %v2500 = vsel %vm631, %v2497, %v2499
      %v2533 = vsel %vm631, 0.0, %v2438
      %v2534 = vmul.f32 %v2533, %v731
      %v2535 = vmul.f32 %v2440, %v736
      %v2536 = vmul.f32 %v2442, %v741
      %v2537 = vmul.f32 %v2444, %v746
      %v2538 = vmul.f32 %v2446, %v751
      %v2539 = vmul.f32 %v2448, %v756
      %v2540 = vmul.f32 %v2450, %v761
      %v2541 = vmul.f32 %v2452, %v766
      %v2542 = vmul.f32 %v2454, %v771
      %v2543 = vmul.f32 %v2456, %v776
      %v2544 = vmul.f32 %v2458, %v781
      %v2545 = vmul.f32 %v2460, %v786
      %v2546 = vmul.f32 %v2462, %v791
      %v2547 = vmul.f32 %v2464, %v796
      %v2548 = vmul.f32 %v2466, %v801
      %v2549 = vmul.f32 %v2468, %v806
      %v2550 = vmul.f32 %v2470, %v811
      %v2551 = vmul.f32 %v2472, %v816
      %v2552 = vmul.f32 %v2474, %v821
      %v2553 = vmul.f32 %v2476, %v826
      %v2554 = vmul.f32 %v2478, %v831
      %v2555 = vmul.f32 %v2480, %v836
      %v2556 = vmul.f32 %v2482, %v841
      %v2557 = vmul.f32 %v2484, %v846
      %v2558 = vmul.f32 %v2486, %v851
      %v2559 = vmul.f32 %v2488, %v856
      %v2560 = vmul.f32 %v2490, %v861
      %v2561 = vmul.f32 %v2492, %v866
      %v2562 = vmul.f32 %v2494, %v871
      %v2563 = vmul.f32 %v2496, %v876
      %v2564 = vmul.f32 %v2498, %v881
      %v2565 = vmul.f32 %v2500, %v886
      %v2566 = vrot.slane %v2374, 1
      %v2567 = vrot.slane %v2375, 1
      %v2568 = vsel %vm920, %v2566, %v2567
      %v2569 = vrot.slane %v2376, 1
      %v2570 = vsel %vm920, %v2567, %v2569
      %v2571 = vrot.slane %v2377, 1
      %v2572 = vsel %vm920, %v2569, %v2571
      %v2573 = vrot.slane %v2378, 1
      %v2574 = vsel %vm920, %v2571, %v2573
      %v2575 = vrot.slane %v2379, 1
      %v2576 = vsel %vm920, %v2573, %v2575
      %v2577 = vrot.slane %v2380, 1
      %v2578 = vsel %vm920, %v2575, %v2577
      %v2579 = vrot.slane %v2381, 1
      %v2580 = vsel %vm920, %v2577, %v2579
      %v2581 = vrot.slane %v2382, 1
      %v2582 = vsel %vm920, %v2579, %v2581
      %v2583 = vrot.slane %v2383, 1
      %v2584 = vsel %vm920, %v2581, %v2583
      %v2585 = vrot.slane %v2384, 1
      %v2586 = vsel %vm920, %v2583, %v2585
      %v2587 = vrot.slane %v2385, 1
      %v2588 = vsel %vm920, %v2585, %v2587
      %v2589 = vrot.slane %v2386, 1
      %v2590 = vsel %vm920, %v2587, %v2589
      %v2591 = vrot.slane %v2387, 1
      %v2592 = vsel %vm920, %v2589, %v2591
      %v2593 = vrot.slane %v2388, 1
      %v2594 = vsel %vm920, %v2591, %v2593
      %v2595 = vrot.slane %v2389, 1
      %v2596 = vsel %vm920, %v2593, %v2595
      %v2597 = vrot.slane %v2390, 1
      %v2598 = vsel %vm920, %v2595, %v2597
      %v2599 = vrot.slane %v2391, 1
      %v2600 = vsel %vm920, %v2597, %v2599
      %v2601 = vrot.slane %v2392, 1
      %v2602 = vsel %vm920, %v2599, %v2601
      %v2603 = vrot.slane %v2393, 1
      %v2604 = vsel %vm920, %v2601, %v2603
      %v2605 = vrot.slane %v2394, 1
      %v2606 = vsel %vm920, %v2603, %v2605
      %v2607 = vrot.slane %v2395, 1
      %v2608 = vsel %vm920, %v2605, %v2607
      %v2609 = vrot.slane %v2396, 1
      %v2610 = vsel %vm920, %v2607, %v2609
      %v2611 = vrot.slane %v2397, 1
      %v2612 = vsel %vm920, %v2609, %v2611
      %v2613 = vrot.slane %v2398, 1
      %v2614 = vsel %vm920, %v2611, %v2613
      %v2615 = vrot.slane %v2399, 1
      %v2616 = vsel %vm920, %v2613, %v2615
      %v2617 = vrot.slane %v2400, 1
      %v2618 = vsel %vm920, %v2615, %v2617
      %v2619 = vrot.slane %v2401, 1
      %v2620 = vsel %vm920, %v2617, %v2619
      %v2621 = vrot.slane %v2402, 1
      %v2622 = vsel %vm920, %v2619, %v2621
      %v2623 = vrot.slane %v2403, 1
      %v2624 = vsel %vm920, %v2621, %v2623
      %v2625 = vrot.slane %v2404, 1
      %v2626 = vsel %vm920, %v2623, %v2625
      %v2627 = vrot.slane %v2405, 1
      %v2628 = vsel %vm920, %v2625, %v2627
      %v2661 = vsel %vm920, %v2627, 0.0
      %v2662 = vmul.f32 %v2568, %v1019
      %v2663 = vmul.f32 %v2570, %v1023
      %v2664 = vmul.f32 %v2572, %v1027
      %v2665 = vmul.f32 %v2574, %v1031
      %v2666 = vmul.f32 %v2576, %v1035
      %v2667 = vmul.f32 %v2578, %v1039
      %v2668 = vmul.f32 %v2580, %v1043
      %v2669 = vmul.f32 %v2582, %v1047
      %v2670 = vmul.f32 %v2584, %v1051
      %v2671 = vmul.f32 %v2586, %v1055
      %v2672 = vmul.f32 %v2588, %v1059
      %v2673 = vmul.f32 %v2590, %v1063
      %v2674 = vmul.f32 %v2592, %v1067
      %v2675 = vmul.f32 %v2594, %v1071
      %v2676 = vmul.f32 %v2596, %v1075
      %v2677 = vmul.f32 %v2598, %v1079
      %v2678 = vmul.f32 %v2600, %v1083
      %v2679 = vmul.f32 %v2602, %v1087
      %v2680 = vmul.f32 %v2604, %v1091
      %v2681 = vmul.f32 %v2606, %v1095
      %v2682 = vmul.f32 %v2608, %v1099
      %v2683 = vmul.f32 %v2610, %v1103
      %v2684 = vmul.f32 %v2612, %v1107
      %v2685 = vmul.f32 %v2614, %v1111
      %v2686 = vmul.f32 %v2616, %v1115
      %v2687 = vmul.f32 %v2618, %v1119
      %v2688 = vmul.f32 %v2620, %v1123
      %v2689 = vmul.f32 %v2622, %v1127
      %v2690 = vmul.f32 %v2624, %v1131
      %v2691 = vmul.f32 %v2626, %v1135
      %v2692 = vmul.f32 %v2628, %v1139
      %v2693 = vmul.f32 %v2661, %v1143
      %2694 = vrot.lane.b32.xlu0 %v2374, 36
      %v2695 = vpop.permute.xlu0 %2694
      %2696 = vrot.lane.b32.xlu0 %v2375, 36
      %v2697 = vpop.permute.xlu0 %2696
      %2698 = vrot.lane.b32.xlu0 %v2376, 36
      %v2699 = vpop.permute.xlu0 %2698
      %2700 = vrot.lane.b32.xlu0 %v2377, 36
      %v2701 = vpop.permute.xlu0 %2700
      %2702 = vrot.lane.b32.xlu0 %v2378, 36
      %v2703 = vpop.permute.xlu0 %2702
      %2704 = vrot.lane.b32.xlu0 %v2379, 36
      %v2705 = vpop.permute.xlu0 %2704
      %2706 = vrot.lane.b32.xlu0 %v2380, 36
      %v2707 = vpop.permute.xlu0 %2706
      %2708 = vrot.lane.b32.xlu0 %v2381, 36
      %v2709 = vpop.permute.xlu0 %2708
      %2710 = vrot.lane.b32.xlu0 %v2382, 36
      %v2711 = vpop.permute.xlu0 %2710
      %2712 = vrot.lane.b32.xlu0 %v2383, 36
      %v2713 = vpop.permute.xlu0 %2712
      %2714 = vrot.lane.b32.xlu0 %v2384, 36
      %v2715 = vpop.permute.xlu0 %2714
      %2716 = vrot.lane.b32.xlu0 %v2385, 36
      %v2717 = vpop.permute.xlu0 %2716
      %2718 = vrot.lane.b32.xlu0 %v2386, 36
      %v2719 = vpop.permute.xlu0 %2718
      %2720 = vrot.lane.b32.xlu0 %v2387, 36
      %v2721 = vpop.permute.xlu0 %2720
      %2722 = vrot.lane.b32.xlu0 %v2388, 36
      %v2723 = vpop.permute.xlu0 %2722
      %2724 = vrot.lane.b32.xlu0 %v2389, 36
      %v2725 = vpop.permute.xlu0 %2724
      %2726 = vrot.lane.b32.xlu0 %v2390, 36
      %v2727 = vpop.permute.xlu0 %2726
      %2728 = vrot.lane.b32.xlu0 %v2391, 36
      %v2729 = vpop.permute.xlu0 %2728
      %2730 = vrot.lane.b32.xlu0 %v2392, 36
      %v2731 = vpop.permute.xlu0 %2730
      %2732 = vrot.lane.b32.xlu0 %v2393, 36
      %v2733 = vpop.permute.xlu0 %2732
      %2734 = vrot.lane.b32.xlu0 %v2394, 36
      %v2735 = vpop.permute.xlu0 %2734
      %2736 = vrot.lane.b32.xlu0 %v2395, 36
      %v2737 = vpop.permute.xlu0 %2736
      %2738 = vrot.lane.b32.xlu0 %v2396, 36
      %v2739 = vpop.permute.xlu0 %2738
      %2740 = vrot.lane.b32.xlu0 %v2397, 36
      %v2741 = vpop.permute.xlu0 %2740
      %2742 = vrot.lane.b32.xlu0 %v2398, 36
      %v2743 = vpop.permute.xlu0 %2742
      %2744 = vrot.lane.b32.xlu0 %v2399, 36
      %v2745 = vpop.permute.xlu0 %2744
      %2746 = vrot.lane.b32.xlu0 %v2400, 36
      %v2747 = vpop.permute.xlu0 %2746
      %2748 = vrot.lane.b32.xlu0 %v2401, 36
      %v2749 = vpop.permute.xlu0 %2748
      %2750 = vrot.lane.b32.xlu0 %v2402, 36
      %v2751 = vpop.permute.xlu0 %2750
      %2752 = vrot.lane.b32.xlu0 %v2403, 36
      %v2753 = vpop.permute.xlu0 %2752
      %2754 = vrot.lane.b32.xlu0 %v2404, 36
      %v2755 = vpop.permute.xlu0 %2754
      %2756 = vrot.lane.b32.xlu0 %v2405, 36
      %v2757 = vpop.permute.xlu0 %2756
      %2822 = vrot.lane.b32.xlu0 %v2662, 72
      %v2823 = vpop.permute.xlu0 %2822
      %2824 = vrot.lane.b32.xlu0 %v2663, 72
      %v2825 = vpop.permute.xlu0 %2824
      %2826 = vrot.lane.b32.xlu0 %v2664, 72
      %v2827 = vpop.permute.xlu0 %2826
      %2828 = vrot.lane.b32.xlu0 %v2665, 72
      %v2829 = vpop.permute.xlu0 %2828
      %2830 = vrot.lane.b32.xlu0 %v2666, 72
      %v2831 = vpop.permute.xlu0 %2830
      %2832 = vrot.lane.b32.xlu0 %v2667, 72
      %v2833 = vpop.permute.xlu0 %2832
      %2834 = vrot.lane.b32.xlu0 %v2668, 72
      %v2835 = vpop.permute.xlu0 %2834
      %2836 = vrot.lane.b32.xlu0 %v2669, 72
      %v2837 = vpop.permute.xlu0 %2836
      %2838 = vrot.lane.b32.xlu0 %v2670, 72
      %v2839 = vpop.permute.xlu0 %2838
      %2840 = vrot.lane.b32.xlu0 %v2671, 72
      %v2841 = vpop.permute.xlu0 %2840
      %2842 = vrot.lane.b32.xlu0 %v2672, 72
      %v2843 = vpop.permute.xlu0 %2842
      %2844 = vrot.lane.b32.xlu0 %v2673, 72
      %v2845 = vpop.permute.xlu0 %2844
      %2846 = vrot.lane.b32.xlu0 %v2674, 72
      %v2847 = vpop.permute.xlu0 %2846
      %2848 = vrot.lane.b32.xlu0 %v2675, 72
      %v2849 = vpop.permute.xlu0 %2848
      %2850 = vrot.lane.b32.xlu0 %v2676, 72
      %v2851 = vpop.permute.xlu0 %2850
      %2852 = vrot.lane.b32.xlu0 %v2677, 72
      %v2853 = vpop.permute.xlu0 %2852
      %2854 = vrot.lane.b32.xlu0 %v2678, 72
      %v2855 = vpop.permute.xlu0 %2854
      %2856 = vrot.lane.b32.xlu0 %v2679, 72
      %v2857 = vpop.permute.xlu0 %2856
      %2858 = vrot.lane.b32.xlu0 %v2680, 72
      %v2859 = vpop.permute.xlu0 %2858
      %2860 = vrot.lane.b32.xlu0 %v2681, 72
      %v2861 = vpop.permute.xlu0 %2860
      %2862 = vrot.lane.b32.xlu0 %v2682, 72
      %v2863 = vpop.permute.xlu0 %2862
      %2864 = vrot.lane.b32.xlu0 %v2683, 72
      %v2865 = vpop.permute.xlu0 %2864
      %2866 = vrot.lane.b32.xlu0 %v2684, 72
      %v2867 = vpop.permute.xlu0 %2866
      %2868 = vrot.lane.b32.xlu0 %v2685, 72
      %v2869 = vpop.permute.xlu0 %2868
      %2870 = vrot.lane.b32.xlu0 %v2686, 72
      %v2871 = vpop.permute.xlu0 %2870
      %2872 = vrot.lane.b32.xlu0 %v2687, 72
      %v2873 = vpop.permute.xlu0 %2872
      %2874 = vrot.lane.b32.xlu0 %v2688, 72
      %v2875 = vpop.permute.xlu0 %2874
      %2876 = vrot.lane.b32.xlu0 %v2689, 72
      %v2877 = vpop.permute.xlu0 %2876
      %2878 = vrot.lane.b32.xlu0 %v2690, 72
      %v2879 = vpop.permute.xlu0 %2878
      %2880 = vrot.lane.b32.xlu0 %v2691, 72
      %v2881 = vpop.permute.xlu0 %2880
      %2882 = vrot.lane.b32.xlu0 %v2692, 72
      %v2883 = vpop.permute.xlu0 %2882
      %2884 = vrot.lane.b32.xlu0 %v2693, 72
      %v2885 = vpop.permute.xlu0 %2884
      %v2918 = vsel %vm1401, %v2534, %v2695
      %v2919 = vsel %vm1401, %v2535, %v2697
      %v2920 = vsel %vm1401, %v2536, %v2699
      %v2921 = vsel %vm1401, %v2537, %v2701
      %v2922 = vsel %vm1401, %v2538, %v2703
      %v2923 = vsel %vm1401, %v2539, %v2705
      %v2924 = vsel %vm1401, %v2540, %v2707
      %v2925 = vsel %vm1401, %v2541, %v2709
      %v2926 = vsel %vm1401, %v2542, %v2711
      %v2927 = vsel %vm1401, %v2543, %v2713
      %v2928 = vsel %vm1401, %v2544, %v2715
      %v2929 = vsel %vm1401, %v2545, %v2717
      %v2930 = vsel %vm1401, %v2546, %v2719
      %v2931 = vsel %vm1401, %v2547, %v2721
      %v2932 = vsel %vm1401, %v2548, %v2723
      %v2933 = vsel %vm1401, %v2549, %v2725
      %v2934 = vsel %vm1401, %v2550, %v2727
      %v2935 = vsel %vm1401, %v2551, %v2729
      %v2936 = vsel %vm1401, %v2552, %v2731
      %v2937 = vsel %vm1401, %v2553, %v2733
      %v2938 = vsel %vm1401, %v2554, %v2735
      %v2939 = vsel %vm1401, %v2555, %v2737
      %v2940 = vsel %vm1401, %v2556, %v2739
      %v2941 = vsel %vm1401, %v2557, %v2741
      %v2942 = vsel %vm1401, %v2558, %v2743
      %v2943 = vsel %vm1401, %v2559, %v2745
      %v2944 = vsel %vm1401, %v2560, %v2747
      %v2945 = vsel %vm1401, %v2561, %v2749
      %v2946 = vsel %vm1401, %v2562, %v2751
      %v2947 = vsel %vm1401, %v2563, %v2753
      %v2948 = vsel %vm1401, %v2564, %v2755
      %v2949 = vsel %vm1401, %v2565, %v2757
      %v2950 = vsel %vm1434, %v2918, %v2823
      %v2951 = vsel %vm1434, %v2919, %v2825
      %v2952 = vsel %vm1434, %v2920, %v2827
      %v2953 = vsel %vm1434, %v2921, %v2829
      %v2954 = vsel %vm1434, %v2922, %v2831
      %v2955 = vsel %vm1434, %v2923, %v2833
      %v2956 = vsel %vm1434, %v2924, %v2835
      %v2957 = vsel %vm1434, %v2925, %v2837
      %v2958 = vsel %vm1434, %v2926, %v2839
      %v2959 = vsel %vm1434, %v2927, %v2841
      %v2960 = vsel %vm1434, %v2928, %v2843
      %v2961 = vsel %vm1434, %v2929, %v2845
      %v2962 = vsel %vm1434, %v2930, %v2847
      %v2963 = vsel %vm1434, %v2931, %v2849
      %v2964 = vsel %vm1434, %v2932, %v2851
      %v2965 = vsel %vm1434, %v2933, %v2853
      %v2966 = vsel %vm1434, %v2934, %v2855
      %v2967 = vsel %vm1434, %v2935, %v2857
      %v2968 = vsel %vm1434, %v2936, %v2859
      %v2969 = vsel %vm1434, %v2937, %v2861
      %v2970 = vsel %vm1434, %v2938, %v2863
      %v2971 = vsel %vm1434, %v2939, %v2865
      %v2972 = vsel %vm1434, %v2940, %v2867
      %v2973 = vsel %vm1434, %v2941, %v2869
      %v2974 = vsel %vm1434, %v2942, %v2871
      %v2975 = vsel %vm1434, %v2943, %v2873
      %v2976 = vsel %vm1434, %v2944, %v2875
      %v2977 = vsel %vm1434, %v2945, %v2877
      %v2978 = vsel %vm1434, %v2946, %v2879
      %v2979 = vsel %vm1434, %v2947, %v2881
      %v2980 = vsel %vm1434, %v2948, %v2883
      %v2981 = vsel %vm1434, %v2949, %v2885
      %v2982 = vpack.c.bf16 %v2950, %v2950
      %v2983 = vpack.c.bf16 %v2951, %v2951
      %v2984 = vpack.c.bf16 %v2952, %v2952
      %v2985 = vpack.c.bf16 %v2953, %v2953
      %v2986 = vpack.c.bf16 %v2954, %v2954
      %v2987 = vpack.c.bf16 %v2955, %v2955
      %v2988 = vpack.c.bf16 %v2956, %v2956
      %v2989 = vpack.c.bf16 %v2957, %v2957
      %v2990 = vpack.c.bf16 %v2958, %v2958
      %v2991 = vpack.c.bf16 %v2959, %v2959
      %v2992 = vpack.c.bf16 %v2960, %v2960
      %v2993 = vpack.c.bf16 %v2961, %v2961
      %v2994 = vpack.c.bf16 %v2962, %v2962
      %v2995 = vpack.c.bf16 %v2963, %v2963
      %v2996 = vpack.c.bf16 %v2964, %v2964
      %v2997 = vpack.c.bf16 %v2965, %v2965
      %v2998 = vpack.c.bf16 %v2966, %v2966
      %v2999 = vpack.c.bf16 %v2967, %v2967
      %v3000 = vpack.c.bf16 %v2968, %v2968
      %v3001 = vpack.c.bf16 %v2969, %v2969
      %v3002 = vpack.c.bf16 %v2970, %v2970
      %v3003 = vpack.c.bf16 %v2971, %v2971
      %v3004 = vpack.c.bf16 %v2972, %v2972
      %v3005 = vpack.c.bf16 %v2973, %v2973
      %v3006 = vpack.c.bf16 %v2974, %v2974
      %v3007 = vpack.c.bf16 %v2975, %v2975
      %v3008 = vpack.c.bf16 %v2976, %v2976
      %v3009 = vpack.c.bf16 %v2977, %v2977
      %v3010 = vpack.c.bf16 %v2978, %v2978
      %v3011 = vpack.c.bf16 %v2979, %v2979
      %v3012 = vpack.c.bf16 %v2980, %v2980
      %v3013 = vpack.c.bf16 %v2981, %v2981
      %3014 = vst.msk [vmem:[#allocation2 + $0x8] sm:$0xf] %vm307, %v2982
      %3015 = vst.msk [vmem:[#allocation2 + $0xc] sm:$0xf] %vm307, %v2983
      %3016 = vst.msk [vmem:[#allocation2 + $0x10] sm:$0xf] %vm307, %v2984
      %3017 = vst.msk [vmem:[#allocation2 + $0x14] sm:$0xf] %vm307, %v2985
      %3018 = vst.msk [vmem:[#allocation2 + $0x18] sm:$0xf] %vm307, %v2986
      %3019 = vst.msk [vmem:[#allocation2 + $0x1c] sm:$0xf] %vm307, %v2987
      %3020 = vst.msk [vmem:[#allocation2 + $0x20] sm:$0xf] %vm307, %v2988
      %3021 = vst.msk [vmem:[#allocation2 + $0x24] sm:$0xf] %vm307, %v2989
      %3022 = vst.msk [vmem:[#allocation2 + $0x28] sm:$0xf] %vm307, %v2990
      %3023 = vst.msk [vmem:[#allocation2 + $0x2c] sm:$0xf] %vm307, %v2991
      %3024 = vst.msk [vmem:[#allocation2 + $0x30] sm:$0xf] %vm307, %v2992
      %3025 = vst.msk [vmem:[#allocation2 + $0x34] sm:$0xf] %vm307, %v2993
      %3026 = vst.msk [vmem:[#allocation2 + $0x38] sm:$0xf] %vm307, %v2994
      %3027 = vst.msk [vmem:[#allocation2 + $0x3c] sm:$0xf] %vm307, %v2995
      %3028 = vst.msk [vmem:[#allocation2 + $0x40] sm:$0xf] %vm307, %v2996
      %3029 = vst.msk [vmem:[#allocation2 + $0x44] sm:$0xf] %vm307, %v2997
      %3030 = vst.msk [vmem:[#allocation2 + $0x48] sm:$0xf] %vm307, %v2998
      %3031 = vst.msk [vmem:[#allocation2 + $0x4c] sm:$0xf] %vm307, %v2999
      %3032 = vst.msk [vmem:[#allocation2 + $0x50] sm:$0xf] %vm307, %v3000
      %3033 = vst.msk [vmem:[#allocation2 + $0x54] sm:$0xf] %vm307, %v3001
      %3034 = vst.msk [vmem:[#allocation2 + $0x58] sm:$0xf] %vm307, %v3002
      %3035 = vst.msk [vmem:[#allocation2 + $0x5c] sm:$0xf] %vm307, %v3003
      %3036 = vst.msk [vmem:[#allocation2 + $0x60] sm:$0xf] %vm307, %v3004
      %3037 = vst.msk [vmem:[#allocation2 + $0x64] sm:$0xf] %vm307, %v3005
      %3038 = vst.msk [vmem:[#allocation2 + $0x68] sm:$0xf] %vm307, %v3006
      %3039 = vst.msk [vmem:[#allocation2 + $0x6c] sm:$0xf] %vm307, %v3007
      %3040 = vst.msk [vmem:[#allocation2 + $0x70] sm:$0xf] %vm307, %v3008
      %3041 = vst.msk [vmem:[#allocation2 + $0x74] sm:$0xf] %vm307, %v3009
      %3042 = vst.msk [vmem:[#allocation2 + $0x78] sm:$0xf] %vm307, %v3010
      %3043 = vst.msk [vmem:[#allocation2 + $0x7c] sm:$0xf] %vm307, %v3011
      %3044 = vst.msk [vmem:[#allocation2 + $0x80] sm:$0xf] %vm307, %v3012
      %3045 = vst.msk [vmem:[#allocation2 + $0x84] sm:$0xf] %vm307, %v3013
      %v3046 = vld [vmem:[#allocation2] sm:$0xf]
      %v3047 = vld [vmem:[#allocation2 + $0x4] sm:$0xf]
      %v3048 = vld [vmem:[#allocation2 + $0x8] sm:$0xf]
      %v3049 = vld [vmem:[#allocation2 + $0xc] sm:$0xf]
      %v3050 = vld [vmem:[#allocation2 + $0x10] sm:$0xf]
      %v3051 = vld [vmem:[#allocation2 + $0x14] sm:$0xf]
      %v3052 = vld [vmem:[#allocation2 + $0x18] sm:$0xf]
      %v3053 = vld [vmem:[#allocation2 + $0x1c] sm:$0xf]
      %v3054 = vld [vmem:[#allocation2 + $0x20] sm:$0xf]
      %v3055 = vld [vmem:[#allocation2 + $0x24] sm:$0xf]
      %v3056 = vld [vmem:[#allocation2 + $0x28] sm:$0xf]
      %v3057 = vld [vmem:[#allocation2 + $0x2c] sm:$0xf]
      %v3058 = vld [vmem:[#allocation2 + $0x30] sm:$0xf]
      %v3059 = vld [vmem:[#allocation2 + $0x34] sm:$0xf]
      %v3060 = vld [vmem:[#allocation2 + $0x38] sm:$0xf]
      %v3061 = vld [vmem:[#allocation2 + $0x3c] sm:$0xf]
      %v3062 = vld [vmem:[#allocation2 + $0x40] sm:$0xf]
      %v3063 = vld [vmem:[#allocation2 + $0x44] sm:$0xf]
      %v3064 = vld [vmem:[#allocation2 + $0x48] sm:$0xf]
      %v3065 = vld [vmem:[#allocation2 + $0x4c] sm:$0xf]
      %v3066 = vld [vmem:[#allocation2 + $0x50] sm:$0xf]
      %v3067 = vld [vmem:[#allocation2 + $0x54] sm:$0xf]
      %v3068 = vld [vmem:[#allocation2 + $0x58] sm:$0xf]
      %v3069 = vld [vmem:[#allocation2 + $0x5c] sm:$0xf]
      %v3070 = vld [vmem:[#allocation2 + $0x60] sm:$0xf]
      %v3071 = vld [vmem:[#allocation2 + $0x64] sm:$0xf]
      %v3072 = vld [vmem:[#allocation2 + $0x68] sm:$0xf]
      %v3073 = vld [vmem:[#allocation2 + $0x6c] sm:$0xf]
      %v3074 = vld [vmem:[#allocation2 + $0x70] sm:$0xf]
      %v3075 = vld [vmem:[#allocation2 + $0x74] sm:$0xf]
      %v3076 = vld [vmem:[#allocation2 + $0x78] sm:$0xf]
      %v3077 = vld [vmem:[#allocation2 + $0x7c] sm:$0xf]
      %v3078 = vld [vmem:[%s5] sm:$0xf]
      %v3079 = vld [vmem:[%s5 + $0x4] sm:$0xf]
      %v3080 = vld [vmem:[%s5 + $0x8] sm:$0xf]
      %v3081 = vld [vmem:[%s5 + $0xc] sm:$0xf]
      %v3082 = vld [vmem:[%s5 + $0x10] sm:$0xf]
      %v3083 = vld [vmem:[%s5 + $0x14] sm:$0xf]
      %v3084 = vld [vmem:[%s5 + $0x18] sm:$0xf]
      %v3085 = vld [vmem:[%s5 + $0x1c] sm:$0xf]
      %v3086 = vld [vmem:[%s5 + $0x20] sm:$0xf]
      %v3087 = vld [vmem:[%s5 + $0x24] sm:$0xf]
      %v3088 = vld [vmem:[%s5 + $0x28] sm:$0xf]
      %v3089 = vld [vmem:[%s5 + $0x2c] sm:$0xf]
      %v3090 = vld [vmem:[%s5 + $0x30] sm:$0xf]
      %v3091 = vld [vmem:[%s5 + $0x34] sm:$0x3]
      %v3092 = vld [vmem:[#allocation2 + $0x80] sm:$0xf]
      %v3093 = vld [vmem:[#allocation2 + $0x84] sm:$0xf]
      %s3094 = scalar_lea.vmem %s5, 56
      %v3095 = vld [vmem:[%s3094] sm:$0xf]
      %v3096 = vld [vmem:[%s3094 + $0x4] sm:$0xf]
      %v3097 = vld [vmem:[%s3094 + $0x8] sm:$0xf]
      %v3098 = vld [vmem:[%s3094 + $0xc] sm:$0xf]
      %v3099 = vld [vmem:[%s3094 + $0x10] sm:$0xf]
      %v3100 = vld [vmem:[%s3094 + $0x14] sm:$0xf]
      %v3101 = vld [vmem:[%s3094 + $0x18] sm:$0xf]
      %v3102 = vld [vmem:[%s3094 + $0x1c] sm:$0xf]
      %v3103 = vld [vmem:[%s3094 + $0x20] sm:$0xf]
      %v3104 = vld [vmem:[%s3094 + $0x24] sm:$0xf]
      %v3105 = vld [vmem:[%s3094 + $0x28] sm:$0xf]
      %v3106 = vld [vmem:[%s3094 + $0x2c] sm:$0xf]
      %v3107 = vld [vmem:[%s3094 + $0x30] sm:$0xf]
      %v3108 = vld [vmem:[%s3094 + $0x34] sm:$0x3]
      %v3141 = vunpack.c.l.b16 %v3048
      %v3142 = vunpack.c.l.b16 %v3049
      %v3143 = vunpack.c.l.b16 %v3050
      %v3144 = vunpack.c.l.b16 %v3051
      %v3145 = vunpack.c.l.b16 %v3052
      %v3146 = vunpack.c.l.b16 %v3053
      %v3147 = vunpack.c.l.b16 %v3054
      %v3148 = vunpack.c.l.b16 %v3055
      %v3149 = vunpack.c.l.b16 %v3056
      %v3150 = vunpack.c.l.b16 %v3057
      %v3151 = vunpack.c.l.b16 %v3058
      %v3152 = vunpack.c.l.b16 %v3059
      %v3153 = vunpack.c.l.b16 %v3060
      %v3154 = vunpack.c.l.b16 %v3061
      %v3155 = vunpack.c.l.b16 %v3062
      %v3156 = vunpack.c.l.b16 %v3063
      %v3157 = vunpack.c.l.b16 %v3064
      %v3158 = vunpack.c.l.b16 %v3065
      %v3159 = vunpack.c.l.b16 %v3066
      %v3160 = vunpack.c.l.b16 %v3067
      %v3161 = vunpack.c.l.b16 %v3068
      %v3162 = vunpack.c.l.b16 %v3069
      %v3163 = vunpack.c.l.b16 %v3070
      %v3164 = vunpack.c.l.b16 %v3071
      %v3165 = vunpack.c.l.b16 %v3072
      %v3166 = vunpack.c.l.b16 %v3073
      %v3167 = vunpack.c.l.b16 %v3074
      %v3168 = vunpack.c.l.b16 %v3075
      %v3169 = vunpack.c.l.b16 %v3076
      %v3170 = vunpack.c.l.b16 %v3077
      %v3171 = vunpack.c.l.b16 %v3092
      %v3172 = vunpack.c.l.b16 %v3093
      %v3173 = vpack.c.b16 %v3142, %v3141
      %v3174 = vpack.c.b16 %v3144, %v3143
      %v3175 = vpack.c.b16 %v3146, %v3145
      %v3176 = vpack.c.b16 %v3148, %v3147
      %v3177 = vpack.c.b16 %v3150, %v3149
      %v3178 = vpack.c.b16 %v3152, %v3151
      %v3179 = vpack.c.b16 %v3154, %v3153
      %v3180 = vpack.c.b16 %v3156, %v3155
      %v3181 = vpack.c.b16 %v3158, %v3157
      %v3182 = vpack.c.b16 %v3160, %v3159
      %v3183 = vpack.c.b16 %v3162, %v3161
      %v3184 = vpack.c.b16 %v3164, %v3163
      %v3185 = vpack.c.b16 %v3166, %v3165
      %v3186 = vpack.c.b16 %v3168, %v3167
      %v3187 = vpack.c.b16 %v3170, %v3169
      %v3188 = vpack.c.b16 %v3172, %v3171
      %v3203 = vunpack.c.l.b16 %v3095
      %v3204 = vunpack.c.l.b16 %v3096
      %v3205 = vunpack.c.l.b16 %v3097
      %v3206 = vunpack.c.l.b16 %v3098
      %v3207 = vunpack.c.l.b16 %v3099
      %v3208 = vunpack.c.l.b16 %v3100
      %v3209 = vunpack.c.l.b16 %v3101
      %v3210 = vunpack.c.l.b16 %v3102
      %v3211 = vunpack.c.l.b16 %v3103
      %v3212 = vunpack.c.l.b16 %v3104
      %v3213 = vunpack.c.l.b16 %v3105
      %v3214 = vunpack.c.l.b16 %v3106
      %v3215 = vunpack.c.l.b16 %v3107
      %v3216 = vunpack.c.l.b16 %v3108
      %v3217 = vpack.c.b16 %v3204, %v3203
      %v3218 = vpack.c.b16 %v3206, %v3205
      %v3219 = vpack.c.b16 %v3208, %v3207
      %v3220 = vpack.c.b16 %v3210, %v3209
      %v3221 = vpack.c.b16 %v3212, %v3211
      %v3222 = vpack.c.b16 %v3214, %v3213
      %v3223 = vpack.c.b16 %v3216, %v3215
      %v3231 = vsel %vm1715, %v3173, 0
      %v3234 = vsel %vm1715, %v3174, 0
      %v3237 = vsel %vm1715, %v3175, 0
      %v3240 = vsel %vm1715, %v3176, 0
      %v3243 = vsel %vm1715, %v3177, 0
      %v3246 = vsel %vm1715, %v3178, 0
      %v3249 = vsel %vm1715, %v3179, 0
      %v3252 = vsel %vm1715, %v3180, 0
      %v3255 = vsel %vm1715, %v3181, 0
      %v3258 = vsel %vm1715, %v3182, 0
      %v3261 = vsel %vm1715, %v3183, 0
      %v3264 = vsel %vm1715, %v3184, 0
      %v3267 = vsel %vm1715, %v3185, 0
      %v3270 = vsel %vm1715, %v3186, 0
      %v3273 = vsel %vm1715, %v3187, 0
      %v3276 = vsel %vm1715, %v3188, 0
      %v3279 = vsel %vm1764, %v3223, 0
      %3281 = vmatpush.bf16.msra.mxu0 0
      %3282 = vmatpush.bf16.msra.mxu0 %v3279
      %3283 = vmatpush.bf16.msra.mxu0 %v3222
      %3284 = vmatpush.bf16.msra.mxu0 %v3221
      %3285 = vmatpush.bf16.msra.mxu0 %v3220
      %3286 = vmatpush.bf16.msra.mxu0 %v3219
      %3287 = vmatpush.bf16.msra.mxu0 %v3218
      %3288 = vmatpush.bf16.msra.mxu0 %v3217
      %3289 = vmatmul.bf16.gmra.mxu0 %v3231
      %v3290 = vpop.f32.mrf.mxu0
      %v3291 = vadd.f32 0.0, %v3290
      %v3292 = vpop.f32.mrf.mxu0
      %v3293 = vadd.f32 0.0, %v3292
      %3294 = vmatmul.bf16.gmra.mxu0 %v3234
      %v3295 = vpop.f32.mrf.mxu0
      %v3296 = vadd.f32 0.0, %v3295
      %v3297 = vpop.f32.mrf.mxu0
      %v3298 = vadd.f32 0.0, %v3297
      %3299 = vmatmul.bf16.gmra.mxu0 %v3237
      %v3300 = vpop.f32.mrf.mxu0
      %v3301 = vadd.f32 0.0, %v3300
      %v3302 = vpop.f32.mrf.mxu0
      %v3303 = vadd.f32 0.0, %v3302
      %3304 = vmatmul.bf16.gmra.mxu0 %v3240
      %v3305 = vpop.f32.mrf.mxu0
      %v3306 = vadd.f32 0.0, %v3305
      %v3307 = vpop.f32.mrf.mxu0
      %v3308 = vadd.f32 0.0, %v3307
      %3309 = vmatmul.bf16.gmra.mxu0 %v3243
      %v3310 = vpop.f32.mrf.mxu0
      %v3311 = vadd.f32 0.0, %v3310
      %v3312 = vpop.f32.mrf.mxu0
      %v3313 = vadd.f32 0.0, %v3312
      %3314 = vmatmul.bf16.gmra.mxu0 %v3246
      %v3315 = vpop.f32.mrf.mxu0
      %v3316 = vadd.f32 0.0, %v3315
      %v3317 = vpop.f32.mrf.mxu0
      %v3318 = vadd.f32 0.0, %v3317
      %3319 = vmatmul.bf16.gmra.mxu0 %v3249
      %v3320 = vpop.f32.mrf.mxu0
      %v3321 = vadd.f32 0.0, %v3320
      %v3322 = vpop.f32.mrf.mxu0
      %v3323 = vadd.f32 0.0, %v3322
      %3324 = vmatmul.bf16.gmra.mxu0 %v3252
      %v3325 = vpop.f32.mrf.mxu0
      %v3326 = vadd.f32 0.0, %v3325
      %v3327 = vpop.f32.mrf.mxu0
      %v3328 = vadd.f32 0.0, %v3327
      %3329 = vmatmul.bf16.gmra.mxu0 %v3255
      %v3330 = vpop.f32.mrf.mxu0
      %v3331 = vadd.f32 0.0, %v3330
      %v3332 = vpop.f32.mrf.mxu0
      %v3333 = vadd.f32 0.0, %v3332
      %3334 = vmatmul.bf16.gmra.mxu0 %v3258
      %v3335 = vpop.f32.mrf.mxu0
      %v3336 = vadd.f32 0.0, %v3335
      %v3337 = vpop.f32.mrf.mxu0
      %v3338 = vadd.f32 0.0, %v3337
      %3339 = vmatmul.bf16.gmra.mxu0 %v3261
      %v3340 = vpop.f32.mrf.mxu0
      %v3341 = vadd.f32 0.0, %v3340
      %v3342 = vpop.f32.mrf.mxu0
      %v3343 = vadd.f32 0.0, %v3342
      %3344 = vmatmul.bf16.gmra.mxu0 %v3264
      %v3345 = vpop.f32.mrf.mxu0
      %v3346 = vadd.f32 0.0, %v3345
      %v3347 = vpop.f32.mrf.mxu0
      %v3348 = vadd.f32 0.0, %v3347
      %3349 = vmatmul.bf16.gmra.mxu0 %v3267
      %v3350 = vpop.f32.mrf.mxu0
      %v3351 = vadd.f32 0.0, %v3350
      %v3352 = vpop.f32.mrf.mxu0
      %v3353 = vadd.f32 0.0, %v3352
      %3354 = vmatmul.bf16.gmra.mxu0 %v3270
      %v3355 = vpop.f32.mrf.mxu0
      %v3356 = vadd.f32 0.0, %v3355
      %v3357 = vpop.f32.mrf.mxu0
      %v3358 = vadd.f32 0.0, %v3357
      %3359 = vmatmul.bf16.gmra.mxu0 %v3273
      %v3360 = vpop.f32.mrf.mxu0
      %v3361 = vadd.f32 0.0, %v3360
      %v3362 = vpop.f32.mrf.mxu0
      %v3363 = vadd.f32 0.0, %v3362
      %3364 = vmatmul.bf16.gmra.mxu0 %v3276
      %v3365 = vpop.f32.mrf.mxu0
      %v3366 = vadd.f32 0.0, %v3365
      %v3367 = vpop.f32.mrf.mxu0
      %v3368 = vadd.f32 0.0, %v3367
      %3369 = vdwg.mxu0
      %v3372 = vunpack.c.l.b16 %v3046
      %v3373 = vunpack.c.l.b16 %v3047
      %v3374 = vpack.c.b16 %v3373, %v3372
      %v3389 = vunpack.c.l.b16 %v3078
      %v3390 = vunpack.c.l.b16 %v3079
      %v3391 = vunpack.c.l.b16 %v3080
      %v3392 = vunpack.c.l.b16 %v3081
      %v3393 = vunpack.c.l.b16 %v3082
      %v3394 = vunpack.c.l.b16 %v3083
      %v3395 = vunpack.c.l.b16 %v3084
      %v3396 = vunpack.c.l.b16 %v3085
      %v3397 = vunpack.c.l.b16 %v3086
      %v3398 = vunpack.c.l.b16 %v3087
      %v3399 = vunpack.c.l.b16 %v3088
      %v3400 = vunpack.c.l.b16 %v3089
      %v3401 = vunpack.c.l.b16 %v3090
      %v3402 = vunpack.c.l.b16 %v3091
      %v3403 = vpack.c.b16 %v3390, %v3389
      %v3404 = vpack.c.b16 %v3392, %v3391
      %v3405 = vpack.c.b16 %v3394, %v3393
      %v3406 = vpack.c.b16 %v3396, %v3395
      %v3407 = vpack.c.b16 %v3398, %v3397
      %v3408 = vpack.c.b16 %v3400, %v3399
      %v3409 = vpack.c.b16 %v3402, %v3401
      %v3417 = vsel %vm1715, %v3374, 0
      %v3420 = vsel %vm1764, %v3409, 0
      %3422 = vmatpush.bf16.msra.mxu0 0
      %3423 = vmatpush.bf16.msra.mxu0 %v3420
      %3424 = vmatpush.bf16.msra.mxu0 %v3408
      %3425 = vmatpush.bf16.msra.mxu0 %v3407
      %3426 = vmatpush.bf16.msra.mxu0 %v3406
      %3427 = vmatpush.bf16.msra.mxu0 %v3405
      %3428 = vmatpush.bf16.msra.mxu0 %v3404
      %3429 = vmatpush.bf16.msra.mxu0 %v3403
      %3430 = vmatmul.bf16.gmra.mxu0 %v3417
      %v3431 = vpop.f32.mrf.mxu0
      %v3432 = vadd.f32 %v3291, %v3431
      %v3433 = vpop.f32.mrf.mxu0
      %v3434 = vadd.f32 %v3293, %v3433
      %3435 = vmatmul.bf16.gmra.mxu0 %v3231
      %v3436 = vpop.f32.mrf.mxu0
      %v3437 = vadd.f32 %v3296, %v3436
      %v3438 = vpop.f32.mrf.mxu0
      %v3439 = vadd.f32 %v3298, %v3438
      %3440 = vmatmul.bf16.gmra.mxu0 %v3234
      %v3441 = vpop.f32.mrf.mxu0
      %v3442 = vadd.f32 %v3301, %v3441
      %v3443 = vpop.f32.mrf.mxu0
      %v3444 = vadd.f32 %v3303, %v3443
      %3445 = vmatmul.bf16.gmra.mxu0 %v3237
      %v3446 = vpop.f32.mrf.mxu0
      %v3447 = vadd.f32 %v3306, %v3446
      %v3448 = vpop.f32.mrf.mxu0
      %v3449 = vadd.f32 %v3308, %v3448
      %3450 = vmatmul.bf16.gmra.mxu0 %v3240
      %v3451 = vpop.f32.mrf.mxu0
      %v3452 = vadd.f32 %v3311, %v3451
      %v3453 = vpop.f32.mrf.mxu0
      %v3454 = vadd.f32 %v3313, %v3453
      %3455 = vmatmul.bf16.gmra.mxu0 %v3243
      %v3456 = vpop.f32.mrf.mxu0
      %v3457 = vadd.f32 %v3316, %v3456
      %v3458 = vpop.f32.mrf.mxu0
      %v3459 = vadd.f32 %v3318, %v3458
      %3460 = vmatmul.bf16.gmra.mxu0 %v3246
      %v3461 = vpop.f32.mrf.mxu0
      %v3462 = vadd.f32 %v3321, %v3461
      %v3463 = vpop.f32.mrf.mxu0
      %v3464 = vadd.f32 %v3323, %v3463
      %3465 = vmatmul.bf16.gmra.mxu0 %v3249
      %v3466 = vpop.f32.mrf.mxu0
      %v3467 = vadd.f32 %v3326, %v3466
      %v3468 = vpop.f32.mrf.mxu0
      %v3469 = vadd.f32 %v3328, %v3468
      %3470 = vmatmul.bf16.gmra.mxu0 %v3252
      %v3471 = vpop.f32.mrf.mxu0
      %v3472 = vadd.f32 %v3331, %v3471
      %v3473 = vpop.f32.mrf.mxu0
      %v3474 = vadd.f32 %v3333, %v3473
      %3475 = vmatmul.bf16.gmra.mxu0 %v3255
      %v3476 = vpop.f32.mrf.mxu0
      %v3477 = vadd.f32 %v3336, %v3476
      %v3478 = vpop.f32.mrf.mxu0
      %v3479 = vadd.f32 %v3338, %v3478
      %3480 = vmatmul.bf16.gmra.mxu0 %v3258
      %v3481 = vpop.f32.mrf.mxu0
      %v3482 = vadd.f32 %v3341, %v3481
      %v3483 = vpop.f32.mrf.mxu0
      %v3484 = vadd.f32 %v3343, %v3483
      %3485 = vmatmul.bf16.gmra.mxu0 %v3261
      %v3486 = vpop.f32.mrf.mxu0
      %v3487 = vadd.f32 %v3346, %v3486
      %v3488 = vpop.f32.mrf.mxu0
      %v3489 = vadd.f32 %v3348, %v3488
      %3490 = vmatmul.bf16.gmra.mxu0 %v3264
      %v3491 = vpop.f32.mrf.mxu0
      %v3492 = vadd.f32 %v3351, %v3491
      %v3493 = vpop.f32.mrf.mxu0
      %v3494 = vadd.f32 %v3353, %v3493
      %3495 = vmatmul.bf16.gmra.mxu0 %v3267
      %v3496 = vpop.f32.mrf.mxu0
      %v3497 = vadd.f32 %v3356, %v3496
      %v3498 = vpop.f32.mrf.mxu0
      %v3499 = vadd.f32 %v3358, %v3498
      %3500 = vmatmul.bf16.gmra.mxu0 %v3270
      %v3501 = vpop.f32.mrf.mxu0
      %v3502 = vadd.f32 %v3361, %v3501
      %v3503 = vpop.f32.mrf.mxu0
      %v3504 = vadd.f32 %v3363, %v3503
      %3505 = vmatmul.bf16.gmra.mxu0 %v3273
      %v3506 = vpop.f32.mrf.mxu0
      %v3507 = vadd.f32 %v3366, %v3506
      %v3508 = vpop.f32.mrf.mxu0
      %v3509 = vadd.f32 %v3368, %v3508
      %3510 = vdwg.mxu0
      %v3511 = vld [vmem:[#allocation2 + $0x10] sm:$0xf]
      %v3512 = vld [vmem:[#allocation2 + $0x14] sm:$0xf]
      %v3513 = vld [vmem:[#allocation2 + $0x18] sm:$0xf]
      %v3514 = vld [vmem:[#allocation2 + $0x1c] sm:$0xf]
      %v3515 = vld [vmem:[#allocation2 + $0x20] sm:$0xf]
      %v3516 = vld [vmem:[#allocation2 + $0x24] sm:$0xf]
      %v3517 = vld [vmem:[#allocation2 + $0x28] sm:$0xf]
      %v3518 = vld [vmem:[#allocation2 + $0x2c] sm:$0xf]
      %v3519 = vld [vmem:[#allocation2 + $0x30] sm:$0xf]
      %v3520 = vld [vmem:[#allocation2 + $0x34] sm:$0xf]
      %v3521 = vld [vmem:[#allocation2 + $0x38] sm:$0xf]
      %v3522 = vld [vmem:[#allocation2 + $0x3c] sm:$0xf]
      %v3523 = vld [vmem:[#allocation2 + $0x40] sm:$0xf]
      %v3524 = vld [vmem:[#allocation2 + $0x44] sm:$0xf]
      %v3525 = vld [vmem:[#allocation2 + $0x48] sm:$0xf]
      %v3526 = vld [vmem:[#allocation2 + $0x4c] sm:$0xf]
      %v3527 = vld [vmem:[#allocation2 + $0x50] sm:$0xf]
      %v3528 = vld [vmem:[#allocation2 + $0x54] sm:$0xf]
      %v3529 = vld [vmem:[#allocation2 + $0x58] sm:$0xf]
      %v3530 = vld [vmem:[#allocation2 + $0x5c] sm:$0xf]
      %v3531 = vld [vmem:[#allocation2 + $0x60] sm:$0xf]
      %v3532 = vld [vmem:[#allocation2 + $0x64] sm:$0xf]
      %v3533 = vld [vmem:[#allocation2 + $0x68] sm:$0xf]
      %v3534 = vld [vmem:[#allocation2 + $0x6c] sm:$0xf]
      %v3535 = vld [vmem:[#allocation2 + $0x70] sm:$0xf]
      %v3536 = vld [vmem:[#allocation2 + $0x74] sm:$0xf]
      %v3537 = vld [vmem:[#allocation2 + $0x78] sm:$0xf]
      %v3538 = vld [vmem:[#allocation2 + $0x7c] sm:$0xf]
      %v3539 = vld [vmem:[#allocation2 + $0x80] sm:$0xf]
      %v3540 = vld [vmem:[#allocation2 + $0x84] sm:$0xf]
      %v3541 = vld [vmem:[#allocation2 + $0x88] sm:$0xf]
      %v3542 = vld [vmem:[#allocation2 + $0x8c] sm:$0xf]
      %s3543 = scalar_lea.vmem %s5, 112
      %v3544 = vld [vmem:[%s3543] sm:$0xf]
      %v3545 = vld [vmem:[%s3543 + $0x4] sm:$0xf]
      %v3546 = vld [vmem:[%s3543 + $0x8] sm:$0xf]
      %v3547 = vld [vmem:[%s3543 + $0xc] sm:$0xf]
      %v3548 = vld [vmem:[%s3543 + $0x10] sm:$0xf]
      %v3549 = vld [vmem:[%s3543 + $0x14] sm:$0xf]
      %v3550 = vld [vmem:[%s3543 + $0x18] sm:$0xf]
      %v3551 = vld [vmem:[%s3543 + $0x1c] sm:$0xf]
      %v3552 = vld [vmem:[%s3543 + $0x20] sm:$0xf]
      %v3553 = vld [vmem:[%s3543 + $0x24] sm:$0xf]
      %v3554 = vld [vmem:[%s3543 + $0x28] sm:$0xf]
      %v3555 = vld [vmem:[%s3543 + $0x2c] sm:$0xf]
      %v3556 = vld [vmem:[%s3543 + $0x30] sm:$0xf]
      %v3557 = vld [vmem:[%s3543 + $0x34] sm:$0x3]
      %v3590 = vunpack.c.l.b16 %v3511
      %v3591 = vunpack.c.l.b16 %v3512
      %v3592 = vunpack.c.l.b16 %v3513
      %v3593 = vunpack.c.l.b16 %v3514
      %v3594 = vunpack.c.l.b16 %v3515
      %v3595 = vunpack.c.l.b16 %v3516
      %v3596 = vunpack.c.l.b16 %v3517
      %v3597 = vunpack.c.l.b16 %v3518
      %v3598 = vunpack.c.l.b16 %v3519
      %v3599 = vunpack.c.l.b16 %v3520
      %v3600 = vunpack.c.l.b16 %v3521
      %v3601 = vunpack.c.l.b16 %v3522
      %v3602 = vunpack.c.l.b16 %v3523
      %v3603 = vunpack.c.l.b16 %v3524
      %v3604 = vunpack.c.l.b16 %v3525
      %v3605 = vunpack.c.l.b16 %v3526
      %v3606 = vunpack.c.l.b16 %v3527
      %v3607 = vunpack.c.l.b16 %v3528
      %v3608 = vunpack.c.l.b16 %v3529
      %v3609 = vunpack.c.l.b16 %v3530
      %v3610 = vunpack.c.l.b16 %v3531
      %v3611 = vunpack.c.l.b16 %v3532
      %v3612 = vunpack.c.l.b16 %v3533
      %v3613 = vunpack.c.l.b16 %v3534
      %v3614 = vunpack.c.l.b16 %v3535
      %v3615 = vunpack.c.l.b16 %v3536
      %v3616 = vunpack.c.l.b16 %v3537
      %v3617 = vunpack.c.l.b16 %v3538
      %v3618 = vunpack.c.l.b16 %v3539
      %v3619 = vunpack.c.l.b16 %v3540
      %v3620 = vunpack.c.l.b16 %v3541
      %v3621 = vunpack.c.l.b16 %v3542
      %v3622 = vpack.c.b16 %v3591, %v3590
      %v3623 = vpack.c.b16 %v3593, %v3592
      %v3624 = vpack.c.b16 %v3595, %v3594
      %v3625 = vpack.c.b16 %v3597, %v3596
      %v3626 = vpack.c.b16 %v3599, %v3598
      %v3627 = vpack.c.b16 %v3601, %v3600
      %v3628 = vpack.c.b16 %v3603, %v3602
      %v3629 = vpack.c.b16 %v3605, %v3604
      %v3630 = vpack.c.b16 %v3607, %v3606
      %v3631 = vpack.c.b16 %v3609, %v3608
      %v3632 = vpack.c.b16 %v3611, %v3610
      %v3633 = vpack.c.b16 %v3613, %v3612
      %v3634 = vpack.c.b16 %v3615, %v3614
      %v3635 = vpack.c.b16 %v3617, %v3616
      %v3636 = vpack.c.b16 %v3619, %v3618
      %v3637 = vpack.c.b16 %v3621, %v3620
      %v3652 = vunpack.c.l.b16 %v3544
      %v3653 = vunpack.c.l.b16 %v3545
      %v3654 = vunpack.c.l.b16 %v3546
      %v3655 = vunpack.c.l.b16 %v3547
      %v3656 = vunpack.c.l.b16 %v3548
      %v3657 = vunpack.c.l.b16 %v3549
      %v3658 = vunpack.c.l.b16 %v3550
      %v3659 = vunpack.c.l.b16 %v3551
      %v3660 = vunpack.c.l.b16 %v3552
      %v3661 = vunpack.c.l.b16 %v3553
      %v3662 = vunpack.c.l.b16 %v3554
      %v3663 = vunpack.c.l.b16 %v3555
      %v3664 = vunpack.c.l.b16 %v3556
      %v3665 = vunpack.c.l.b16 %v3557
      %v3666 = vpack.c.b16 %v3653, %v3652
      %v3667 = vpack.c.b16 %v3655, %v3654
      %v3668 = vpack.c.b16 %v3657, %v3656
      %v3669 = vpack.c.b16 %v3659, %v3658
      %v3670 = vpack.c.b16 %v3661, %v3660
      %v3671 = vpack.c.b16 %v3663, %v3662
      %v3672 = vpack.c.b16 %v3665, %v3664
      %v3680 = vsel %vm1715, %v3622, 0
      %v3683 = vsel %vm1715, %v3623, 0
      %v3686 = vsel %vm1715, %v3624, 0
      %v3689 = vsel %vm1715, %v3625, 0
      %v3692 = vsel %vm1715, %v3626, 0
      %v3695 = vsel %vm1715, %v3627, 0
      %v3698 = vsel %vm1715, %v3628, 0
      %v3701 = vsel %vm1715, %v3629, 0
      %v3704 = vsel %vm1715, %v3630, 0
      %v3707 = vsel %vm1715, %v3631, 0
      %v3710 = vsel %vm1715, %v3632, 0
      %v3713 = vsel %vm1715, %v3633, 0
      %v3716 = vsel %vm1715, %v3634, 0
      %v3719 = vsel %vm1715, %v3635, 0
      %v3722 = vsel %vm1715, %v3636, 0
      %v3725 = vsel %vm1715, %v3637, 0
      %v3728 = vsel %vm1764, %v3672, 0
      %3730 = vmatpush.bf16.msra.mxu0 0
      %3731 = vmatpush.bf16.msra.mxu0 %v3728
      %3732 = vmatpush.bf16.msra.mxu0 %v3671
      %3733 = vmatpush.bf16.msra.mxu0 %v3670
      %3734 = vmatpush.bf16.msra.mxu0 %v3669
      %3735 = vmatpush.bf16.msra.mxu0 %v3668
      %3736 = vmatpush.bf16.msra.mxu0 %v3667
      %3737 = vmatpush.bf16.msra.mxu0 %v3666
      %3738 = vmatmul.bf16.gmra.mxu0 %v3680
      %v3739 = vpop.f32.mrf.mxu0
      %v3740 = vadd.f32 0.0, %v3739
      %v3741 = vpop.f32.mrf.mxu0
      %v3742 = vadd.f32 0.0, %v3741
      %3743 = vmatmul.bf16.gmra.mxu0 %v3683
      %v3744 = vpop.f32.mrf.mxu0
      %v3745 = vadd.f32 0.0, %v3744
      %v3746 = vpop.f32.mrf.mxu0
      %v3747 = vadd.f32 0.0, %v3746
      %3748 = vmatmul.bf16.gmra.mxu0 %v3686
      %v3749 = vpop.f32.mrf.mxu0
      %v3750 = vadd.f32 0.0, %v3749
      %v3751 = vpop.f32.mrf.mxu0
      %v3752 = vadd.f32 0.0, %v3751
      %3753 = vmatmul.bf16.gmra.mxu0 %v3689
      %v3754 = vpop.f32.mrf.mxu0
      %v3755 = vadd.f32 0.0, %v3754
      %v3756 = vpop.f32.mrf.mxu0
      %v3757 = vadd.f32 0.0, %v3756
      %3758 = vmatmul.bf16.gmra.mxu0 %v3692
      %v3759 = vpop.f32.mrf.mxu0
      %v3760 = vadd.f32 0.0, %v3759
      %v3761 = vpop.f32.mrf.mxu0
      %v3762 = vadd.f32 0.0, %v3761
      %3763 = vmatmul.bf16.gmra.mxu0 %v3695
      %v3764 = vpop.f32.mrf.mxu0
      %v3765 = vadd.f32 0.0, %v3764
      %v3766 = vpop.f32.mrf.mxu0
      %v3767 = vadd.f32 0.0, %v3766
      %3768 = vmatmul.bf16.gmra.mxu0 %v3698
      %v3769 = vpop.f32.mrf.mxu0
      %v3770 = vadd.f32 0.0, %v3769
      %v3771 = vpop.f32.mrf.mxu0
      %v3772 = vadd.f32 0.0, %v3771
      %3773 = vmatmul.bf16.gmra.mxu0 %v3701
      %v3774 = vpop.f32.mrf.mxu0
      %v3775 = vadd.f32 0.0, %v3774
      %v3776 = vpop.f32.mrf.mxu0
      %v3777 = vadd.f32 0.0, %v3776
      %3778 = vmatmul.bf16.gmra.mxu0 %v3704
      %v3779 = vpop.f32.mrf.mxu0
      %v3780 = vadd.f32 0.0, %v3779
      %v3781 = vpop.f32.mrf.mxu0
      %v3782 = vadd.f32 0.0, %v3781
      %3783 = vmatmul.bf16.gmra.mxu0 %v3707
      %v3784 = vpop.f32.mrf.mxu0
      %v3785 = vadd.f32 0.0, %v3784
      %v3786 = vpop.f32.mrf.mxu0
      %v3787 = vadd.f32 0.0, %v3786
      %3788 = vmatmul.bf16.gmra.mxu0 %v3710
      %v3789 = vpop.f32.mrf.mxu0
      %v3790 = vadd.f32 0.0, %v3789
      %v3791 = vpop.f32.mrf.mxu0
      %v3792 = vadd.f32 0.0, %v3791
      %3793 = vmatmul.bf16.gmra.mxu0 %v3713
      %v3794 = vpop.f32.mrf.mxu0
      %v3795 = vadd.f32 0.0, %v3794
      %v3796 = vpop.f32.mrf.mxu0
      %v3797 = vadd.f32 0.0, %v3796
      %3798 = vmatmul.bf16.gmra.mxu0 %v3716
      %v3799 = vpop.f32.mrf.mxu0
      %v3800 = vadd.f32 0.0, %v3799
      %v3801 = vpop.f32.mrf.mxu0
      %v3802 = vadd.f32 0.0, %v3801
      %3803 = vmatmul.bf16.gmra.mxu0 %v3719
      %v3804 = vpop.f32.mrf.mxu0
      %v3805 = vadd.f32 0.0, %v3804
      %v3806 = vpop.f32.mrf.mxu0
      %v3807 = vadd.f32 0.0, %v3806
      %3808 = vmatmul.bf16.gmra.mxu0 %v3722
      %v3809 = vpop.f32.mrf.mxu0
      %v3810 = vadd.f32 0.0, %v3809
      %v3811 = vpop.f32.mrf.mxu0
      %v3812 = vadd.f32 0.0, %v3811
      %3813 = vmatmul.bf16.gmra.mxu0 %v3725
      %v3814 = vpop.f32.mrf.mxu0
      %v3815 = vadd.f32 0.0, %v3814
      %v3816 = vpop.f32.mrf.mxu0
      %v3817 = vadd.f32 0.0, %v3816
      %3818 = vdwg.mxu0
      %v3819 = vadd.f32 %v3432, %v3740
      %v3820 = vadd.f32 %v3434, %v3742
      %v3821 = vadd.f32 %v3437, %v3745
      %v3822 = vadd.f32 %v3439, %v3747
      %v3823 = vadd.f32 %v3442, %v3750
      %v3824 = vadd.f32 %v3444, %v3752
      %v3825 = vadd.f32 %v3447, %v3755
      %v3826 = vadd.f32 %v3449, %v3757
      %v3827 = vadd.f32 %v3452, %v3760
      %v3828 = vadd.f32 %v3454, %v3762
      %v3829 = vadd.f32 %v3457, %v3765
      %v3830 = vadd.f32 %v3459, %v3767
      %v3831 = vadd.f32 %v3462, %v3770
      %v3832 = vadd.f32 %v3464, %v3772
      %v3833 = vadd.f32 %v3467, %v3775
      %v3834 = vadd.f32 %v3469, %v3777
      %v3835 = vadd.f32 %v3472, %v3780
      %v3836 = vadd.f32 %v3474, %v3782
      %v3837 = vadd.f32 %v3477, %v3785
      %v3838 = vadd.f32 %v3479, %v3787
      %v3839 = vadd.f32 %v3482, %v3790
      %v3840 = vadd.f32 %v3484, %v3792
      %v3841 = vadd.f32 %v3487, %v3795
      %v3842 = vadd.f32 %v3489, %v3797
      %v3843 = vadd.f32 %v3492, %v3800
      %v3844 = vadd.f32 %v3494, %v3802
      %v3845 = vadd.f32 %v3497, %v3805
      %v3846 = vadd.f32 %v3499, %v3807
      %v3847 = vadd.f32 %v3502, %v3810
      %v3848 = vadd.f32 %v3504, %v3812
      %v3849 = vadd.f32 %v3507, %v3815
      %v3850 = vadd.f32 %v3509, %v3817
      %v3851 = vadd.f32 %v3819, %v488
      %v3852 = vadd.f32 %v3820, %v490
      %v3853 = vadd.f32 %v3821, %v493
      %v3854 = vadd.f32 %v3822, %v495
      %v3855 = vadd.f32 %v3823, %v498
      %v3856 = vadd.f32 %v3824, %v500
      %v3857 = vadd.f32 %v3825, %v503
      %v3858 = vadd.f32 %v3826, %v505
      %v3859 = vadd.f32 %v3827, %v508
      %v3860 = vadd.f32 %v3828, %v510
      %v3861 = vadd.f32 %v3829, %v513
      %v3862 = vadd.f32 %v3830, %v515
      %v3863 = vadd.f32 %v3831, %v518
      %v3864 = vadd.f32 %v3832, %v520
      %v3865 = vadd.f32 %v3833, %v523
      %v3866 = vadd.f32 %v3834, %v525
      %v3867 = vadd.f32 %v3835, %v528
      %v3868 = vadd.f32 %v3836, %v530
      %v3869 = vadd.f32 %v3837, %v533
      %v3870 = vadd.f32 %v3838, %v535
      %v3871 = vadd.f32 %v3839, %v538
      %v3872 = vadd.f32 %v3840, %v540
      %v3873 = vadd.f32 %v3841, %v543
      %v3874 = vadd.f32 %v3842, %v545
      %v3875 = vadd.f32 %v3843, %v548
      %v3876 = vadd.f32 %v3844, %v550
      %v3877 = vadd.f32 %v3845, %v553
      %v3878 = vadd.f32 %v3846, %v555
      %v3879 = vadd.f32 %v3847, %v558
      %v3880 = vadd.f32 %v3848, %v560
      %v3881 = vadd.f32 %v3849, %v563
      %v3882 = vadd.f32 %v3850, %v565
      %v3883 = vpack.c.bf16 %v3852, %v3851
      %v3884 = vpack.c.bf16 %v3854, %v3853
      %v3885 = vpack.c.bf16 %v3856, %v3855
      %v3886 = vpack.c.bf16 %v3858, %v3857
      %v3887 = vpack.c.bf16 %v3860, %v3859
      %v3888 = vpack.c.bf16 %v3862, %v3861
      %v3889 = vpack.c.bf16 %v3864, %v3863
      %v3890 = vpack.c.bf16 %v3866, %v3865
      %v3891 = vpack.c.bf16 %v3868, %v3867
      %v3892 = vpack.c.bf16 %v3870, %v3869
      %v3893 = vpack.c.bf16 %v3872, %v3871
      %v3894 = vpack.c.bf16 %v3874, %v3873
      %v3895 = vpack.c.bf16 %v3876, %v3875
      %v3896 = vpack.c.bf16 %v3878, %v3877
      %v3897 = vpack.c.bf16 %v3880, %v3879
      %v3898 = vpack.c.bf16 %v3882, %v3881
      %v3899 = vld [vmem:[%s6] sm:$0xf]
      %v3900 = vld [vmem:[%s6 + $0x4] sm:$0xf]
      %v3901 = vld [vmem:[%s6 + $0x8] sm:$0xf]
      %v3902 = vld [vmem:[%s6 + $0xc] sm:$0xf]
      %v3903 = vld [vmem:[%s6 + $0x10] sm:$0x3]
      %v3904 = vld [vmem:[%s7] sm:$0x1]
      %v3906 = vperm.slane %v3904, 0
      %v3913 = vunpack.c.l.b16 %v3899
      %v3914 = vunpack.c.l.b16 %v3900
      %v3915 = vunpack.c.l.b16 %v3901
      %v3916 = vunpack.c.l.b16 %v3902
      %v3917 = vunpack.c.l.b16 %v3903
      %v3918 = vpack.c.b16 %v3914, %v3913
      %v3919 = vpack.c.b16 %v3916, %v3915
      %v3920 = vpack.c.b16 %v3917, %v3917
      %v3924 = vsel %vm1401, %v3883, 0
      %v3927 = vsel %vm1401, %v3884, 0
      %v3930 = vsel %vm1401, %v3885, 0
      %v3933 = vsel %vm1401, %v3886, 0
      %v3936 = vsel %vm1401, %v3887, 0
      %v3939 = vsel %vm1401, %v3888, 0
      %v3942 = vsel %vm1401, %v3889, 0
      %v3945 = vsel %vm1401, %v3890, 0
      %v3948 = vsel %vm1401, %v3891, 0
      %v3951 = vsel %vm1401, %v3892, 0
      %v3954 = vsel %vm1401, %v3893, 0
      %v3957 = vsel %vm1401, %v3894, 0
      %v3960 = vsel %vm1401, %v3895, 0
      %v3963 = vsel %vm1401, %v3896, 0
      %v3966 = vsel %vm1401, %v3897, 0
      %v3969 = vsel %vm1401, %v3898, 0
      %vm3971 = vcmask 1041408
      %v3973 = vsel %vm3971, %v3920, 0
      %3975 = vmatpush.bf16.msra.mxu0 0
      %3976 = vmatpush.bf16.msra.mxu0 0
      %3977 = vmatpush.bf16.msra.mxu0 0
      %3978 = vmatpush.bf16.msra.mxu0 0
      %3979 = vmatpush.bf16.msra.mxu0 0
      %3980 = vmatpush.bf16.msra.mxu0 %v3973
      %3981 = vmatpush.bf16.msra.mxu0 %v3919
      %3982 = vmatpush.bf16.msra.mxu0 %v3918
      %3983 = vmatmul.bf16.gmra.mxu0 %v3924
      %v3984 = vpop.f32.mrf.mxu0
      %v3985 = vadd.f32 %v3906, %v3984
      %v3986 = vpop.f32.mrf.mxu0
      %v3987 = vadd.f32 %v3906, %v3986
      %3988 = vmatmul.bf16.gmra.mxu0 %v3927
      %v3989 = vpop.f32.mrf.mxu0
      %v3990 = vadd.f32 %v3906, %v3989
      %v3991 = vpop.f32.mrf.mxu0
      %v3992 = vadd.f32 %v3906, %v3991
      %3993 = vmatmul.bf16.gmra.mxu0 %v3930
      %v3994 = vpop.f32.mrf.mxu0
      %v3995 = vadd.f32 %v3906, %v3994
      %v3996 = vpop.f32.mrf.mxu0
      %v3997 = vadd.f32 %v3906, %v3996
      %3998 = vmatmul.bf16.gmra.mxu0 %v3933
      %v3999 = vpop.f32.mrf.mxu0
      %v4000 = vadd.f32 %v3906, %v3999
      %v4001 = vpop.f32.mrf.mxu0
      %v4002 = vadd.f32 %v3906, %v4001
      %4003 = vmatmul.bf16.gmra.mxu0 %v3936
      %v4004 = vpop.f32.mrf.mxu0
      %v4005 = vadd.f32 %v3906, %v4004
      %v4006 = vpop.f32.mrf.mxu0
      %v4007 = vadd.f32 %v3906, %v4006
      %4008 = vmatmul.bf16.gmra.mxu0 %v3939
      %v4009 = vpop.f32.mrf.mxu0
      %v4010 = vadd.f32 %v3906, %v4009
      %v4011 = vpop.f32.mrf.mxu0
      %v4012 = vadd.f32 %v3906, %v4011
      %4013 = vmatmul.bf16.gmra.mxu0 %v3942
      %v4014 = vpop.f32.mrf.mxu0
      %v4015 = vadd.f32 %v3906, %v4014
      %v4016 = vpop.f32.mrf.mxu0
      %v4017 = vadd.f32 %v3906, %v4016
      %4018 = vmatmul.bf16.gmra.mxu0 %v3945
      %v4019 = vpop.f32.mrf.mxu0
      %v4020 = vadd.f32 %v3906, %v4019
      %v4021 = vpop.f32.mrf.mxu0
      %v4022 = vadd.f32 %v3906, %v4021
      %4023 = vmatmul.bf16.gmra.mxu0 %v3948
      %v4024 = vpop.f32.mrf.mxu0
      %v4025 = vadd.f32 %v3906, %v4024
      %v4026 = vpop.f32.mrf.mxu0
      %v4027 = vadd.f32 %v3906, %v4026
      %4028 = vmatmul.bf16.gmra.mxu0 %v3951
      %v4029 = vpop.f32.mrf.mxu0
      %v4030 = vadd.f32 %v3906, %v4029
      %v4031 = vpop.f32.mrf.mxu0
      %v4032 = vadd.f32 %v3906, %v4031
      %4033 = vmatmul.bf16.gmra.mxu0 %v3954
      %v4034 = vpop.f32.mrf.mxu0
      %v4035 = vadd.f32 %v3906, %v4034
      %v4036 = vpop.f32.mrf.mxu0
      %v4037 = vadd.f32 %v3906, %v4036
      %4038 = vmatmul.bf16.gmra.mxu0 %v3957
      %v4039 = vpop.f32.mrf.mxu0
      %v4040 = vadd.f32 %v3906, %v4039
      %v4041 = vpop.f32.mrf.mxu0
      %v4042 = vadd.f32 %v3906, %v4041
      %4043 = vmatmul.bf16.gmra.mxu0 %v3960
      %v4044 = vpop.f32.mrf.mxu0
      %v4045 = vadd.f32 %v3906, %v4044
      %v4046 = vpop.f32.mrf.mxu0
      %v4047 = vadd.f32 %v3906, %v4046
      %4048 = vmatmul.bf16.gmra.mxu0 %v3963
      %v4049 = vpop.f32.mrf.mxu0
      %v4050 = vadd.f32 %v3906, %v4049
      %v4051 = vpop.f32.mrf.mxu0
      %v4052 = vadd.f32 %v3906, %v4051
      %4053 = vmatmul.bf16.gmra.mxu0 %v3966
      %v4054 = vpop.f32.mrf.mxu0
      %v4055 = vadd.f32 %v3906, %v4054
      %v4056 = vpop.f32.mrf.mxu0
      %v4057 = vadd.f32 %v3906, %v4056
      %4058 = vmatmul.bf16.gmra.mxu0 %v3969
      %v4059 = vpop.f32.mrf.mxu0
      %v4060 = vadd.f32 %v3906, %v4059
      %v4061 = vpop.f32.mrf.mxu0
      %v4062 = vadd.f32 %v3906, %v4061
      %4063 = vdwg.mxu0
      %v4064 = vpack.c.bf16 %v3985, %v3985
      %v4065 = vpack.c.bf16 %v3987, %v3987
      %v4066 = vpack.c.bf16 %v3990, %v3990
      %v4067 = vpack.c.bf16 %v3992, %v3992
      %v4068 = vpack.c.bf16 %v3995, %v3995
      %v4069 = vpack.c.bf16 %v3997, %v3997
      %v4070 = vpack.c.bf16 %v4000, %v4000
      %v4071 = vpack.c.bf16 %v4002, %v4002
      %v4072 = vpack.c.bf16 %v4005, %v4005
      %v4073 = vpack.c.bf16 %v4007, %v4007
      %v4074 = vpack.c.bf16 %v4010, %v4010
      %v4075 = vpack.c.bf16 %v4012, %v4012
      %v4076 = vpack.c.bf16 %v4015, %v4015
      %v4077 = vpack.c.bf16 %v4017, %v4017
      %v4078 = vpack.c.bf16 %v4020, %v4020
      %v4079 = vpack.c.bf16 %v4022, %v4022
      %v4080 = vpack.c.bf16 %v4025, %v4025
      %v4081 = vpack.c.bf16 %v4027, %v4027
      %v4082 = vpack.c.bf16 %v4030, %v4030
      %v4083 = vpack.c.bf16 %v4032, %v4032
      %v4084 = vpack.c.bf16 %v4035, %v4035
      %v4085 = vpack.c.bf16 %v4037, %v4037
      %v4086 = vpack.c.bf16 %v4040, %v4040
      %v4087 = vpack.c.bf16 %v4042, %v4042
      %v4088 = vpack.c.bf16 %v4045, %v4045
      %v4089 = vpack.c.bf16 %v4047, %v4047
      %v4090 = vpack.c.bf16 %v4050, %v4050
      %v4091 = vpack.c.bf16 %v4052, %v4052
      %v4092 = vpack.c.bf16 %v4055, %v4055
      %v4093 = vpack.c.bf16 %v4057, %v4057
      %v4094 = vpack.c.bf16 %v4060, %v4060
      %v4095 = vpack.c.bf16 %v4062, %v4062
      %vm4096 = vcmask 27648
      %4097 = vst.msk [vmem:[%s305] sm:$0xf] %vm4096, %v4064
      %4098 = vst.msk [vmem:[%s305 + $0x4] sm:$0xf] %vm4096, %v4065
      %4099 = vst.msk [vmem:[%s305 + $0x8] sm:$0xf] %vm4096, %v4066
      %4100 = vst.msk [vmem:[%s305 + $0xc] sm:$0xf] %vm4096, %v4067
      %4101 = vst.msk [vmem:[%s305 + $0x10] sm:$0xf] %vm4096, %v4068
      %4102 = vst.msk [vmem:[%s305 + $0x14] sm:$0xf] %vm4096, %v4069
      %4103 = vst.msk [vmem:[%s305 + $0x18] sm:$0xf] %vm4096, %v4070
      %4104 = vst.msk [vmem:[%s305 + $0x1c] sm:$0xf] %vm4096, %v4071
      %4105 = vst.msk [vmem:[%s305 + $0x20] sm:$0xf] %vm4096, %v4072
      %4106 = vst.msk [vmem:[%s305 + $0x24] sm:$0xf] %vm4096, %v4073
      %4107 = vst.msk [vmem:[%s305 + $0x28] sm:$0xf] %vm4096, %v4074
      %4108 = vst.msk [vmem:[%s305 + $0x2c] sm:$0xf] %vm4096, %v4075
      %4109 = vst.msk [vmem:[%s305 + $0x30] sm:$0xf] %vm4096, %v4076
      %4110 = vst.msk [vmem:[%s305 + $0x34] sm:$0xf] %vm4096, %v4077
      %4111 = vst.msk [vmem:[%s305 + $0x38] sm:$0xf] %vm4096, %v4078
      %4112 = vst.msk [vmem:[%s305 + $0x3c] sm:$0xf] %vm4096, %v4079
      %4113 = vst.msk [vmem:[%s305 + $0x40] sm:$0xf] %vm4096, %v4080
      %4114 = vst.msk [vmem:[%s305 + $0x44] sm:$0xf] %vm4096, %v4081
      %4115 = vst.msk [vmem:[%s305 + $0x48] sm:$0xf] %vm4096, %v4082
      %4116 = vst.msk [vmem:[%s305 + $0x4c] sm:$0xf] %vm4096, %v4083
      %4117 = vst.msk [vmem:[%s305 + $0x50] sm:$0xf] %vm4096, %v4084
      %4118 = vst.msk [vmem:[%s305 + $0x54] sm:$0xf] %vm4096, %v4085
      %4119 = vst.msk [vmem:[%s305 + $0x58] sm:$0xf] %vm4096, %v4086
      %4120 = vst.msk [vmem:[%s305 + $0x5c] sm:$0xf] %vm4096, %v4087
      %4121 = vst.msk [vmem:[%s305 + $0x60] sm:$0xf] %vm4096, %v4088
      %4122 = vst.msk [vmem:[%s305 + $0x64] sm:$0xf] %vm4096, %v4089
      %4123 = vst.msk [vmem:[%s305 + $0x68] sm:$0xf] %vm4096, %v4090
      %4124 = vst.msk [vmem:[%s305 + $0x6c] sm:$0xf] %vm4096, %v4091
      %4125 = vst.msk [vmem:[%s305 + $0x70] sm:$0xf] %vm4096, %v4092
      %4126 = vst.msk [vmem:[%s305 + $0x74] sm:$0xf] %vm4096, %v4093
      %4127 = vst.msk [vmem:[%s305 + $0x78] sm:$0xf] %vm4096, %v4094
      %4128 = vst.msk [vmem:[%s305 + $0x7c] sm:$0xf] %vm4096, %v4095
      %p4129 = scmp.lt.s32.totalorder %s19, 1
      %s4130 = scalar_select %p4129, %s19, 1
      %s4131 = smul.addr %s4130, 32
      %s4132 = smul.addr %s4131, 4
      %s4133 = scalar_lea.vmem %s8, %s4132
      // Predicated region
      $region53: #{tpu_custom_call.1} parent=51 // pred_check
        %p4134 = pneg %p210
      $region54: #{tpu_custom_call.1} parent=51 // pred_check_branch
        %4136 = sbr.rel (%p4134) target = $region56
      $region55: #{tpu_custom_call.1} parent=51 // pred_region
        _
      $region56: #{tpu_custom_call.1} parent=51 // pred_fallthru
        _
    $region52: #{tpu_custom_call.1} parent=5 // pred_fallthru
      _
    %p4137 = scmp.le.s32.totalorder 2, %s14
    // Predicated region
    $region57: #{tpu_custom_call.1} parent=5 // pred_check
      %p4138 = pneg %p4137
    $region58: #{tpu_custom_call.1} parent=5 // pred_check_branch
      %4140 = sbr.rel (%p4138) target = $region60
    $region59: #{tpu_custom_call.1} parent=5 // pred_region
      %s4141 = ssub.s32 %s14, 2
      // Predicated region
      $region61: #{tpu_custom_call.1} parent=59 // pred_check
        %p4142 = pneg %p216
      $region62: #{tpu_custom_call.1} parent=59 // pred_check_branch
        %4144 = sbr.rel (%p4142) target = $region64
      $region63: #{tpu_custom_call.1} parent=59 // pred_region
        %p4145 = scmp.lt.s32.totalorder %s20, 1
        %s4146 = scalar_select %p4145, %s20, 1
        %s4147 = smul.addr %s4146, 32
        %s4148 = smul.addr %s4147, 4
        %s4149 = scalar_lea.vmem %s8, %s4148
      $region64: #{tpu_custom_call.1} parent=59 // pred_fallthru
        _
    $region60: #{tpu_custom_call.1} parent=5 // pred_fallthru
      _
  $region6: #{tpu_custom_call.1} parent=0 // loop_footer
    %s18 = sadd.s32 1, %s14
  $region7: #{tpu_custom_call.1} parent=0 // loop_footer_branch
    %13 = sbr.rel target = $region3
  $region8: #{tpu_custom_call.1} parent=0 // loop_exit
    _

</llo_original>
